<compile_context>
chip_gen: v6e
topology: v6e:2x2x1
jax: 0.10.0
libtpu: 0.0.40
codegen_flags: <defaults>
</compile_context>

<pallas_src>
import functools

import numpy as np
import jax
import jax.numpy as jnp
from jax.experimental import pallas as pl
from jax.experimental.pallas import tpu as pltpu


# ---------------------------------------------------------------------------
# Cubic B-spline basis (pow-free, faithful to BsplineBasis.forward)
# ---------------------------------------------------------------------------
def _bspline1d_fast(t):
    """Piecewise cubic B-spline basis with the reference's Heaviside quirks.

      |t| in [0,1) or t == 1 : (3|t|^3 - 6|t|^2 + 4) / 6
      |t| in (1,2)           : (2 - |t|)^3 / 6
      elsewhere              : 0
      t == 0                 : doubled  (reference adds both its B1 and B2 pieces there)
      t == -1                : 0        (reference's Heaviside edges give 0 there)
    """
    a = jnp.abs(t)
    a2 = a * a
    a3 = a2 * a
    p_inner = (3.0 * a3 - 6.0 * a2 + 4.0) * (1.0 / 6.0)
    d = 2.0 - a
    p_outer = (d * d * d) * (1.0 / 6.0)
    inner = jnp.logical_and(t > -1.0, t <= 1.0)
    outer = jnp.logical_and(a > 1.0, a < 2.0)
    b = jnp.where(inner, p_inner, jnp.where(outer, p_outer, 0.0))
    b = jnp.where(t == 0.0, p_inner + p_inner, b)   # reference double-counts t == 0
    return b


# ---------------------------------------------------------------------------
# Pallas kernel: one tile of TN points on the lane axis.
#   xt      : (3, TN)        point coordinates (x row 0, y row 1, z row 2)
#   origin  : (3, 1), inv_spacing : (3, 1)
#   sx/sy/sz: (nx,1)/(ny,1)/(nz,1)  unique per-axis node coordinates (0..n-1)
#   w2      : (ny*g_pad, nz)  folded control weights, rows (j, i, c), each
#                             j-group zero-padded from 3*nx to g_pad rows
#   o       : (3, TN)         stacked (u, v, w)
#   p       : VMEM scratch (ny*g_pad, TN) for the z-contraction result
# ---------------------------------------------------------------------------
def _bspline3d_kernel(xt_ref, origin_ref, invsp_ref,
                      sx_ref, sy_ref, sz_ref, w2_ref,
                      o_ref, p_ref, *, nx, ny, nz, g_pad):
    del nz  # static shape info only
    coord = (xt_ref[...] - origin_ref[...]) * invsp_ref[...]          # (3, TN)

    # Separable 1-D basis (only nx+ny+nz distinct shifts exist).
    bx = _bspline1d_fast(coord[0:1, :] - sx_ref[...])                 # (nx, TN)
    by = _bspline1d_fast(coord[1:2, :] - sy_ref[...])                 # (ny, TN)
    bz = _bspline1d_fast(coord[2:3, :] - sz_ref[...])                 # (nz, TN)

    # One MXU matmul folds every control weight over the z axis:
    #   p[j*g_pad + i*3 + c, n] = sum_k w[c,i,j,k] * bz[k, n]
    p_ref[...] = jnp.dot(w2_ref[...], bz,
                         preferred_element_type=jnp.float32,
                         precision=jax.lax.Precision.HIGHEST)

    # Contract the y axis: ny unrolled VPU MAC steps over contiguous,
    # 8-aligned sublane groups of the matmul result (streamed from VMEM).
    q = p_ref[pl.ds(0, g_pad), :] * by[0:1, :]                        # (g_pad, TN)
    for j in range(1, ny):
        q = q + p_ref[pl.ds(j * g_pad, g_pad), :] * by[j:j + 1, :]

    # Contract the x axis: nx unrolled VPU MAC steps; q rows are ordered (i, c).
    acc = q[0:3, :] * bx[0:1, :]                                      # (3, TN)
    for i in range(1, nx):
        acc = acc + q[3 * i:3 * i + 3, :] * bx[i:i + 1, :]

    o_ref[...] = acc                                                  # lane-dense (3, TN)


# ---------------------------------------------------------------------------
# Core wrapper: lane-dense (3, N) in / (3, N) out — no HBM relayout passes.
# ---------------------------------------------------------------------------
def bspline3d_forward_t(xt, origin, spacing, nodes_shape,
                        weight_u, weight_v, weight_w, *, tile_n=2048):
    three, N = xt.shape
    assert three == 3
    nx, ny, nz = (int(s) for s in nodes_shape)
    g = 3 * nx                       # rows per j-group (ordered i, c)
    g_pad = -(-g // 8) * 8           # pad to a multiple of 8 sublanes (aligned slices)
    R = ny * g_pad

    assert tile_n % 256 == 0, "tile_n must be a multiple of 256"
    # Keep >= 2 grid steps when N allows it (v7x has 2 TensorCores; "parallel" shards them),
    # and avoid massive padding for small N.  Large N uses the full requested tile.
    half = (N + 1) // 2
    tile_n = max(256, min(tile_n, 256 * (-(-half // 256))))

    n_pad = (-N) % tile_n
    xtp = xt.astype(jnp.float32)
    if n_pad:
        xtp = jnp.pad(xtp, ((0, 0), (0, n_pad)))
    Np = N + n_pad

    origin_c = jnp.asarray(origin, jnp.float32).reshape(3, 1)
    invsp_c = (1.0 / jnp.asarray(spacing, jnp.float32)).reshape(3, 1)

    # Unique per-axis node coordinates (np.mgrid gives 0..n-1 per axis; the
    # reference's flattened node index is q = i*ny*nz + j*nz + k).
    sx = jnp.arange(nx, dtype=jnp.float32).reshape(nx, 1)
    sy = jnp.arange(ny, dtype=jnp.float32).reshape(ny, 1)
    sz = jnp.arange(nz, dtype=jnp.float32).reshape(nz, 1)

    # Fold the three (1, K) control-weight vectors into one (ny*g_pad, nz) matrix
    # with rows ordered (j, i, c); each j-group is zero-padded from 3*nx to g_pad rows.
    w4 = jnp.stack([jnp.reshape(weight_u, (nx, ny, nz)),
                    jnp.reshape(weight_v, (nx, ny, nz)),
                    jnp.reshape(weight_w, (nx, ny, nz))],
                   axis=0).astype(jnp.float32)                         # (c, i, j, k)
    w_jic = jnp.transpose(w4, (2, 1, 0, 3)).reshape(ny, g, nz)         # rows (i*3 + c)
    w2 = jnp.pad(w_jic, ((0, 0), (0, g_pad - g), (0, 0))).reshape(R, nz)

    # VMEM sanity (scratch + double-buffered point/output tiles + small consts);
    # stays far below the default scoped VMEM limit on v5e/v6e/v7x for sane configs.
    vmem_est = 4 * (R * tile_n + 4 * 3 * tile_n + R * nz + nx + ny + nz + 6)
    assert vmem_est < 12 * 1024 * 1024, (
        "nodes_shape / tile_n too large for default scoped VMEM; lower tile_n")

    kern = functools.partial(_bspline3d_kernel, nx=nx, ny=ny, nz=nz, g_pad=g_pad)

    def const_spec(shape):
        return pl.BlockSpec(shape, lambda i: (0, 0))

    out_t = pl.pallas_call(
        kern,
        out_shape=jax.ShapeDtypeStruct((3, Np), jnp.float32),
        grid_spec=pltpu.PrefetchScalarGridSpec(
            num_scalar_prefetch=0,
            grid=(Np // tile_n,),
            in_specs=[
                pl.BlockSpec((3, tile_n), lambda i: (0, i)),   # points (3, TN)
                const_spec((3, 1)),                            # origin
                const_spec((3, 1)),                            # 1 / spacing
                const_spec((nx, 1)),                           # unique shift_x
                const_spec((ny, 1)),                           # unique shift_y
                const_spec((nz, 1)),                           # unique shift_z
                const_spec((R, nz)),                           # folded control weights
            ],
            out_specs=pl.BlockSpec((3, tile_n), lambda i: (0, i)),
            scratch_shapes=[pltpu.VMEM((R, tile_n), jnp.float32)],
        ),
        compiler_params=pltpu.CompilerParams(
            dimension_semantics=("parallel",)),
    )(xtp, origin_c, invsp_c, sx, sy, sz, w2)

    return out_t[:, :N] if n_pad else out_t


def bspline3d_forward(x, origin, spacing, nodes_shape,
                      weight_u, weight_v, weight_w, *, tile_n=2048):
    """Module-compatible (N, 3) -> (N, 3) wrapper.

    The two transposes here are separate XLA relayout passes over x / out; for very
    large N (or when this op sits in a memory-bound pipeline) call
    bspline3d_forward_t directly and keep the lane-dense (3, N) layout end-to-end.
    """
    out_t = bspline3d_forward_t(x.T, origin, spacing, nodes_shape,
                                weight_u, weight_v, weight_w, tile_n=tile_n)
    return out_t.T


# ---------------------------------------------------------------------------
# Pure-JAX reference: literal translation of the PyTorch forward (Heaviside form).
# ---------------------------------------------------------------------------
def _heaviside(v, value_at_zero):
    return jnp.where(v > 0.0, 1.0, jnp.where(v == 0.0, value_at_zero, 0.0))


def _bspline1d_reference(x):
    B0 = (_heaviside(x - 1.0, 0.0) * _heaviside(-x + 2.0, 0.0)
          * ((2.0 - x) * (2.0 - x) * (2.0 - x)) / 6.0)
    B1 = (_heaviside(x, 1.0) * _heaviside(-x + 1.0, 1.0)
          * (3.0 * x * x * x - 6.0 * x * x + 4.0) / 6.0)
    B2 = (_heaviside(x + 1.0, 0.0) * _heaviside(-x, 1.0)
          * (-3.0 * x * x * x - 6.0 * x * x + 4.0) / 6.0)
    B3 = (_heaviside(x + 2.0, 0.0) * _heaviside(-x - 1.0, 0.0)
          * ((x + 2.0) * (x + 2.0) * (x + 2.0)) / 6.0)
    return B0 + B1 + B2 + B3


def bspline3d_reference(x, origin, spacing, shift_x, shift_y, shift_z,
                        weight_u, weight_v, weight_w):
    coord = (x - origin) / spacing
    sw = (_bspline1d_reference(coord[..., 0:1] - shift_x) *
          _bspline1d_reference(coord[..., 1:2] - shift_y) *
          _bspline1d_reference(coord[..., 2:3] - shift_z))
    u = jnp.sum(sw * weight_u, -1, keepdims=True)
    v = jnp.sum(sw * weight_v, -1, keepdims=True)
    w = jnp.sum(sw * weight_w, -1, keepdims=True)
    return jnp.concatenate((u, v, w), axis=-1)


if __name__ == "__main__":
    # ---- module configuration (Bspline3D.__init__) ----
    nodes_shape = [4, 3, 5]                       # non-cubic grid to exercise axis ordering
    nx, ny, nz = nodes_shape
    K = nx * ny * nz

    # power-of-two spacing / exactly representable origin -> coord is bit-identical
    # between the (x-o)/s reference path and the (x-o)*(1/s) kernel path
    origin_np = np.array([0.25, -0.5, 0.125], dtype=np.float32)
    spacing_np = np.array([0.5, 0.5, 0.5], dtype=np.float32)

    nodes_coord = np.mgrid[0:nx, 0:ny, 0:nz]
    shift_x = jnp.asarray(nodes_coord[0].reshape(1, -1).astype(np.float32))
    shift_y = jnp.asarray(nodes_coord[1].reshape(1, -1).astype(np.float32))
    shift_z = jnp.asarray(nodes_coord[2].reshape(1, -1).astype(np.float32))

    # Non-uniform control-point weights to validate the node-index ordering.
    key = jax.random.PRNGKey(0)
    kx, ku, kv, kw = jax.random.split(key, 4)
    weight_u = jax.random.normal(ku, (1, K), dtype=jnp.float32)
    weight_v = jax.random.normal(kv, (1, K), dtype=jnp.float32)
    weight_w = jax.random.normal(kw, (1, K), dtype=jnp.float32)

    # ---- example input: N points covering the node grid (not a tile multiple) ----
    N = 1900
    x = jax.random.uniform(kx, (N, 3), dtype=jnp.float32, minval=-0.5, maxval=2.5)

    out = bspline3d_forward(x, origin_np, spacing_np, nodes_shape,
                            weight_u, weight_v, weight_w, tile_n=2048)
    out = jax.block_until_ready(out)

    ref = bspline3d_reference(x,
                              jnp.asarray(origin_np).reshape(1, 3),
                              jnp.asarray(spacing_np).reshape(1, 3),
                              shift_x, shift_y, shift_z,
                              weight_u, weight_v, weight_w)
    ref = jax.block_until_ready(ref)

    assert out.shape == (N, 3)
    np.testing.assert_allclose(np.asarray(out), np.asarray(ref),
                               rtol=1e-5, atol=1e-5)
    print("KERNEL_OK")
</pallas_src>

<mosaic_0001>
module attributes {stable_mosaic.version = 11 : i64} {
  func.func @_bspline3d_kernel(%arg0: i32, %arg1: memref<3x1024xf32, #tpu.memory_space<vmem>>, %arg2: memref<3x1xf32, #tpu.memory_space<vmem>>, %arg3: memref<3x1xf32, #tpu.memory_space<vmem>>, %arg4: memref<4x1xf32, #tpu.memory_space<vmem>>, %arg5: memref<3x1xf32, #tpu.memory_space<vmem>>, %arg6: memref<5x1xf32, #tpu.memory_space<vmem>>, %arg7: memref<48x5xf32, #tpu.memory_space<vmem>>, %arg8: memref<3x1024xf32, #tpu.memory_space<vmem>>, %arg9: memref<48x1024xf32, #tpu.memory_space<vmem>>) attributes {dimension_semantics = [#tpu.dimension_semantics<parallel>], iteration_bounds = array<i64: 2>, scalar_prefetch = 0 : i64, scratch_operands = 1 : i64, tpu.core_type = #tpu.core_type<tc>, window_params = [{transform_indices = @transform_0, window_bounds = array<i64: 3, 1024>}, {pipeline_mode = #tpu.pipeline_mode<synchronous>, transform_indices = @transform_1, window_bounds = array<i64: 3, 1>}, {pipeline_mode = #tpu.pipeline_mode<synchronous>, transform_indices = @transform_2, window_bounds = array<i64: 3, 1>}, {pipeline_mode = #tpu.pipeline_mode<synchronous>, transform_indices = @transform_3, window_bounds = array<i64: 4, 1>}, {pipeline_mode = #tpu.pipeline_mode<synchronous>, transform_indices = @transform_4, window_bounds = array<i64: 3, 1>}, {pipeline_mode = #tpu.pipeline_mode<synchronous>, transform_indices = @transform_5, window_bounds = array<i64: 5, 1>}, {pipeline_mode = #tpu.pipeline_mode<synchronous>, transform_indices = @transform_6, window_bounds = array<i64: 48, 5>}, {transform_indices = @transform_7, window_bounds = array<i64: 3, 1024>}]} {
    %c0 = arith.constant 0 : index
    %c0_0 = arith.constant 0 : index
    %0 = vector.load %arg1[%c0, %c0_0] : memref<3x1024xf32, #tpu.memory_space<vmem>>, vector<3x1024xf32>
    %c0_1 = arith.constant 0 : index
    %c0_2 = arith.constant 0 : index
    %1 = vector.load %arg2[%c0_1, %c0_2] : memref<3x1xf32, #tpu.memory_space<vmem>>, vector<3x1xf32>
    %2 = vector.broadcast %1 : vector<3x1xf32> to vector<3x1024xf32>
    %3 = arith.subf %0, %2 : vector<3x1024xf32>
    %c0_3 = arith.constant 0 : index
    %c0_4 = arith.constant 0 : index
    %4 = vector.load %arg3[%c0_3, %c0_4] : memref<3x1xf32, #tpu.memory_space<vmem>>, vector<3x1xf32>
    %5 = vector.broadcast %4 : vector<3x1xf32> to vector<3x1024xf32>
    %6 = arith.mulf %3, %5 : vector<3x1024xf32>
    %7 = vector.extract_strided_slice %6 {offsets = [0, 0], sizes = [1, 1024], strides = [1, 1]} : vector<3x1024xf32> to vector<1x1024xf32>
    %c0_5 = arith.constant 0 : index
    %c0_6 = arith.constant 0 : index
    %8 = vector.load %arg4[%c0_5, %c0_6] : memref<4x1xf32, #tpu.memory_space<vmem>>, vector<4x1xf32>
    %9 = vector.broadcast %7 : vector<1x1024xf32> to vector<4x1024xf32>
    %10 = vector.broadcast %8 : vector<4x1xf32> to vector<4x1024xf32>
    %11 = arith.subf %9, %10 : vector<4x1024xf32>
    %12 = math.absf %11 : vector<4x1024xf32>
    %13 = arith.mulf %12, %12 : vector<4x1024xf32>
    %14 = arith.mulf %13, %12 : vector<4x1024xf32>
    %cst = arith.constant 3.000000e+00 : f32
    %15 = vector.broadcast %cst : f32 to vector<4x1024xf32>
    %16 = arith.mulf %15, %14 : vector<4x1024xf32>
    %cst_7 = arith.constant 6.000000e+00 : f32
    %17 = vector.broadcast %cst_7 : f32 to vector<4x1024xf32>
    %18 = arith.mulf %17, %13 : vector<4x1024xf32>
    %19 = arith.subf %16, %18 : vector<4x1024xf32>
    %cst_8 = arith.constant 4.000000e+00 : f32
    %20 = vector.broadcast %cst_8 : f32 to vector<4x1024xf32>
    %21 = arith.addf %19, %20 : vector<4x1024xf32>
    %cst_9 = arith.constant 0.166666672 : f32
    %22 = vector.broadcast %cst_9 : f32 to vector<4x1024xf32>
    %23 = arith.mulf %21, %22 : vector<4x1024xf32>
    %cst_10 = arith.constant 2.000000e+00 : f32
    %24 = vector.broadcast %cst_10 : f32 to vector<4x1024xf32>
    %25 = arith.subf %24, %12 : vector<4x1024xf32>
    %26 = arith.mulf %25, %25 : vector<4x1024xf32>
    %27 = arith.mulf %26, %25 : vector<4x1024xf32>
    %cst_11 = arith.constant 0.166666672 : f32
    %28 = vector.broadcast %cst_11 : f32 to vector<4x1024xf32>
    %29 = arith.mulf %27, %28 : vector<4x1024xf32>
    %cst_12 = arith.constant -1.000000e+00 : f32
    %30 = vector.broadcast %cst_12 : f32 to vector<4x1024xf32>
    %31 = arith.cmpf ogt, %11, %30 : vector<4x1024xf32>
    %cst_13 = arith.constant 1.000000e+00 : f32
    %32 = vector.broadcast %cst_13 : f32 to vector<4x1024xf32>
    %33 = arith.cmpf ole, %11, %32 : vector<4x1024xf32>
    %34 = arith.andi %31, %33 : vector<4x1024xi1>
    %cst_14 = arith.constant 1.000000e+00 : f32
    %35 = vector.broadcast %cst_14 : f32 to vector<4x1024xf32>
    %36 = arith.cmpf ogt, %12, %35 : vector<4x1024xf32>
    %cst_15 = arith.constant 2.000000e+00 : f32
    %37 = vector.broadcast %cst_15 : f32 to vector<4x1024xf32>
    %38 = arith.cmpf olt, %12, %37 : vector<4x1024xf32>
    %39 = arith.andi %36, %38 : vector<4x1024xi1>
    %cst_16 = arith.constant 0.000000e+00 : f32
    %40 = vector.broadcast %cst_16 : f32 to vector<4x1024xf32>
    %41 = arith.select %39, %29, %40 : vector<4x1024xi1>, vector<4x1024xf32>
    %42 = arith.select %34, %23, %41 : vector<4x1024xi1>, vector<4x1024xf32>
    %cst_17 = arith.constant 0.000000e+00 : f32
    %43 = vector.broadcast %cst_17 : f32 to vector<4x1024xf32>
    %44 = arith.cmpf oeq, %11, %43 : vector<4x1024xf32>
    %45 = arith.addf %23, %23 : vector<4x1024xf32>
    %46 = arith.select %44, %45, %42 : vector<4x1024xi1>, vector<4x1024xf32>
    %47 = vector.extract_strided_slice %6 {offsets = [1, 0], sizes = [1, 1024], strides = [1, 1]} : vector<3x1024xf32> to vector<1x1024xf32>
    %c0_18 = arith.constant 0 : index
    %c0_19 = arith.constant 0 : index
    %48 = vector.load %arg5[%c0_18, %c0_19] : memref<3x1xf32, #tpu.memory_space<vmem>>, vector<3x1xf32>
    %49 = vector.broadcast %47 : vector<1x1024xf32> to vector<3x1024xf32>
    %50 = vector.broadcast %48 : vector<3x1xf32> to vector<3x1024xf32>
    %51 = arith.subf %49, %50 : vector<3x1024xf32>
    %52 = math.absf %51 : vector<3x1024xf32>
    %53 = arith.mulf %52, %52 : vector<3x1024xf32>
    %54 = arith.mulf %53, %52 : vector<3x1024xf32>
    %cst_20 = arith.constant 3.000000e+00 : f32
    %55 = vector.broadcast %cst_20 : f32 to vector<3x1024xf32>
    %56 = arith.mulf %55, %54 : vector<3x1024xf32>
    %cst_21 = arith.constant 6.000000e+00 : f32
    %57 = vector.broadcast %cst_21 : f32 to vector<3x1024xf32>
    %58 = arith.mulf %57, %53 : vector<3x1024xf32>
    %59 = arith.subf %56, %58 : vector<3x1024xf32>
    %cst_22 = arith.constant 4.000000e+00 : f32
    %60 = vector.broadcast %cst_22 : f32 to vector<3x1024xf32>
    %61 = arith.addf %59, %60 : vector<3x1024xf32>
    %cst_23 = arith.constant 0.166666672 : f32
    %62 = vector.broadcast %cst_23 : f32 to vector<3x1024xf32>
    %63 = arith.mulf %61, %62 : vector<3x1024xf32>
    %cst_24 = arith.constant 2.000000e+00 : f32
    %64 = vector.broadcast %cst_24 : f32 to vector<3x1024xf32>
    %65 = arith.subf %64, %52 : vector<3x1024xf32>
    %66 = arith.mulf %65, %65 : vector<3x1024xf32>
    %67 = arith.mulf %66, %65 : vector<3x1024xf32>
    %cst_25 = arith.constant 0.166666672 : f32
    %68 = vector.broadcast %cst_25 : f32 to vector<3x1024xf32>
    %69 = arith.mulf %67, %68 : vector<3x1024xf32>
    %cst_26 = arith.constant -1.000000e+00 : f32
    %70 = vector.broadcast %cst_26 : f32 to vector<3x1024xf32>
    %71 = arith.cmpf ogt, %51, %70 : vector<3x1024xf32>
    %cst_27 = arith.constant 1.000000e+00 : f32
    %72 = vector.broadcast %cst_27 : f32 to vector<3x1024xf32>
    %73 = arith.cmpf ole, %51, %72 : vector<3x1024xf32>
    %74 = arith.andi %71, %73 : vector<3x1024xi1>
    %cst_28 = arith.constant 1.000000e+00 : f32
    %75 = vector.broadcast %cst_28 : f32 to vector<3x1024xf32>
    %76 = arith.cmpf ogt, %52, %75 : vector<3x1024xf32>
    %cst_29 = arith.constant 2.000000e+00 : f32
    %77 = vector.broadcast %cst_29 : f32 to vector<3x1024xf32>
    %78 = arith.cmpf olt, %52, %77 : vector<3x1024xf32>
    %79 = arith.andi %76, %78 : vector<3x1024xi1>
    %cst_30 = arith.constant 0.000000e+00 : f32
    %80 = vector.broadcast %cst_30 : f32 to vector<3x1024xf32>
    %81 = arith.select %79, %69, %80 : vector<3x1024xi1>, vector<3x1024xf32>
    %82 = arith.select %74, %63, %81 : vector<3x1024xi1>, vector<3x1024xf32>
    %cst_31 = arith.constant 0.000000e+00 : f32
    %83 = vector.broadcast %cst_31 : f32 to vector<3x1024xf32>
    %84 = arith.cmpf oeq, %51, %83 : vector<3x1024xf32>
    %85 = arith.addf %63, %63 : vector<3x1024xf32>
    %86 = arith.select %84, %85, %82 : vector<3x1024xi1>, vector<3x1024xf32>
    %87 = vector.extract_strided_slice %6 {offsets = [2, 0], sizes = [1, 1024], strides = [1, 1]} : vector<3x1024xf32> to vector<1x1024xf32>
    %c0_32 = arith.constant 0 : index
    %c0_33 = arith.constant 0 : index
    %88 = vector.load %arg6[%c0_32, %c0_33] : memref<5x1xf32, #tpu.memory_space<vmem>>, vector<5x1xf32>
    %89 = vector.broadcast %87 : vector<1x1024xf32> to vector<5x1024xf32>
    %90 = vector.broadcast %88 : vector<5x1xf32> to vector<5x1024xf32>
    %91 = arith.subf %89, %90 : vector<5x1024xf32>
    %92 = math.absf %91 : vector<5x1024xf32>
    %93 = arith.mulf %92, %92 : vector<5x1024xf32>
    %94 = arith.mulf %93, %92 : vector<5x1024xf32>
    %cst_34 = arith.constant 3.000000e+00 : f32
    %95 = vector.broadcast %cst_34 : f32 to vector<5x1024xf32>
    %96 = arith.mulf %95, %94 : vector<5x1024xf32>
    %cst_35 = arith.constant 6.000000e+00 : f32
    %97 = vector.broadcast %cst_35 : f32 to vector<5x1024xf32>
    %98 = arith.mulf %97, %93 : vector<5x1024xf32>
    %99 = arith.subf %96, %98 : vector<5x1024xf32>
    %cst_36 = arith.constant 4.000000e+00 : f32
    %100 = vector.broadcast %cst_36 : f32 to vector<5x1024xf32>
    %101 = arith.addf %99, %100 : vector<5x1024xf32>
    %cst_37 = arith.constant 0.166666672 : f32
    %102 = vector.broadcast %cst_37 : f32 to vector<5x1024xf32>
    %103 = arith.mulf %101, %102 : vector<5x1024xf32>
    %cst_38 = arith.constant 2.000000e+00 : f32
    %104 = vector.broadcast %cst_38 : f32 to vector<5x1024xf32>
    %105 = arith.subf %104, %92 : vector<5x1024xf32>
    %106 = arith.mulf %105, %105 : vector<5x1024xf32>
    %107 = arith.mulf %106, %105 : vector<5x1024xf32>
    %cst_39 = arith.constant 0.166666672 : f32
    %108 = vector.broadcast %cst_39 : f32 to vector<5x1024xf32>
    %109 = arith.mulf %107, %108 : vector<5x1024xf32>
    %cst_40 = arith.constant -1.000000e+00 : f32
    %110 = vector.broadcast %cst_40 : f32 to vector<5x1024xf32>
    %111 = arith.cmpf ogt, %91, %110 : vector<5x1024xf32>
    %cst_41 = arith.constant 1.000000e+00 : f32
    %112 = vector.broadcast %cst_41 : f32 to vector<5x1024xf32>
    %113 = arith.cmpf ole, %91, %112 : vector<5x1024xf32>
    %114 = arith.andi %111, %113 : vector<5x1024xi1>
    %cst_42 = arith.constant 1.000000e+00 : f32
    %115 = vector.broadcast %cst_42 : f32 to vector<5x1024xf32>
    %116 = arith.cmpf ogt, %92, %115 : vector<5x1024xf32>
    %cst_43 = arith.constant 2.000000e+00 : f32
    %117 = vector.broadcast %cst_43 : f32 to vector<5x1024xf32>
    %118 = arith.cmpf olt, %92, %117 : vector<5x1024xf32>
    %119 = arith.andi %116, %118 : vector<5x1024xi1>
    %cst_44 = arith.constant 0.000000e+00 : f32
    %120 = vector.broadcast %cst_44 : f32 to vector<5x1024xf32>
    %121 = arith.select %119, %109, %120 : vector<5x1024xi1>, vector<5x1024xf32>
    %122 = arith.select %114, %103, %121 : vector<5x1024xi1>, vector<5x1024xf32>
    %cst_45 = arith.constant 0.000000e+00 : f32
    %123 = vector.broadcast %cst_45 : f32 to vector<5x1024xf32>
    %124 = arith.cmpf oeq, %91, %123 : vector<5x1024xf32>
    %125 = arith.addf %103, %103 : vector<5x1024xf32>
    %126 = arith.select %124, %125, %122 : vector<5x1024xi1>, vector<5x1024xf32>
    %c0_46 = arith.constant 0 : index
    %c0_47 = arith.constant 0 : index
    %127 = vector.load %arg7[%c0_46, %c0_47] : memref<48x5xf32, #tpu.memory_space<vmem>>, vector<48x5xf32>
    %cst_48 = arith.constant dense<0.000000e+00> : vector<48x1024xf32>
    %128 = tpu.matmul %127, %126, %cst_48 {dimension_numbers = #tpu.dot_dimension_numbers<[1], [0], [0], [1], [0, 0, 1, 1], [], []>, precision = #tpu.contract_precision<fp32>} : vector<48x5xf32>, vector<5x1024xf32>, vector<48x1024xf32> -> vector<48x1024xf32>
    %c0_49 = arith.constant 0 : index
    %c0_50 = arith.constant 0 : index
    %129 = vector.load %arg9[%c0_49, %c0_50] : memref<48x1024xf32, #tpu.memory_space<vmem>>, vector<48x1024xf32>
    tpu.vector_store %arg9[%c0_49, %c0_50], %128 {strides = array<i32>} : memref<48x1024xf32, #tpu.memory_space<vmem>>, vector<48x1024xf32>,
    %c0_51 = arith.constant 0 : index
    %c0_52 = arith.constant 0 : index
    %130 = vector.load %arg9[%c0_51, %c0_52] : memref<48x1024xf32, #tpu.memory_space<vmem>>, vector<16x1024xf32>
    %131 = vector.extract_strided_slice %86 {offsets = [0, 0], sizes = [1, 1024], strides = [1, 1]} : vector<3x1024xf32> to vector<1x1024xf32>
    %132 = vector.broadcast %131 : vector<1x1024xf32> to vector<16x1024xf32>
    %133 = arith.mulf %130, %132 : vector<16x1024xf32>
    %c16 = arith.constant 16 : index
    %c0_53 = arith.constant 0 : index
    %134 = vector.load %arg9[%c16, %c0_53] : memref<48x1024xf32, #tpu.memory_space<vmem>>, vector<16x1024xf32>
    %135 = vector.extract_strided_slice %86 {offsets = [1, 0], sizes = [1, 1024], strides = [1, 1]} : vector<3x1024xf32> to vector<1x1024xf32>
    %136 = vector.broadcast %135 : vector<1x1024xf32> to vector<16x1024xf32>
    %137 = arith.mulf %134, %136 : vector<16x1024xf32>
    %138 = arith.addf %133, %137 : vector<16x1024xf32>
    %c32 = arith.constant 32 : index
    %c0_54 = arith.constant 0 : index
    %139 = vector.load %arg9[%c32, %c0_54] : memref<48x1024xf32, #tpu.memory_space<vmem>>, vector<16x1024xf32>
    %140 = vector.extract_strided_slice %86 {offsets = [2, 0], sizes = [1, 1024], strides = [1, 1]} : vector<3x1024xf32> to vector<1x1024xf32>
    %141 = vector.broadcast %140 : vector<1x1024xf32> to vector<16x1024xf32>
    %142 = arith.mulf %139, %141 : vector<16x1024xf32>
    %143 = arith.addf %138, %142 : vector<16x1024xf32>
    %144 = vector.extract_strided_slice %143 {offsets = [0, 0], sizes = [3, 1024], strides = [1, 1]} : vector<16x1024xf32> to vector<3x1024xf32>
    %145 = vector.extract_strided_slice %46 {offsets = [0, 0], sizes = [1, 1024], strides = [1, 1]} : vector<4x1024xf32> to vector<1x1024xf32>
    %146 = vector.broadcast %145 : vector<1x1024xf32> to vector<3x1024xf32>
    %147 = arith.mulf %144, %146 : vector<3x1024xf32>
    %148 = vector.extract_strided_slice %143 {offsets = [3, 0], sizes = [3, 1024], strides = [1, 1]} : vector<16x1024xf32> to vector<3x1024xf32>
    %149 = vector.extract_strided_slice %46 {offsets = [1, 0], sizes = [1, 1024], strides = [1, 1]} : vector<4x1024xf32> to vector<1x1024xf32>
    %150 = vector.broadcast %149 : vector<1x1024xf32> to vector<3x1024xf32>
    %151 = arith.mulf %148, %150 : vector<3x1024xf32>
    %152 = arith.addf %147, %151 : vector<3x1024xf32>
    %153 = vector.extract_strided_slice %143 {offsets = [6, 0], sizes = [3, 1024], strides = [1, 1]} : vector<16x1024xf32> to vector<3x1024xf32>
    %154 = vector.extract_strided_slice %46 {offsets = [2, 0], sizes = [1, 1024], strides = [1, 1]} : vector<4x1024xf32> to vector<1x1024xf32>
    %155 = vector.broadcast %154 : vector<1x1024xf32> to vector<3x1024xf32>
    %156 = arith.mulf %153, %155 : vector<3x1024xf32>
    %157 = arith.addf %152, %156 : vector<3x1024xf32>
    %158 = vector.extract_strided_slice %143 {offsets = [9, 0], sizes = [3, 1024], strides = [1, 1]} : vector<16x1024xf32> to vector<3x1024xf32>
    %159 = vector.extract_strided_slice %46 {offsets = [3, 0], sizes = [1, 1024], strides = [1, 1]} : vector<4x1024xf32> to vector<1x1024xf32>
    %160 = vector.broadcast %159 : vector<1x1024xf32> to vector<3x1024xf32>
    %161 = arith.mulf %158, %160 : vector<3x1024xf32>
    %162 = arith.addf %157, %161 : vector<3x1024xf32>
    %c0_55 = arith.constant 0 : index
    %c0_56 = arith.constant 0 : index
    %163 = vector.load %arg8[%c0_55, %c0_56] : memref<3x1024xf32, #tpu.memory_space<vmem>>, vector<3x1024xf32>
    tpu.vector_store %arg8[%c0_55, %c0_56], %162 {strides = array<i32>} : memref<3x1024xf32, #tpu.memory_space<vmem>>, vector<3x1024xf32>,
    return
  }
  func.func @transform_0(%arg0: i32) -> (i32, i32) {
    %c0_i32 = arith.constant 0 : i32
    %c0_i32_0 = arith.constant 0 : i32
    return %c0_i32, %arg0 : i32, i32
  }
  func.func @transform_1(%arg0: i32) -> (i32, i32) {
    %c0_i32 = arith.constant 0 : i32
    %c0_i32_0 = arith.constant 0 : i32
    %c0_i32_1 = arith.constant 0 : i32
    return %c0_i32, %c0_i32_0 : i32, i32
  }
  func.func @transform_2(%arg0: i32) -> (i32, i32) {
    %c0_i32 = arith.constant 0 : i32
    %c0_i32_0 = arith.constant 0 : i32
    %c0_i32_1 = arith.constant 0 : i32
    return %c0_i32, %c0_i32_0 : i32, i32
  }
  func.func @transform_3(%arg0: i32) -> (i32, i32) {
    %c0_i32 = arith.constant 0 : i32
    %c0_i32_0 = arith.constant 0 : i32
    %c0_i32_1 = arith.constant 0 : i32
    return %c0_i32, %c0_i32_0 : i32, i32
  }
  func.func @transform_4(%arg0: i32) -> (i32, i32) {
    %c0_i32 = arith.constant 0 : i32
    %c0_i32_0 = arith.constant 0 : i32
    %c0_i32_1 = arith.constant 0 : i32
    return %c0_i32, %c0_i32_0 : i32, i32
  }
  func.func @transform_5(%arg0: i32) -> (i32, i32) {
    %c0_i32 = arith.constant 0 : i32
    %c0_i32_0 = arith.constant 0 : i32
    %c0_i32_1 = arith.constant 0 : i32
    return %c0_i32, %c0_i32_0 : i32, i32
  }
  func.func @transform_6(%arg0: i32) -> (i32, i32) {
    %c0_i32 = arith.constant 0 : i32
    %c0_i32_0 = arith.constant 0 : i32
    %c0_i32_1 = arith.constant 0 : i32
    return %c0_i32, %c0_i32_0 : i32, i32
  }
  func.func @transform_7(%arg0: i32) -> (i32, i32) {
    %c0_i32 = arith.constant 0 : i32
    %c0_i32_0 = arith.constant 0 : i32
    return %c0_i32, %arg0 : i32, i32
  }
}

</mosaic_0001>

<llo_original>
// kernel: tpu_custom_call.1
$region0: #{tpu_custom_call.1}
  #allocation0 [shape = 'u32[]', space=smem, size = 0x4, offset = 0x4, fixed_abs, tag = 'smem constant byte address 0x4 - core index']
  #allocation1 [shape = 'u32[144,128]{1,0:T(1,128)}', space=vmem, size = 0x12000, scoped, tag = 'internal scratch']
  #allocation2 [shape = 'f32[48,1024]{1,0:T(8,128)}', space=vmem, size = 0x30000, scoped, tag = 'scratch operand']
  %s0 = inlined_call_operand.vmem [shape: f32[3,2048], index: 0, kind: input, shape index: {}]
  %s1 = inlined_call_operand.vmem [shape: f32[3,1], index: 1, kind: input, shape index: {}]
  %s2 = inlined_call_operand.vmem [shape: f32[3,1], index: 2, kind: input, shape index: {}]
  %s3 = inlined_call_operand.vmem [shape: f32[4,1], index: 3, kind: input, shape index: {}]
  %s4 = inlined_call_operand.vmem [shape: f32[3,1], index: 4, kind: input, shape index: {}]
  %s5 = inlined_call_operand.vmem [shape: f32[5,1], index: 5, kind: input, shape index: {}]
  %s6 = inlined_call_operand.vmem [shape: f32[48,5], index: 6, kind: input, shape index: {}]
  %s7 = inlined_call_operand.hbm [shape: f32[3,2048], index: 7, kind: output, shape index: {}]
  %s8 = sld [smem:[#allocation0]]
  $region61: #{tpu_custom_call.1} parent=0
    _
  %s10 = ssub.s32 1, %s8
  %s11 = scalar_select 0, %s10, %s8
  $region1: #{tpu_custom_call.1} parent=0
    #allocation3 [shape = 'u8[32768]{0}', space=vmem, size = 0x8000, scoped, tag = 'output window, operand 0']
    #allocation4 [shape = 's32[2]{0}', space=sflag, size = 0x8, scoped, tag = 'scoped memory for tpu_custom_call.1']
    %12 = vsyncpa [#allocation4], 0
    %s13 = scalar_lea.sflag [#allocation4], 1
    %14 = vsyncpa %s13, 0
    loop: start=0, step=1, limit=4
    $region2: #{tpu_custom_call.1} parent=1 // loop_pre_header
      _
    $region3: #{tpu_custom_call.1} parent=1 // loop_header
      %s16 = sphi 0, %s20
      %p17 = scmp.ge.s32.totalorder %s16, 4
      %s26 = sphi 0, %s28
      %s29 = sphi 0, %s26
      %s30 = sphi 0, %s29
      %s46 = sphi 0, %s30
      %s50 = sphi 0, %s50
      %s52 = sphi 0, %s50
      %s53 = sphi 0, %s52
      %s67 = sphi 0, %s53
      %s71 = sphi 0, %s71
      %s73 = sphi 0, %s71
      %s74 = sphi 0, %s73
      %s88 = sphi 0, %s74
      %s92 = sphi 0, %s92
      %s94 = sphi 0, %s92
      %s95 = sphi 0, %s94
      %s109 = sphi 0, %s95
      %s113 = sphi 0, %s113
      %s115 = sphi 0, %s113
      %s116 = sphi 0, %s115
      %s130 = sphi 0, %s116
      %s134 = sphi 0, %s134
      %s136 = sphi 0, %s134
      %s137 = sphi 0, %s136
      %s151 = sphi 0, %s137
      %s155 = sphi 0, %s155
      %s157 = sphi 0, %s155
      %s158 = sphi 0, %s157
      %s172 = sphi 0, %s158
      %s178 = sphi 0, %s180
      %s181 = sphi 0, %s178
      %s182 = sphi 0, %s181
      %s198 = sphi 0, %s182
    $region4: #{tpu_custom_call.1} parent=1 // loop_header_branch
      %19 = sbr.rel (%p17) target = $region8
    $region5: #{tpu_custom_call.1} parent=1 // loop_body
      %s21 = ssub.s32 %s16, 1
      %s22 = ssub.s32 %s16, 2
      %s23 = sadd.s32 %s16, 1
      %s24 = ssub.s32 %s16, %s23
      %p25 = scmp.eq.s32.totalorder %s24, 0
      %s27 = sadd.s32 %s26, 1
      %s28 = scalar_select %p25, %s26, %s27
      %p31 = pneg %p25
      %p32 = scmp.eq.s32.totalorder %s16, 1
      %p33 = por %p31, %p32
      %p34 = scmp.ne.s32.totalorder %s26, %s29
      %p35 = scmp.eq.s32.totalorder %s16, 0
      %p36 = por %p34, %p35
      %p37 = scmp.ne.s32.totalorder %s26, %s29
      %p38 = scmp.eq.s32.totalorder %s21, 1
      %p39 = por %p37, %p38
      %p40 = scmp.ne.s32.totalorder %s29, %s30
      %p41 = scmp.eq.s32.totalorder %s21, 0
      %p42 = por %p40, %p41
      %p43 = scmp.ne.s32.totalorder %s29, %s30
      %p44 = scmp.eq.s32.totalorder %s22, 1
      %p45 = por %p43, %p44
      %p47 = scmp.ne.s32.totalorder %s30, %s46
      %p48 = scmp.eq.s32.totalorder %s22, 0
      %p49 = por %p47, %p48
      %s51 = sadd.s32 %s50, 1
      %p54 = scmp.eq.s32.totalorder %s16, 1
      %p55 = scmp.ne.s32.totalorder %s50, %s52
      %p56 = scmp.eq.s32.totalorder %s16, 0
      %p57 = por %p55, %p56
      %p58 = scmp.ne.s32.totalorder %s50, %s52
      %p59 = scmp.eq.s32.totalorder %s21, 1
      %p60 = por %p58, %p59
      %p61 = scmp.ne.s32.totalorder %s52, %s53
      %p62 = scmp.eq.s32.totalorder %s21, 0
      %p63 = por %p61, %p62
      %p64 = scmp.ne.s32.totalorder %s52, %s53
      %p65 = scmp.eq.s32.totalorder %s22, 1
      %p66 = por %p64, %p65
      %p68 = scmp.ne.s32.totalorder %s53, %s67
      %p69 = scmp.eq.s32.totalorder %s22, 0
      %p70 = por %p68, %p69
      %s72 = sadd.s32 %s71, 1
      %p75 = scmp.eq.s32.totalorder %s16, 1
      %p76 = scmp.ne.s32.totalorder %s71, %s73
      %p77 = scmp.eq.s32.totalorder %s16, 0
      %p78 = por %p76, %p77
      %p79 = scmp.ne.s32.totalorder %s71, %s73
      %p80 = scmp.eq.s32.totalorder %s21, 1
      %p81 = por %p79, %p80
      %p82 = scmp.ne.s32.totalorder %s73, %s74
      %p83 = scmp.eq.s32.totalorder %s21, 0
      %p84 = por %p82, %p83
      %p85 = scmp.ne.s32.totalorder %s73, %s74
      %p86 = scmp.eq.s32.totalorder %s22, 1
      %p87 = por %p85, %p86
      %p89 = scmp.ne.s32.totalorder %s74, %s88
      %p90 = scmp.eq.s32.totalorder %s22, 0
      %p91 = por %p89, %p90
      %s93 = sadd.s32 %s92, 1
      %p96 = scmp.eq.s32.totalorder %s16, 1
      %p97 = scmp.ne.s32.totalorder %s92, %s94
      %p98 = scmp.eq.s32.totalorder %s16, 0
      %p99 = por %p97, %p98
      %p100 = scmp.ne.s32.totalorder %s92, %s94
      %p101 = scmp.eq.s32.totalorder %s21, 1
      %p102 = por %p100, %p101
      %p103 = scmp.ne.s32.totalorder %s94, %s95
      %p104 = scmp.eq.s32.totalorder %s21, 0
      %p105 = por %p103, %p104
      %p106 = scmp.ne.s32.totalorder %s94, %s95
      %p107 = scmp.eq.s32.totalorder %s22, 1
      %p108 = por %p106, %p107
      %p110 = scmp.ne.s32.totalorder %s95, %s109
      %p111 = scmp.eq.s32.totalorder %s22, 0
      %p112 = por %p110, %p111
      %s114 = sadd.s32 %s113, 1
      %p117 = scmp.eq.s32.totalorder %s16, 1
      %p118 = scmp.ne.s32.totalorder %s113, %s115
      %p119 = scmp.eq.s32.totalorder %s16, 0
      %p120 = por %p118, %p119
      %p121 = scmp.ne.s32.totalorder %s113, %s115
      %p122 = scmp.eq.s32.totalorder %s21, 1
      %p123 = por %p121, %p122
      %p124 = scmp.ne.s32.totalorder %s115, %s116
      %p125 = scmp.eq.s32.totalorder %s21, 0
      %p126 = por %p124, %p125
      %p127 = scmp.ne.s32.totalorder %s115, %s116
      %p128 = scmp.eq.s32.totalorder %s22, 1
      %p129 = por %p127, %p128
      %p131 = scmp.ne.s32.totalorder %s116, %s130
      %p132 = scmp.eq.s32.totalorder %s22, 0
      %p133 = por %p131, %p132
      %s135 = sadd.s32 %s134, 1
      %p138 = scmp.eq.s32.totalorder %s16, 1
      %p139 = scmp.ne.s32.totalorder %s134, %s136
      %p140 = scmp.eq.s32.totalorder %s16, 0
      %p141 = por %p139, %p140
      %p142 = scmp.ne.s32.totalorder %s134, %s136
      %p143 = scmp.eq.s32.totalorder %s21, 1
      %p144 = por %p142, %p143
      %p145 = scmp.ne.s32.totalorder %s136, %s137
      %p146 = scmp.eq.s32.totalorder %s21, 0
      %p147 = por %p145, %p146
      %p148 = scmp.ne.s32.totalorder %s136, %s137
      %p149 = scmp.eq.s32.totalorder %s22, 1
      %p150 = por %p148, %p149
      %p152 = scmp.ne.s32.totalorder %s137, %s151
      %p153 = scmp.eq.s32.totalorder %s22, 0
      %p154 = por %p152, %p153
      %s156 = sadd.s32 %s155, 1
      %p159 = scmp.eq.s32.totalorder %s16, 1
      %p160 = scmp.ne.s32.totalorder %s155, %s157
      %p161 = scmp.eq.s32.totalorder %s16, 0
      %p162 = por %p160, %p161
      %p163 = scmp.ne.s32.totalorder %s155, %s157
      %p164 = scmp.eq.s32.totalorder %s21, 1
      %p165 = por %p163, %p164
      %p166 = scmp.ne.s32.totalorder %s157, %s158
      %p167 = scmp.eq.s32.totalorder %s21, 0
      %p168 = por %p166, %p167
      %p169 = scmp.ne.s32.totalorder %s157, %s158
      %p170 = scmp.eq.s32.totalorder %s22, 1
      %p171 = por %p169, %p170
      %p173 = scmp.ne.s32.totalorder %s158, %s172
      %p174 = scmp.eq.s32.totalorder %s22, 0
      %p175 = por %p173, %p174
      %s176 = ssub.s32 %s16, %s23
      %p177 = scmp.eq.s32.totalorder %s176, 0
      %s179 = sadd.s32 %s178, 1
      %s180 = scalar_select %p177, %s178, %s179
      %p183 = pneg %p177
      %p184 = scmp.eq.s32.totalorder %s16, 1
      %p185 = por %p183, %p184
      %p186 = scmp.ne.s32.totalorder %s178, %s181
      %p187 = scmp.eq.s32.totalorder %s16, 0
      %p188 = por %p186, %p187
      %p189 = scmp.ne.s32.totalorder %s178, %s181
      %p190 = scmp.eq.s32.totalorder %s21, 1
      %p191 = por %p189, %p190
      %p192 = scmp.ne.s32.totalorder %s181, %s182
      %p193 = scmp.eq.s32.totalorder %s21, 0
      %p194 = por %p192, %p193
      %p195 = scmp.ne.s32.totalorder %s181, %s182
      %p196 = scmp.eq.s32.totalorder %s22, 1
      %p197 = por %p195, %p196
      %p199 = scmp.ne.s32.totalorder %s182, %s198
      %p200 = scmp.eq.s32.totalorder %s22, 0
      %p201 = por %p199, %p200
      %p202 = scmp.le.s32.totalorder 1, %s16
      %p203 = scmp.lt.s32.totalorder %s16, 3
      %p204 = pnand %p202, %p203
      %p205 = pneg %p204
      // Predicated region
      $region9: #{tpu_custom_call.1} parent=5 // pred_check
        _
      $region10: #{tpu_custom_call.1} parent=5 // pred_check_branch
        %207 = sbr.rel (%p204) target = $region12
      $region11: #{tpu_custom_call.1} parent=5 // pred_region
        %s208 = ssub.s32 %s16, 1
        // Predicated region
        $region13: #{tpu_custom_call.1} parent=11 // pred_check
          %p209 = pneg %p63
        $region14: #{tpu_custom_call.1} parent=11 // pred_check_branch
          %211 = sbr.rel (%p209) target = $region16
        $region15: #{tpu_custom_call.1} parent=11 // pred_region
          _
        $region16: #{tpu_custom_call.1} parent=11 // pred_fallthru
          _
        // Predicated region
        $region17: #{tpu_custom_call.1} parent=11 // pred_check
          %p212 = pneg %p84
        $region18: #{tpu_custom_call.1} parent=11 // pred_check_branch
          %214 = sbr.rel (%p212) target = $region20
        $region19: #{tpu_custom_call.1} parent=11 // pred_region
          _
        $region20: #{tpu_custom_call.1} parent=11 // pred_fallthru
          _
        // Predicated region
        $region21: #{tpu_custom_call.1} parent=11 // pred_check
          %p215 = pneg %p105
        $region22: #{tpu_custom_call.1} parent=11 // pred_check_branch
          %217 = sbr.rel (%p215) target = $region24
        $region23: #{tpu_custom_call.1} parent=11 // pred_region
          _
        $region24: #{tpu_custom_call.1} parent=11 // pred_fallthru
          _
        // Predicated region
        $region25: #{tpu_custom_call.1} parent=11 // pred_check
          %p218 = pneg %p126
        $region26: #{tpu_custom_call.1} parent=11 // pred_check_branch
          %220 = sbr.rel (%p218) target = $region28
        $region27: #{tpu_custom_call.1} parent=11 // pred_region
          _
        $region28: #{tpu_custom_call.1} parent=11 // pred_fallthru
          _
        // Predicated region
        $region29: #{tpu_custom_call.1} parent=11 // pred_check
          %p221 = pneg %p147
        $region30: #{tpu_custom_call.1} parent=11 // pred_check_branch
          %223 = sbr.rel (%p221) target = $region32
        $region31: #{tpu_custom_call.1} parent=11 // pred_region
          _
        $region32: #{tpu_custom_call.1} parent=11 // pred_fallthru
          _
        // Predicated region
        $region33: #{tpu_custom_call.1} parent=11 // pred_check
          %p224 = pneg %p168
        $region34: #{tpu_custom_call.1} parent=11 // pred_check_branch
          %226 = sbr.rel (%p224) target = $region36
        $region35: #{tpu_custom_call.1} parent=11 // pred_region
          _
        $region36: #{tpu_custom_call.1} parent=11 // pred_fallthru
          _
      $region12: #{tpu_custom_call.1} parent=5 // pred_fallthru
        _
      %p227 = scmp.lt.s32.totalorder %s16, 2
      // Predicated region
      $region37: #{tpu_custom_call.1} parent=5 // pred_check
        %p228 = pneg %p227
      $region38: #{tpu_custom_call.1} parent=5 // pred_check_branch
        %230 = sbr.rel (%p228) target = $region40
      $region39: #{tpu_custom_call.1} parent=5 // pred_region
        // Predicated region
        $region41: #{tpu_custom_call.1} parent=39 // pred_check
          %p231 = pneg %p36
        $region42: #{tpu_custom_call.1} parent=39 // pred_check_branch
          %233 = sbr.rel (%p231) target = $region44
        $region43: #{tpu_custom_call.1} parent=39 // pred_region
          %s234 = smul.u32 8, %s16
          %p235 = scmp.lt.s32.totalorder %s234, 15
          %s236 = scalar_select %p235, %s234, 15
          %s237 = smul.addr %s236, 4
          %s238 = scalar_lea.vmem %s0, %s237
          %s239 = smul.u32 8, %s16
        $region44: #{tpu_custom_call.1} parent=39 // pred_fallthru
          _
      $region40: #{tpu_custom_call.1} parent=5 // pred_fallthru
        _
      %p240 = scmp.le.s32.totalorder 1, %s16
      %p241 = scmp.lt.s32.totalorder %s16, 3
      %p242 = pnand %p240, %p241
      %p243 = pneg %p242
      // Predicated region
      $region45: #{tpu_custom_call.1} parent=5 // pred_check
        _
      $region46: #{tpu_custom_call.1} parent=5 // pred_check_branch
        %245 = sbr.rel (%p242) target = $region48
      $region47: #{tpu_custom_call.1} parent=5 // pred_region
        %s246 = ssub.s32 %s16, 1
        %s247 = smul.u32 8, %s21
        %p248 = scmp.lt.s32.totalorder %s247, 15
        %s249 = scalar_select %p248, %s247, 15
        %s250 = smul.addr %s249, 4
        %s251 = scalar_lea.vmem %s0, %s250
        %p252 = pneg %p42
        %p253 = pneg %p39
        %p254 = pneg %p63
        %p255 = pneg %p60
        %p256 = pneg %p84
        %p257 = pneg %p81
        %p258 = pneg %p105
        %p259 = pneg %p102
        %p260 = pneg %p126
        %p261 = pneg %p123
        %p262 = pneg %p147
        %p263 = pneg %p144
        %p264 = pneg %p168
        %p265 = pneg %p165
        %p266 = pneg %p194
        %p267 = pneg %p191
        %s268 = sand.u32 %s181, 1
        %s269 = scalar_lea.sflag [#allocation4], %s268
        %s270 = sand.u32 %s181, 1
        %s271 = smul.addr %s270, 32
        %s272 = scalar_lea.vmem [#allocation3], %s271
        %s273 = smul.u32 8, %s21
        %p274 = scmp.lt.s32.totalorder %s273, 15
        %s275 = scalar_select %p274, %s273, 15
        %s276 = smul.addr %s275, 4
        %s277 = scalar_lea.vmem %s0, %s276
        %s278 = smul.u32 8, %s21
        %s279 = smul.u32 8, %s21
        %v280 = vld [vmem:[%s277] sm:$0x77]
        %v281 = vld [vmem:[%s277 + $0x8] sm:$0x77]
        %v282 = vld [vmem:[%s277 + $0x10] sm:$0x77]
        %v283 = vld [vmem:[%s277 + $0x18] sm:$0x77]
        %v284 = vld [vmem:[%s1] sm:$0x7]
        %286 = vset.pattern.permute.xlu0 0
        %287 = vperm.xlu0 %286, %v284
        %v288 = vpop.permute.xlu0 %287
        %v290 = vunpack.c.l.s4 839922192
        %v291 = vunpack.c.0.s8 %v290
        %v292 = vlaneseq
        %v293 = vshrl.u32 %v292, 7
        %v294 = vsub.s32 %v291, %v293
        %v295 = vrot.slane %v288, %v294
        %v297 = vsub.f32 %v280, %v295
        %v298 = vsub.f32 %v281, %v295
        %v299 = vsub.f32 %v282, %v295
        %v300 = vsub.f32 %v283, %v295
        %v301 = vld [vmem:[%s2] sm:$0x7]
        %303 = vset.pattern.permute.xlu0 0
        %304 = vperm.xlu0 %303, %v301
        %v305 = vpop.permute.xlu0 %304
        %v307 = vunpack.c.l.s4 839922192
        %v308 = vunpack.c.0.s8 %v307
        %v309 = vlaneseq
        %v310 = vshrl.u32 %v309, 7
        %v311 = vsub.s32 %v308, %v310
        %v312 = vrot.slane %v305, %v311
        %v314 = vmul.f32 %v297, %v312
        %v315 = vmul.f32 %v298, %v312
        %v316 = vmul.f32 %v299, %v312
        %v317 = vmul.f32 %v300, %v312
        %v318 = vld [vmem:[%s3] sm:$0xf]
        %v323 = vlaneseq
        %v324 = vshrl.u32 %v323, 7
        %v325 = vsub.s32 0, %v324
        %v326 = vrot.slane %v314, %v325
        %v327 = vlaneseq
        %v328 = vshrl.u32 %v327, 7
        %v329 = vsub.s32 4, %v328
        %v330 = vrot.slane %v314, %v329
        %v331 = vlaneseq
        %v332 = vshrl.u32 %v331, 7
        %v333 = vsub.s32 0, %v332
        %v334 = vrot.slane %v315, %v333
        %v335 = vlaneseq
        %v336 = vshrl.u32 %v335, 7
        %v337 = vsub.s32 4, %v336
        %v338 = vrot.slane %v315, %v337
        %v339 = vlaneseq
        %v340 = vshrl.u32 %v339, 7
        %v341 = vsub.s32 0, %v340
        %v342 = vrot.slane %v316, %v341
        %v343 = vlaneseq
        %v344 = vshrl.u32 %v343, 7
        %v345 = vsub.s32 4, %v344
        %v346 = vrot.slane %v316, %v345
        %v347 = vlaneseq
        %v348 = vshrl.u32 %v347, 7
        %v349 = vsub.s32 0, %v348
        %v350 = vrot.slane %v317, %v349
        %v351 = vlaneseq
        %v352 = vshrl.u32 %v351, 7
        %v353 = vsub.s32 4, %v352
        %v354 = vrot.slane %v317, %v353
        %v363 = vlaneseq
        %v364 = vshrl.u32 %v363, 7
        %v365 = vsub.s32 0, %v364
        %v366 = vrot.slane %v326, %v365
        %v367 = vlaneseq
        %v368 = vshrl.u32 %v367, 7
        %v369 = vsub.s32 0, %v368
        %v370 = vrot.slane %v330, %v369
        %v371 = vlaneseq
        %v372 = vshrl.u32 %v371, 7
        %v373 = vsub.s32 0, %v372
        %v374 = vrot.slane %v334, %v373
        %v375 = vlaneseq
        %v376 = vshrl.u32 %v375, 7
        %v377 = vsub.s32 0, %v376
        %v378 = vrot.slane %v338, %v377
        %v379 = vlaneseq
        %v380 = vshrl.u32 %v379, 7
        %v381 = vsub.s32 0, %v380
        %v382 = vrot.slane %v342, %v381
        %v383 = vlaneseq
        %v384 = vshrl.u32 %v383, 7
        %v385 = vsub.s32 0, %v384
        %v386 = vrot.slane %v346, %v385
        %v387 = vlaneseq
        %v388 = vshrl.u32 %v387, 7
        %v389 = vsub.s32 0, %v388
        %v390 = vrot.slane %v350, %v389
        %v391 = vlaneseq
        %v392 = vshrl.u32 %v391, 7
        %v393 = vsub.s32 0, %v392
        %v394 = vrot.slane %v354, %v393
        %396 = vset.pattern.permute.xlu0 0
        %397 = vperm.xlu0 %396, %v318
        %v398 = vpop.permute.xlu0 %397
        %v400 = vsub.f32 %v366, %v398
        %v401 = vsub.f32 %v370, %v398
        %v402 = vsub.f32 %v374, %v398
        %v403 = vsub.f32 %v378, %v398
        %v404 = vsub.f32 %v382, %v398
        %v405 = vsub.f32 %v386, %v398
        %v406 = vsub.f32 %v390, %v398
        %v407 = vsub.f32 %v394, %v398
        %v408 = vand.u32 2147483647, %v400
        %v409 = vand.u32 2147483647, %v401
        %v410 = vand.u32 2147483647, %v402
        %v411 = vand.u32 2147483647, %v403
        %v412 = vand.u32 2147483647, %v404
        %v413 = vand.u32 2147483647, %v405
        %v414 = vand.u32 2147483647, %v406
        %v415 = vand.u32 2147483647, %v407
        %v416 = vmul.f32 %v408, %v408
        %v417 = vmul.f32 %v409, %v409
        %v418 = vmul.f32 %v410, %v410
        %v419 = vmul.f32 %v411, %v411
        %v420 = vmul.f32 %v412, %v412
        %v421 = vmul.f32 %v413, %v413
        %v422 = vmul.f32 %v414, %v414
        %v423 = vmul.f32 %v415, %v415
        %v424 = vmul.f32 %v416, %v408
        %v425 = vmul.f32 %v417, %v409
        %v426 = vmul.f32 %v418, %v410
        %v427 = vmul.f32 %v419, %v411
        %v428 = vmul.f32 %v420, %v412
        %v429 = vmul.f32 %v421, %v413
        %v430 = vmul.f32 %v422, %v414
        %v431 = vmul.f32 %v423, %v415
        %v432 = vmul.f32 %v424, 3.0
        %v433 = vmul.f32 %v425, 3.0
        %v434 = vmul.f32 %v426, 3.0
        %v435 = vmul.f32 %v427, 3.0
        %v436 = vmul.f32 %v428, 3.0
        %v437 = vmul.f32 %v429, 3.0
        %v438 = vmul.f32 %v430, 3.0
        %v439 = vmul.f32 %v431, 3.0
        %v440 = vmul.f32 %v416, 6.0
        %v441 = vmul.f32 %v417, 6.0
        %v442 = vmul.f32 %v418, 6.0
        %v443 = vmul.f32 %v419, 6.0
        %v444 = vmul.f32 %v420, 6.0
        %v445 = vmul.f32 %v421, 6.0
        %v446 = vmul.f32 %v422, 6.0
        %v447 = vmul.f32 %v423, 6.0
        %v448 = vsub.f32 %v432, %v440
        %v449 = vsub.f32 %v433, %v441
        %v450 = vsub.f32 %v434, %v442
        %v451 = vsub.f32 %v435, %v443
        %v452 = vsub.f32 %v436, %v444
        %v453 = vsub.f32 %v437, %v445
        %v454 = vsub.f32 %v438, %v446
        %v455 = vsub.f32 %v439, %v447
        %v456 = vadd.f32 %v448, 4.0
        %v457 = vadd.f32 %v449, 4.0
        %v458 = vadd.f32 %v450, 4.0
        %v459 = vadd.f32 %v451, 4.0
        %v460 = vadd.f32 %v452, 4.0
        %v461 = vadd.f32 %v453, 4.0
        %v462 = vadd.f32 %v454, 4.0
        %v463 = vadd.f32 %v455, 4.0
        %v464 = vmul.f32 %v456, 0.16666667
        %v465 = vmul.f32 %v457, 0.16666667
        %v466 = vmul.f32 %v458, 0.16666667
        %v467 = vmul.f32 %v459, 0.16666667
        %v468 = vmul.f32 %v460, 0.16666667
        %v469 = vmul.f32 %v461, 0.16666667
        %v470 = vmul.f32 %v462, 0.16666667
        %v471 = vmul.f32 %v463, 0.16666667
        %v472 = vsub.f32 2.0, %v408
        %v473 = vsub.f32 2.0, %v409
        %v474 = vsub.f32 2.0, %v410
        %v475 = vsub.f32 2.0, %v411
        %v476 = vsub.f32 2.0, %v412
        %v477 = vsub.f32 2.0, %v413
        %v478 = vsub.f32 2.0, %v414
        %v479 = vsub.f32 2.0, %v415
        %v480 = vmul.f32 %v472, %v472
        %v481 = vmul.f32 %v473, %v473
        %v482 = vmul.f32 %v474, %v474
        %v483 = vmul.f32 %v475, %v475
        %v484 = vmul.f32 %v476, %v476
        %v485 = vmul.f32 %v477, %v477
        %v486 = vmul.f32 %v478, %v478
        %v487 = vmul.f32 %v479, %v479
        %v488 = vmul.f32 %v480, %v472
        %v489 = vmul.f32 %v481, %v473
        %v490 = vmul.f32 %v482, %v474
        %v491 = vmul.f32 %v483, %v475
        %v492 = vmul.f32 %v484, %v476
        %v493 = vmul.f32 %v485, %v477
        %v494 = vmul.f32 %v486, %v478
        %v495 = vmul.f32 %v487, %v479
        %v496 = vmul.f32 %v488, 0.16666667
        %v497 = vmul.f32 %v489, 0.16666667
        %v498 = vmul.f32 %v490, 0.16666667
        %v499 = vmul.f32 %v491, 0.16666667
        %v500 = vmul.f32 %v492, 0.16666667
        %v501 = vmul.f32 %v493, 0.16666667
        %v502 = vmul.f32 %v494, 0.16666667
        %v503 = vmul.f32 %v495, 0.16666667
        %vm504 = vcmp.gt.f32.partialorder %v400, -1.0
        %vm505 = vcmp.gt.f32.partialorder %v401, -1.0
        %vm506 = vcmp.gt.f32.partialorder %v402, -1.0
        %vm507 = vcmp.gt.f32.partialorder %v403, -1.0
        %vm508 = vcmp.gt.f32.partialorder %v404, -1.0
        %vm509 = vcmp.gt.f32.partialorder %v405, -1.0
        %vm510 = vcmp.gt.f32.partialorder %v406, -1.0
        %vm511 = vcmp.gt.f32.partialorder %v407, -1.0
        %vm512 = vcmp.le.f32.partialorder %v400, 1.0
        %vm513 = vcmp.le.f32.partialorder %v401, 1.0
        %vm514 = vcmp.le.f32.partialorder %v402, 1.0
        %vm515 = vcmp.le.f32.partialorder %v403, 1.0
        %vm516 = vcmp.le.f32.partialorder %v404, 1.0
        %vm517 = vcmp.le.f32.partialorder %v405, 1.0
        %vm518 = vcmp.le.f32.partialorder %v406, 1.0
        %vm519 = vcmp.le.f32.partialorder %v407, 1.0
        %vm520 = vmand %vm504, %vm512
        %vm521 = vmand %vm505, %vm513
        %vm522 = vmand %vm506, %vm514
        %vm523 = vmand %vm507, %vm515
        %vm524 = vmand %vm508, %vm516
        %vm525 = vmand %vm509, %vm517
        %vm526 = vmand %vm510, %vm518
        %vm527 = vmand %vm511, %vm519
        %vm528 = vcmp.gt.f32.partialorder %v408, 1.0
        %vm529 = vcmp.gt.f32.partialorder %v409, 1.0
        %vm530 = vcmp.gt.f32.partialorder %v410, 1.0
        %vm531 = vcmp.gt.f32.partialorder %v411, 1.0
        %vm532 = vcmp.gt.f32.partialorder %v412, 1.0
        %vm533 = vcmp.gt.f32.partialorder %v413, 1.0
        %vm534 = vcmp.gt.f32.partialorder %v414, 1.0
        %vm535 = vcmp.gt.f32.partialorder %v415, 1.0
        %vm536 = vcmp.lt.f32.partialorder %v408, 2.0
        %vm537 = vcmp.lt.f32.partialorder %v409, 2.0
        %vm538 = vcmp.lt.f32.partialorder %v410, 2.0
        %vm539 = vcmp.lt.f32.partialorder %v411, 2.0
        %vm540 = vcmp.lt.f32.partialorder %v412, 2.0
        %vm541 = vcmp.lt.f32.partialorder %v413, 2.0
        %vm542 = vcmp.lt.f32.partialorder %v414, 2.0
        %vm543 = vcmp.lt.f32.partialorder %v415, 2.0
        %vm544 = vmand %vm528, %vm536
        %vm545 = vmand %vm529, %vm537
        %vm546 = vmand %vm530, %vm538
        %vm547 = vmand %vm531, %vm539
        %vm548 = vmand %vm532, %vm540
        %vm549 = vmand %vm533, %vm541
        %vm550 = vmand %vm534, %vm542
        %vm551 = vmand %vm535, %vm543
        %v552 = vsel %vm544, %v496, 0.0
        %v553 = vsel %vm545, %v497, 0.0
        %v554 = vsel %vm546, %v498, 0.0
        %v555 = vsel %vm547, %v499, 0.0
        %v556 = vsel %vm548, %v500, 0.0
        %v557 = vsel %vm549, %v501, 0.0
        %v558 = vsel %vm550, %v502, 0.0
        %v559 = vsel %vm551, %v503, 0.0
        %v560 = vsel %vm520, %v464, %v552
        %v561 = vsel %vm521, %v465, %v553
        %v562 = vsel %vm522, %v466, %v554
        %v563 = vsel %vm523, %v467, %v555
        %v564 = vsel %vm524, %v468, %v556
        %v565 = vsel %vm525, %v469, %v557
        %v566 = vsel %vm526, %v470, %v558
        %v567 = vsel %vm527, %v471, %v559
        %vm568 = vcmp.eq.f32.partialorder %v400, 0.0
        %vm569 = vcmp.eq.f32.partialorder %v401, 0.0
        %vm570 = vcmp.eq.f32.partialorder %v402, 0.0
        %vm571 = vcmp.eq.f32.partialorder %v403, 0.0
        %vm572 = vcmp.eq.f32.partialorder %v404, 0.0
        %vm573 = vcmp.eq.f32.partialorder %v405, 0.0
        %vm574 = vcmp.eq.f32.partialorder %v406, 0.0
        %vm575 = vcmp.eq.f32.partialorder %v407, 0.0
        %v576 = vadd.f32 %v464, %v464
        %v577 = vadd.f32 %v465, %v465
        %v578 = vadd.f32 %v466, %v466
        %v579 = vadd.f32 %v467, %v467
        %v580 = vadd.f32 %v468, %v468
        %v581 = vadd.f32 %v469, %v469
        %v582 = vadd.f32 %v470, %v470
        %v583 = vadd.f32 %v471, %v471
        %v584 = vsel %vm568, %v576, %v560
        %v585 = vsel %vm569, %v577, %v561
        %v586 = vsel %vm570, %v578, %v562
        %v587 = vsel %vm571, %v579, %v563
        %v588 = vsel %vm572, %v580, %v564
        %v589 = vsel %vm573, %v581, %v565
        %v590 = vsel %vm574, %v582, %v566
        %v591 = vsel %vm575, %v583, %v567
        %v592 = vld [vmem:[%s4] sm:$0x7]
        %v593 = vlaneseq
        %v594 = vshrl.u32 %v593, 7
        %v595 = vsub.s32 1, %v594
        %v596 = vrot.slane %v314, %v595
        %v597 = vlaneseq
        %v598 = vshrl.u32 %v597, 7
        %v599 = vsub.s32 5, %v598
        %v600 = vrot.slane %v314, %v599
        %v601 = vlaneseq
        %v602 = vshrl.u32 %v601, 7
        %v603 = vsub.s32 1, %v602
        %v604 = vrot.slane %v315, %v603
        %v605 = vlaneseq
        %v606 = vshrl.u32 %v605, 7
        %v607 = vsub.s32 5, %v606
        %v608 = vrot.slane %v315, %v607
        %v609 = vlaneseq
        %v610 = vshrl.u32 %v609, 7
        %v611 = vsub.s32 1, %v610
        %v612 = vrot.slane %v316, %v611
        %v613 = vlaneseq
        %v614 = vshrl.u32 %v613, 7
        %v615 = vsub.s32 5, %v614
        %v616 = vrot.slane %v316, %v615
        %v617 = vlaneseq
        %v618 = vshrl.u32 %v617, 7
        %v619 = vsub.s32 1, %v618
        %v620 = vrot.slane %v317, %v619
        %v621 = vlaneseq
        %v622 = vshrl.u32 %v621, 7
        %v623 = vsub.s32 5, %v622
        %v624 = vrot.slane %v317, %v623
        %v633 = vlaneseq
        %v634 = vshrl.u32 %v633, 7
        %v635 = vsub.s32 1, %v634
        %v636 = vrot.slane %v596, %v635
        %v637 = vlaneseq
        %v638 = vshrl.u32 %v637, 7
        %v639 = vsub.s32 1, %v638
        %v640 = vrot.slane %v600, %v639
        %v641 = vlaneseq
        %v642 = vshrl.u32 %v641, 7
        %v643 = vsub.s32 1, %v642
        %v644 = vrot.slane %v604, %v643
        %v645 = vlaneseq
        %v646 = vshrl.u32 %v645, 7
        %v647 = vsub.s32 1, %v646
        %v648 = vrot.slane %v608, %v647
        %v649 = vlaneseq
        %v650 = vshrl.u32 %v649, 7
        %v651 = vsub.s32 1, %v650
        %v652 = vrot.slane %v612, %v651
        %v653 = vlaneseq
        %v654 = vshrl.u32 %v653, 7
        %v655 = vsub.s32 1, %v654
        %v656 = vrot.slane %v616, %v655
        %v657 = vlaneseq
        %v658 = vshrl.u32 %v657, 7
        %v659 = vsub.s32 1, %v658
        %v660 = vrot.slane %v620, %v659
        %v661 = vlaneseq
        %v662 = vshrl.u32 %v661, 7
        %v663 = vsub.s32 1, %v662
        %v664 = vrot.slane %v624, %v663
        %666 = vset.pattern.permute.xlu0 0
        %667 = vperm.xlu0 %666, %v592
        %v668 = vpop.permute.xlu0 %667
        %v670 = vsub.f32 %v636, %v668
        %v671 = vsub.f32 %v640, %v668
        %v672 = vsub.f32 %v644, %v668
        %v673 = vsub.f32 %v648, %v668
        %v674 = vsub.f32 %v652, %v668
        %v675 = vsub.f32 %v656, %v668
        %v676 = vsub.f32 %v660, %v668
        %v677 = vsub.f32 %v664, %v668
        %v678 = vand.u32 2147483647, %v670
        %v679 = vand.u32 2147483647, %v671
        %v680 = vand.u32 2147483647, %v672
        %v681 = vand.u32 2147483647, %v673
        %v682 = vand.u32 2147483647, %v674
        %v683 = vand.u32 2147483647, %v675
        %v684 = vand.u32 2147483647, %v676
        %v685 = vand.u32 2147483647, %v677
        %v686 = vmul.f32 %v678, %v678
        %v687 = vmul.f32 %v679, %v679
        %v688 = vmul.f32 %v680, %v680
        %v689 = vmul.f32 %v681, %v681
        %v690 = vmul.f32 %v682, %v682
        %v691 = vmul.f32 %v683, %v683
        %v692 = vmul.f32 %v684, %v684
        %v693 = vmul.f32 %v685, %v685
        %v694 = vmul.f32 %v686, %v678
        %v695 = vmul.f32 %v687, %v679
        %v696 = vmul.f32 %v688, %v680
        %v697 = vmul.f32 %v689, %v681
        %v698 = vmul.f32 %v690, %v682
        %v699 = vmul.f32 %v691, %v683
        %v700 = vmul.f32 %v692, %v684
        %v701 = vmul.f32 %v693, %v685
        %v702 = vmul.f32 %v694, 3.0
        %v703 = vmul.f32 %v695, 3.0
        %v704 = vmul.f32 %v696, 3.0
        %v705 = vmul.f32 %v697, 3.0
        %v706 = vmul.f32 %v698, 3.0
        %v707 = vmul.f32 %v699, 3.0
        %v708 = vmul.f32 %v700, 3.0
        %v709 = vmul.f32 %v701, 3.0
        %v710 = vmul.f32 %v686, 6.0
        %v711 = vmul.f32 %v687, 6.0
        %v712 = vmul.f32 %v688, 6.0
        %v713 = vmul.f32 %v689, 6.0
        %v714 = vmul.f32 %v690, 6.0
        %v715 = vmul.f32 %v691, 6.0
        %v716 = vmul.f32 %v692, 6.0
        %v717 = vmul.f32 %v693, 6.0
        %v718 = vsub.f32 %v702, %v710
        %v719 = vsub.f32 %v703, %v711
        %v720 = vsub.f32 %v704, %v712
        %v721 = vsub.f32 %v705, %v713
        %v722 = vsub.f32 %v706, %v714
        %v723 = vsub.f32 %v707, %v715
        %v724 = vsub.f32 %v708, %v716
        %v725 = vsub.f32 %v709, %v717
        %v726 = vadd.f32 %v718, 4.0
        %v727 = vadd.f32 %v719, 4.0
        %v728 = vadd.f32 %v720, 4.0
        %v729 = vadd.f32 %v721, 4.0
        %v730 = vadd.f32 %v722, 4.0
        %v731 = vadd.f32 %v723, 4.0
        %v732 = vadd.f32 %v724, 4.0
        %v733 = vadd.f32 %v725, 4.0
        %v734 = vmul.f32 %v726, 0.16666667
        %v735 = vmul.f32 %v727, 0.16666667
        %v736 = vmul.f32 %v728, 0.16666667
        %v737 = vmul.f32 %v729, 0.16666667
        %v738 = vmul.f32 %v730, 0.16666667
        %v739 = vmul.f32 %v731, 0.16666667
        %v740 = vmul.f32 %v732, 0.16666667
        %v741 = vmul.f32 %v733, 0.16666667
        %v742 = vsub.f32 2.0, %v678
        %v743 = vsub.f32 2.0, %v679
        %v744 = vsub.f32 2.0, %v680
        %v745 = vsub.f32 2.0, %v681
        %v746 = vsub.f32 2.0, %v682
        %v747 = vsub.f32 2.0, %v683
        %v748 = vsub.f32 2.0, %v684
        %v749 = vsub.f32 2.0, %v685
        %v750 = vmul.f32 %v742, %v742
        %v751 = vmul.f32 %v743, %v743
        %v752 = vmul.f32 %v744, %v744
        %v753 = vmul.f32 %v745, %v745
        %v754 = vmul.f32 %v746, %v746
        %v755 = vmul.f32 %v747, %v747
        %v756 = vmul.f32 %v748, %v748
        %v757 = vmul.f32 %v749, %v749
        %v758 = vmul.f32 %v750, %v742
        %v759 = vmul.f32 %v751, %v743
        %v760 = vmul.f32 %v752, %v744
        %v761 = vmul.f32 %v753, %v745
        %v762 = vmul.f32 %v754, %v746
        %v763 = vmul.f32 %v755, %v747
        %v764 = vmul.f32 %v756, %v748
        %v765 = vmul.f32 %v757, %v749
        %v766 = vmul.f32 %v758, 0.16666667
        %v767 = vmul.f32 %v759, 0.16666667
        %v768 = vmul.f32 %v760, 0.16666667
        %v769 = vmul.f32 %v761, 0.16666667
        %v770 = vmul.f32 %v762, 0.16666667
        %v771 = vmul.f32 %v763, 0.16666667
        %v772 = vmul.f32 %v764, 0.16666667
        %v773 = vmul.f32 %v765, 0.16666667
        %vm774 = vcmp.gt.f32.partialorder %v670, -1.0
        %vm775 = vcmp.gt.f32.partialorder %v671, -1.0
        %vm776 = vcmp.gt.f32.partialorder %v672, -1.0
        %vm777 = vcmp.gt.f32.partialorder %v673, -1.0
        %vm778 = vcmp.gt.f32.partialorder %v674, -1.0
        %vm779 = vcmp.gt.f32.partialorder %v675, -1.0
        %vm780 = vcmp.gt.f32.partialorder %v676, -1.0
        %vm781 = vcmp.gt.f32.partialorder %v677, -1.0
        %vm782 = vcmp.le.f32.partialorder %v670, 1.0
        %vm783 = vcmp.le.f32.partialorder %v671, 1.0
        %vm784 = vcmp.le.f32.partialorder %v672, 1.0
        %vm785 = vcmp.le.f32.partialorder %v673, 1.0
        %vm786 = vcmp.le.f32.partialorder %v674, 1.0
        %vm787 = vcmp.le.f32.partialorder %v675, 1.0
        %vm788 = vcmp.le.f32.partialorder %v676, 1.0
        %vm789 = vcmp.le.f32.partialorder %v677, 1.0
        %vm790 = vmand %vm774, %vm782
        %vm791 = vmand %vm775, %vm783
        %vm792 = vmand %vm776, %vm784
        %vm793 = vmand %vm777, %vm785
        %vm794 = vmand %vm778, %vm786
        %vm795 = vmand %vm779, %vm787
        %vm796 = vmand %vm780, %vm788
        %vm797 = vmand %vm781, %vm789
        %vm798 = vcmp.gt.f32.partialorder %v678, 1.0
        %vm799 = vcmp.gt.f32.partialorder %v679, 1.0
        %vm800 = vcmp.gt.f32.partialorder %v680, 1.0
        %vm801 = vcmp.gt.f32.partialorder %v681, 1.0
        %vm802 = vcmp.gt.f32.partialorder %v682, 1.0
        %vm803 = vcmp.gt.f32.partialorder %v683, 1.0
        %vm804 = vcmp.gt.f32.partialorder %v684, 1.0
        %vm805 = vcmp.gt.f32.partialorder %v685, 1.0
        %vm806 = vcmp.lt.f32.partialorder %v678, 2.0
        %vm807 = vcmp.lt.f32.partialorder %v679, 2.0
        %vm808 = vcmp.lt.f32.partialorder %v680, 2.0
        %vm809 = vcmp.lt.f32.partialorder %v681, 2.0
        %vm810 = vcmp.lt.f32.partialorder %v682, 2.0
        %vm811 = vcmp.lt.f32.partialorder %v683, 2.0
        %vm812 = vcmp.lt.f32.partialorder %v684, 2.0
        %vm813 = vcmp.lt.f32.partialorder %v685, 2.0
        %vm814 = vmand %vm798, %vm806
        %vm815 = vmand %vm799, %vm807
        %vm816 = vmand %vm800, %vm808
        %vm817 = vmand %vm801, %vm809
        %vm818 = vmand %vm802, %vm810
        %vm819 = vmand %vm803, %vm811
        %vm820 = vmand %vm804, %vm812
        %vm821 = vmand %vm805, %vm813
        %v822 = vsel %vm814, %v766, 0.0
        %v823 = vsel %vm815, %v767, 0.0
        %v824 = vsel %vm816, %v768, 0.0
        %v825 = vsel %vm817, %v769, 0.0
        %v826 = vsel %vm818, %v770, 0.0
        %v827 = vsel %vm819, %v771, 0.0
        %v828 = vsel %vm820, %v772, 0.0
        %v829 = vsel %vm821, %v773, 0.0
        %v830 = vsel %vm790, %v734, %v822
        %v831 = vsel %vm791, %v735, %v823
        %v832 = vsel %vm792, %v736, %v824
        %v833 = vsel %vm793, %v737, %v825
        %v834 = vsel %vm794, %v738, %v826
        %v835 = vsel %vm795, %v739, %v827
        %v836 = vsel %vm796, %v740, %v828
        %v837 = vsel %vm797, %v741, %v829
        %vm838 = vcmp.eq.f32.partialorder %v670, 0.0
        %vm839 = vcmp.eq.f32.partialorder %v671, 0.0
        %vm840 = vcmp.eq.f32.partialorder %v672, 0.0
        %vm841 = vcmp.eq.f32.partialorder %v673, 0.0
        %vm842 = vcmp.eq.f32.partialorder %v674, 0.0
        %vm843 = vcmp.eq.f32.partialorder %v675, 0.0
        %vm844 = vcmp.eq.f32.partialorder %v676, 0.0
        %vm845 = vcmp.eq.f32.partialorder %v677, 0.0
        %v846 = vadd.f32 %v734, %v734
        %v847 = vadd.f32 %v735, %v735
        %v848 = vadd.f32 %v736, %v736
        %v849 = vadd.f32 %v737, %v737
        %v850 = vadd.f32 %v738, %v738
        %v851 = vadd.f32 %v739, %v739
        %v852 = vadd.f32 %v740, %v740
        %v853 = vadd.f32 %v741, %v741
        %v854 = vsel %vm838, %v846, %v830
        %v855 = vsel %vm839, %v847, %v831
        %v856 = vsel %vm840, %v848, %v832
        %v857 = vsel %vm841, %v849, %v833
        %v858 = vsel %vm842, %v850, %v834
        %v859 = vsel %vm843, %v851, %v835
        %v860 = vsel %vm844, %v852, %v836
        %v861 = vsel %vm845, %v853, %v837
        %v862 = vld [vmem:[%s5] sm:$0x1f]
        %v863 = vlaneseq
        %v864 = vshrl.u32 %v863, 7
        %v865 = vsub.s32 2, %v864
        %v866 = vrot.slane %v314, %v865
        %v867 = vlaneseq
        %v868 = vshrl.u32 %v867, 7
        %v869 = vsub.s32 6, %v868
        %v870 = vrot.slane %v314, %v869
        %v871 = vlaneseq
        %v872 = vshrl.u32 %v871, 7
        %v873 = vsub.s32 2, %v872
        %v874 = vrot.slane %v315, %v873
        %v875 = vlaneseq
        %v876 = vshrl.u32 %v875, 7
        %v877 = vsub.s32 6, %v876
        %v878 = vrot.slane %v315, %v877
        %v879 = vlaneseq
        %v880 = vshrl.u32 %v879, 7
        %v881 = vsub.s32 2, %v880
        %v882 = vrot.slane %v316, %v881
        %v883 = vlaneseq
        %v884 = vshrl.u32 %v883, 7
        %v885 = vsub.s32 6, %v884
        %v886 = vrot.slane %v316, %v885
        %v887 = vlaneseq
        %v888 = vshrl.u32 %v887, 7
        %v889 = vsub.s32 2, %v888
        %v890 = vrot.slane %v317, %v889
        %v891 = vlaneseq
        %v892 = vshrl.u32 %v891, 7
        %v893 = vsub.s32 6, %v892
        %v894 = vrot.slane %v317, %v893
        %v903 = vlaneseq
        %v904 = vshrl.u32 %v903, 7
        %v905 = vsub.s32 2, %v904
        %v906 = vrot.slane %v866, %v905
        %v907 = vlaneseq
        %v908 = vshrl.u32 %v907, 7
        %v909 = vsub.s32 2, %v908
        %v910 = vrot.slane %v870, %v909
        %v911 = vlaneseq
        %v912 = vshrl.u32 %v911, 7
        %v913 = vsub.s32 2, %v912
        %v914 = vrot.slane %v874, %v913
        %v915 = vlaneseq
        %v916 = vshrl.u32 %v915, 7
        %v917 = vsub.s32 2, %v916
        %v918 = vrot.slane %v878, %v917
        %v919 = vlaneseq
        %v920 = vshrl.u32 %v919, 7
        %v921 = vsub.s32 2, %v920
        %v922 = vrot.slane %v882, %v921
        %v923 = vlaneseq
        %v924 = vshrl.u32 %v923, 7
        %v925 = vsub.s32 2, %v924
        %v926 = vrot.slane %v886, %v925
        %v927 = vlaneseq
        %v928 = vshrl.u32 %v927, 7
        %v929 = vsub.s32 2, %v928
        %v930 = vrot.slane %v890, %v929
        %v931 = vlaneseq
        %v932 = vshrl.u32 %v931, 7
        %v933 = vsub.s32 2, %v932
        %v934 = vrot.slane %v894, %v933
        %936 = vset.pattern.permute.xlu0 0
        %937 = vperm.xlu0 %936, %v862
        %v938 = vpop.permute.xlu0 %937
        %v940 = vsub.f32 %v906, %v938
        %v941 = vsub.f32 %v910, %v938
        %v942 = vsub.f32 %v914, %v938
        %v943 = vsub.f32 %v918, %v938
        %v944 = vsub.f32 %v922, %v938
        %v945 = vsub.f32 %v926, %v938
        %v946 = vsub.f32 %v930, %v938
        %v947 = vsub.f32 %v934, %v938
        %v948 = vand.u32 2147483647, %v940
        %v949 = vand.u32 2147483647, %v941
        %v950 = vand.u32 2147483647, %v942
        %v951 = vand.u32 2147483647, %v943
        %v952 = vand.u32 2147483647, %v944
        %v953 = vand.u32 2147483647, %v945
        %v954 = vand.u32 2147483647, %v946
        %v955 = vand.u32 2147483647, %v947
        %v956 = vmul.f32 %v948, %v948
        %v957 = vmul.f32 %v949, %v949
        %v958 = vmul.f32 %v950, %v950
        %v959 = vmul.f32 %v951, %v951
        %v960 = vmul.f32 %v952, %v952
        %v961 = vmul.f32 %v953, %v953
        %v962 = vmul.f32 %v954, %v954
        %v963 = vmul.f32 %v955, %v955
        %v964 = vmul.f32 %v956, %v948
        %v965 = vmul.f32 %v957, %v949
        %v966 = vmul.f32 %v958, %v950
        %v967 = vmul.f32 %v959, %v951
        %v968 = vmul.f32 %v960, %v952
        %v969 = vmul.f32 %v961, %v953
        %v970 = vmul.f32 %v962, %v954
        %v971 = vmul.f32 %v963, %v955
        %v972 = vmul.f32 %v964, 3.0
        %v973 = vmul.f32 %v965, 3.0
        %v974 = vmul.f32 %v966, 3.0
        %v975 = vmul.f32 %v967, 3.0
        %v976 = vmul.f32 %v968, 3.0
        %v977 = vmul.f32 %v969, 3.0
        %v978 = vmul.f32 %v970, 3.0
        %v979 = vmul.f32 %v971, 3.0
        %v980 = vmul.f32 %v956, 6.0
        %v981 = vmul.f32 %v957, 6.0
        %v982 = vmul.f32 %v958, 6.0
        %v983 = vmul.f32 %v959, 6.0
        %v984 = vmul.f32 %v960, 6.0
        %v985 = vmul.f32 %v961, 6.0
        %v986 = vmul.f32 %v962, 6.0
        %v987 = vmul.f32 %v963, 6.0
        %v988 = vsub.f32 %v972, %v980
        %v989 = vsub.f32 %v973, %v981
        %v990 = vsub.f32 %v974, %v982
        %v991 = vsub.f32 %v975, %v983
        %v992 = vsub.f32 %v976, %v984
        %v993 = vsub.f32 %v977, %v985
        %v994 = vsub.f32 %v978, %v986
        %v995 = vsub.f32 %v979, %v987
        %v996 = vadd.f32 %v988, 4.0
        %v997 = vadd.f32 %v989, 4.0
        %v998 = vadd.f32 %v990, 4.0
        %v999 = vadd.f32 %v991, 4.0
        %v1000 = vadd.f32 %v992, 4.0
        %v1001 = vadd.f32 %v993, 4.0
        %v1002 = vadd.f32 %v994, 4.0
        %v1003 = vadd.f32 %v995, 4.0
        %v1004 = vmul.f32 %v996, 0.16666667
        %v1005 = vmul.f32 %v997, 0.16666667
        %v1006 = vmul.f32 %v998, 0.16666667
        %v1007 = vmul.f32 %v999, 0.16666667
        %v1008 = vmul.f32 %v1000, 0.16666667
        %v1009 = vmul.f32 %v1001, 0.16666667
        %v1010 = vmul.f32 %v1002, 0.16666667
        %v1011 = vmul.f32 %v1003, 0.16666667
        %v1012 = vsub.f32 2.0, %v948
        %v1013 = vsub.f32 2.0, %v949
        %v1014 = vsub.f32 2.0, %v950
        %v1015 = vsub.f32 2.0, %v951
        %v1016 = vsub.f32 2.0, %v952
        %v1017 = vsub.f32 2.0, %v953
        %v1018 = vsub.f32 2.0, %v954
        %v1019 = vsub.f32 2.0, %v955
        %v1020 = vmul.f32 %v1012, %v1012
        %v1021 = vmul.f32 %v1013, %v1013
        %v1022 = vmul.f32 %v1014, %v1014
        %v1023 = vmul.f32 %v1015, %v1015
        %v1024 = vmul.f32 %v1016, %v1016
        %v1025 = vmul.f32 %v1017, %v1017
        %v1026 = vmul.f32 %v1018, %v1018
        %v1027 = vmul.f32 %v1019, %v1019
        %v1028 = vmul.f32 %v1020, %v1012
        %v1029 = vmul.f32 %v1021, %v1013
        %v1030 = vmul.f32 %v1022, %v1014
        %v1031 = vmul.f32 %v1023, %v1015
        %v1032 = vmul.f32 %v1024, %v1016
        %v1033 = vmul.f32 %v1025, %v1017
        %v1034 = vmul.f32 %v1026, %v1018
        %v1035 = vmul.f32 %v1027, %v1019
        %v1036 = vmul.f32 %v1028, 0.16666667
        %v1037 = vmul.f32 %v1029, 0.16666667
        %v1038 = vmul.f32 %v1030, 0.16666667
        %v1039 = vmul.f32 %v1031, 0.16666667
        %v1040 = vmul.f32 %v1032, 0.16666667
        %v1041 = vmul.f32 %v1033, 0.16666667
        %v1042 = vmul.f32 %v1034, 0.16666667
        %v1043 = vmul.f32 %v1035, 0.16666667
        %vm1044 = vcmp.gt.f32.partialorder %v940, -1.0
        %vm1045 = vcmp.gt.f32.partialorder %v941, -1.0
        %vm1046 = vcmp.gt.f32.partialorder %v942, -1.0
        %vm1047 = vcmp.gt.f32.partialorder %v943, -1.0
        %vm1048 = vcmp.gt.f32.partialorder %v944, -1.0
        %vm1049 = vcmp.gt.f32.partialorder %v945, -1.0
        %vm1050 = vcmp.gt.f32.partialorder %v946, -1.0
        %vm1051 = vcmp.gt.f32.partialorder %v947, -1.0
        %vm1052 = vcmp.le.f32.partialorder %v940, 1.0
        %vm1053 = vcmp.le.f32.partialorder %v941, 1.0
        %vm1054 = vcmp.le.f32.partialorder %v942, 1.0
        %vm1055 = vcmp.le.f32.partialorder %v943, 1.0
        %vm1056 = vcmp.le.f32.partialorder %v944, 1.0
        %vm1057 = vcmp.le.f32.partialorder %v945, 1.0
        %vm1058 = vcmp.le.f32.partialorder %v946, 1.0
        %vm1059 = vcmp.le.f32.partialorder %v947, 1.0
        %vm1060 = vmand %vm1044, %vm1052
        %vm1061 = vmand %vm1045, %vm1053
        %vm1062 = vmand %vm1046, %vm1054
        %vm1063 = vmand %vm1047, %vm1055
        %vm1064 = vmand %vm1048, %vm1056
        %vm1065 = vmand %vm1049, %vm1057
        %vm1066 = vmand %vm1050, %vm1058
        %vm1067 = vmand %vm1051, %vm1059
        %vm1068 = vcmp.gt.f32.partialorder %v948, 1.0
        %vm1069 = vcmp.gt.f32.partialorder %v949, 1.0
        %vm1070 = vcmp.gt.f32.partialorder %v950, 1.0
        %vm1071 = vcmp.gt.f32.partialorder %v951, 1.0
        %vm1072 = vcmp.gt.f32.partialorder %v952, 1.0
        %vm1073 = vcmp.gt.f32.partialorder %v953, 1.0
        %vm1074 = vcmp.gt.f32.partialorder %v954, 1.0
        %vm1075 = vcmp.gt.f32.partialorder %v955, 1.0
        %vm1076 = vcmp.lt.f32.partialorder %v948, 2.0
        %vm1077 = vcmp.lt.f32.partialorder %v949, 2.0
        %vm1078 = vcmp.lt.f32.partialorder %v950, 2.0
        %vm1079 = vcmp.lt.f32.partialorder %v951, 2.0
        %vm1080 = vcmp.lt.f32.partialorder %v952, 2.0
        %vm1081 = vcmp.lt.f32.partialorder %v953, 2.0
        %vm1082 = vcmp.lt.f32.partialorder %v954, 2.0
        %vm1083 = vcmp.lt.f32.partialorder %v955, 2.0
        %vm1084 = vmand %vm1068, %vm1076
        %vm1085 = vmand %vm1069, %vm1077
        %vm1086 = vmand %vm1070, %vm1078
        %vm1087 = vmand %vm1071, %vm1079
        %vm1088 = vmand %vm1072, %vm1080
        %vm1089 = vmand %vm1073, %vm1081
        %vm1090 = vmand %vm1074, %vm1082
        %vm1091 = vmand %vm1075, %vm1083
        %v1092 = vsel %vm1084, %v1036, 0.0
        %v1093 = vsel %vm1085, %v1037, 0.0
        %v1094 = vsel %vm1086, %v1038, 0.0
        %v1095 = vsel %vm1087, %v1039, 0.0
        %v1096 = vsel %vm1088, %v1040, 0.0
        %v1097 = vsel %vm1089, %v1041, 0.0
        %v1098 = vsel %vm1090, %v1042, 0.0
        %v1099 = vsel %vm1091, %v1043, 0.0
        %v1100 = vsel %vm1060, %v1004, %v1092
        %v1101 = vsel %vm1061, %v1005, %v1093
        %v1102 = vsel %vm1062, %v1006, %v1094
        %v1103 = vsel %vm1063, %v1007, %v1095
        %v1104 = vsel %vm1064, %v1008, %v1096
        %v1105 = vsel %vm1065, %v1009, %v1097
        %v1106 = vsel %vm1066, %v1010, %v1098
        %v1107 = vsel %vm1067, %v1011, %v1099
        %vm1108 = vcmp.eq.f32.partialorder %v940, 0.0
        %vm1109 = vcmp.eq.f32.partialorder %v941, 0.0
        %vm1110 = vcmp.eq.f32.partialorder %v942, 0.0
        %vm1111 = vcmp.eq.f32.partialorder %v943, 0.0
        %vm1112 = vcmp.eq.f32.partialorder %v944, 0.0
        %vm1113 = vcmp.eq.f32.partialorder %v945, 0.0
        %vm1114 = vcmp.eq.f32.partialorder %v946, 0.0
        %vm1115 = vcmp.eq.f32.partialorder %v947, 0.0
        %v1116 = vadd.f32 %v1004, %v1004
        %v1117 = vadd.f32 %v1005, %v1005
        %v1118 = vadd.f32 %v1006, %v1006
        %v1119 = vadd.f32 %v1007, %v1007
        %v1120 = vadd.f32 %v1008, %v1008
        %v1121 = vadd.f32 %v1009, %v1009
        %v1122 = vadd.f32 %v1010, %v1010
        %v1123 = vadd.f32 %v1011, %v1011
        %v1124 = vsel %vm1108, %v1116, %v1100
        %v1125 = vsel %vm1109, %v1117, %v1101
        %v1126 = vsel %vm1110, %v1118, %v1102
        %v1127 = vsel %vm1111, %v1119, %v1103
        %v1128 = vsel %vm1112, %v1120, %v1104
        %v1129 = vsel %vm1113, %v1121, %v1105
        %v1130 = vsel %vm1114, %v1122, %v1106
        %v1131 = vsel %vm1115, %v1123, %v1107
        %v1132 = vld [vmem:[%s6] sm:$0xff]
        %v1133 = vld [vmem:[%s6 + $0x8] sm:$0xff]
        %v1134 = vld [vmem:[%s6 + $0x10] sm:$0xff]
        %v1135 = vld [vmem:[%s6 + $0x18] sm:$0xff]
        %v1136 = vld [vmem:[%s6 + $0x20] sm:$0xff]
        %v1137 = vld [vmem:[%s6 + $0x28] sm:$0xff]
        %vm1138 = vcmask 39936
        %v1140 = vsel %vm1138, %v1132, 0
        %v1143 = vsel %vm1138, %v1133, 0
        %v1146 = vsel %vm1138, %v1134, 0
        %v1149 = vsel %vm1138, %v1135, 0
        %v1152 = vsel %vm1138, %v1136, 0
        %v1155 = vsel %vm1138, %v1137, 0
        %vm1157 = vcmask 1044480
        %v1159 = vsel %vm1157, %v1124, 0
        %v1162 = vsel %vm1157, %v1125, 0
        %v1165 = vsel %vm1157, %v1126, 0
        %v1168 = vsel %vm1157, %v1127, 0
        %v1171 = vsel %vm1157, %v1128, 0
        %v1174 = vsel %vm1157, %v1129, 0
        %v1177 = vsel %vm1157, %v1130, 0
        %v1180 = vsel %vm1157, %v1131, 0
        %1182 = vmatprep.subr.mxu0 0.0
        %1183 = vmatpush1.msra.mxu0 0.0
        %1184 = vmatprep.subr.mxu0 0.0
        %1185 = vmatpush1.msra.mxu0 0.0
        %1186 = vmatprep.subr.mxu0 0.0
        %1187 = vmatpush1.msra.mxu0 0.0
        %1188 = vmatprep.subr.mxu0 0.0
        %1189 = vmatpush1.msra.mxu0 0.0
        %1190 = vmatprep.subr.mxu0 0.0
        %1191 = vmatpush1.msra.mxu0 0.0
        %1192 = vmatprep.subr.mxu0 0.0
        %1193 = vmatpush1.msra.mxu0 0.0
        %1194 = vmatprep.subr.mxu0 0.0
        %1195 = vmatpush1.msra.mxu0 0.0
        %1196 = vmatprep.subr.mxu0 0.0
        %1197 = vmatpush1.msra.mxu0 0.0
        %1198 = vmatprep.subr.mxu0 0.0
        %1199 = vmatpush1.msra.mxu0 0.0
        %1200 = vmatprep.subr.mxu0 0.0
        %1201 = vmatpush1.msra.mxu0 0.0
        %1202 = vmatprep.subr.mxu0 0.0
        %1203 = vmatpush1.msra.mxu0 0.0
        %1204 = vmatprep.subr.mxu0 0.0
        %1205 = vmatpush1.msra.mxu0 0.0
        %1206 = vmatprep.subr.mxu0 0.0
        %1207 = vmatpush1.msra.mxu0 0.0
        %1208 = vmatprep.subr.mxu0 0.0
        %1209 = vmatpush1.msra.mxu0 0.0
        %1210 = vmatprep.subr.mxu0 0.0
        %1211 = vmatpush1.msra.mxu0 0.0
        %v1212 = vand.u32 %v1162, 4294901760
        %1213 = vmatprep.subr.mxu0 %v1212
        %v1214 = vand.u32 %v1159, 4294901760
        %1215 = vmatpush1.msra.mxu0 %v1214
        %1216 = vmatprep.subr.mxu0 0.0
        %1217 = vmatpush2.msra.mxu0 0.0
        %1218 = vmatprep.subr.mxu0 0.0
        %1219 = vmatpush2.msra.mxu0 0.0
        %1220 = vmatprep.subr.mxu0 0.0
        %1221 = vmatpush2.msra.mxu0 0.0
        %1222 = vmatprep.subr.mxu0 0.0
        %1223 = vmatpush2.msra.mxu0 0.0
        %1224 = vmatprep.subr.mxu0 0.0
        %1225 = vmatpush2.msra.mxu0 0.0
        %1226 = vmatprep.subr.mxu0 0.0
        %1227 = vmatpush2.msra.mxu0 0.0
        %1228 = vmatprep.subr.mxu0 0.0
        %1229 = vmatpush2.msra.mxu0 0.0
        %1230 = vmatprep.subr.mxu0 0.0
        %1231 = vmatpush2.msra.mxu0 0.0
        %1232 = vmatprep.subr.mxu0 0.0
        %1233 = vmatpush2.msra.mxu0 0.0
        %1234 = vmatprep.subr.mxu0 0.0
        %1235 = vmatpush2.msra.mxu0 0.0
        %1236 = vmatprep.subr.mxu0 0.0
        %1237 = vmatpush2.msra.mxu0 0.0
        %1238 = vmatprep.subr.mxu0 0.0
        %1239 = vmatpush2.msra.mxu0 0.0
        %1240 = vmatprep.subr.mxu0 0.0
        %1241 = vmatpush2.msra.mxu0 0.0
        %1242 = vmatprep.subr.mxu0 0.0
        %1243 = vmatpush2.msra.mxu0 0.0
        %1244 = vmatprep.subr.mxu0 0.0
        %1245 = vmatpush2.msra.mxu0 0.0
        %1246 = vmatprep.subr.mxu0 0.0
        %1247 = vmatpush2.msra.mxu0 0.0
        %1248 = vmatprep.mubr.f32.mxu0 0.0
        %v1249 = vand.u32 %v1140, 4294901760
        %v1250 = vsub.f32 %v1140, %v1249
        %v1251 = vand.u32 %v1250, 4294901760
        %v1252 = vsub.f32 %v1250, %v1251
        %v1253 = vand.u32 %v1252, 4294901760
        %1254 = vmatmul.mubr.f32.gmra.mxu0 %v1253
        %v1255 = vpop.f32.mrf.mxu0
        %v1256 = vadd.f32 0.0, %v1255
        %v1257 = vpop.f32.mrf.mxu0
        %v1258 = vadd.f32 0.0, %v1257
        %1259 = vmatprep.mubr.f32.mxu0 0.0
        %v1260 = vand.u32 %v1143, 4294901760
        %v1261 = vsub.f32 %v1143, %v1260
        %v1262 = vand.u32 %v1261, 4294901760
        %v1263 = vsub.f32 %v1261, %v1262
        %v1264 = vand.u32 %v1263, 4294901760
        %1265 = vmatmul.mubr.f32.gmra.mxu0 %v1264
        %v1266 = vpop.f32.mrf.mxu0
        %v1267 = vadd.f32 0.0, %v1266
        %v1268 = vpop.f32.mrf.mxu0
        %v1269 = vadd.f32 0.0, %v1268
        %1270 = vmatprep.mubr.f32.mxu0 0.0
        %v1271 = vand.u32 %v1146, 4294901760
        %v1272 = vsub.f32 %v1146, %v1271
        %v1273 = vand.u32 %v1272, 4294901760
        %v1274 = vsub.f32 %v1272, %v1273
        %v1275 = vand.u32 %v1274, 4294901760
        %1276 = vmatmul.mubr.f32.gmra.mxu0 %v1275
        %v1277 = vpop.f32.mrf.mxu0
        %v1278 = vadd.f32 0.0, %v1277
        %v1279 = vpop.f32.mrf.mxu0
        %v1280 = vadd.f32 0.0, %v1279
        %1281 = vmatprep.mubr.f32.mxu0 0.0
        %v1282 = vand.u32 %v1149, 4294901760
        %v1283 = vsub.f32 %v1149, %v1282
        %v1284 = vand.u32 %v1283, 4294901760
        %v1285 = vsub.f32 %v1283, %v1284
        %v1286 = vand.u32 %v1285, 4294901760
        %1287 = vmatmul.mubr.f32.gmra.mxu0 %v1286
        %v1288 = vpop.f32.mrf.mxu0
        %v1289 = vadd.f32 0.0, %v1288
        %v1290 = vpop.f32.mrf.mxu0
        %v1291 = vadd.f32 0.0, %v1290
        %1292 = vmatprep.mubr.f32.mxu0 0.0
        %v1293 = vand.u32 %v1152, 4294901760
        %v1294 = vsub.f32 %v1152, %v1293
        %v1295 = vand.u32 %v1294, 4294901760
        %v1296 = vsub.f32 %v1294, %v1295
        %v1297 = vand.u32 %v1296, 4294901760
        %1298 = vmatmul.mubr.f32.gmra.mxu0 %v1297
        %v1299 = vpop.f32.mrf.mxu0
        %v1300 = vadd.f32 0.0, %v1299
        %v1301 = vpop.f32.mrf.mxu0
        %v1302 = vadd.f32 0.0, %v1301
        %1303 = vmatprep.mubr.f32.mxu0 0.0
        %v1304 = vand.u32 %v1155, 4294901760
        %v1305 = vsub.f32 %v1155, %v1304
        %v1306 = vand.u32 %v1305, 4294901760
        %v1307 = vsub.f32 %v1305, %v1306
        %v1308 = vand.u32 %v1307, 4294901760
        %1309 = vmatmul.mubr.f32.gmra.mxu0 %v1308
        %v1310 = vpop.f32.mrf.mxu0
        %v1311 = vadd.f32 0.0, %v1310
        %v1312 = vpop.f32.mrf.mxu0
        %v1313 = vadd.f32 0.0, %v1312
        %1314 = vdwg.mxu0
        %1315 = vmatprep.subr.mxu0 0.0
        %1316 = vmatpush1.msra.mxu0 0.0
        %1317 = vmatprep.subr.mxu0 0.0
        %1318 = vmatpush1.msra.mxu0 0.0
        %1319 = vmatprep.subr.mxu0 0.0
        %1320 = vmatpush1.msra.mxu0 0.0
        %1321 = vmatprep.subr.mxu0 0.0
        %1322 = vmatpush1.msra.mxu0 0.0
        %1323 = vmatprep.subr.mxu0 0.0
        %1324 = vmatpush1.msra.mxu0 0.0
        %1325 = vmatprep.subr.mxu0 0.0
        %1326 = vmatpush1.msra.mxu0 0.0
        %1327 = vmatprep.subr.mxu0 0.0
        %1328 = vmatpush1.msra.mxu0 0.0
        %1329 = vmatprep.subr.mxu0 0.0
        %1330 = vmatpush1.msra.mxu0 0.0
        %1331 = vmatprep.subr.mxu0 0.0
        %1332 = vmatpush1.msra.mxu0 0.0
        %1333 = vmatprep.subr.mxu0 0.0
        %1334 = vmatpush1.msra.mxu0 0.0
        %1335 = vmatprep.subr.mxu0 0.0
        %1336 = vmatpush1.msra.mxu0 0.0
        %1337 = vmatprep.subr.mxu0 0.0
        %1338 = vmatpush1.msra.mxu0 0.0
        %1339 = vmatprep.subr.mxu0 0.0
        %1340 = vmatpush1.msra.mxu0 0.0
        %1341 = vmatprep.subr.mxu0 0.0
        %1342 = vmatpush1.msra.mxu0 0.0
        %1343 = vmatprep.subr.mxu0 0.0
        %1344 = vmatpush1.msra.mxu0 0.0
        %v1345 = vand.u32 %v1162, 4294901760
        %v1346 = vsub.f32 %v1162, %v1345
        %v1347 = vand.u32 %v1346, 4294901760
        %v1348 = vsub.f32 %v1346, %v1347
        %v1349 = vand.u32 %v1348, 4294901760
        %1350 = vmatprep.subr.mxu0 %v1349
        %v1351 = vand.u32 %v1159, 4294901760
        %v1352 = vsub.f32 %v1159, %v1351
        %v1353 = vand.u32 %v1352, 4294901760
        %v1354 = vsub.f32 %v1352, %v1353
        %v1355 = vand.u32 %v1354, 4294901760
        %1356 = vmatpush1.msra.mxu0 %v1355
        %1357 = vmatprep.subr.mxu0 0.0
        %1358 = vmatpush2.msra.mxu0 0.0
        %1359 = vmatprep.subr.mxu0 0.0
        %1360 = vmatpush2.msra.mxu0 0.0
        %1361 = vmatprep.subr.mxu0 0.0
        %1362 = vmatpush2.msra.mxu0 0.0
        %1363 = vmatprep.subr.mxu0 0.0
        %1364 = vmatpush2.msra.mxu0 0.0
        %1365 = vmatprep.subr.mxu0 0.0
        %1366 = vmatpush2.msra.mxu0 0.0
        %1367 = vmatprep.subr.mxu0 0.0
        %1368 = vmatpush2.msra.mxu0 0.0
        %1369 = vmatprep.subr.mxu0 0.0
        %1370 = vmatpush2.msra.mxu0 0.0
        %1371 = vmatprep.subr.mxu0 0.0
        %1372 = vmatpush2.msra.mxu0 0.0
        %1373 = vmatprep.subr.mxu0 0.0
        %1374 = vmatpush2.msra.mxu0 0.0
        %1375 = vmatprep.subr.mxu0 0.0
        %1376 = vmatpush2.msra.mxu0 0.0
        %1377 = vmatprep.subr.mxu0 0.0
        %1378 = vmatpush2.msra.mxu0 0.0
        %1379 = vmatprep.subr.mxu0 0.0
        %1380 = vmatpush2.msra.mxu0 0.0
        %1381 = vmatprep.subr.mxu0 0.0
        %1382 = vmatpush2.msra.mxu0 0.0
        %1383 = vmatprep.subr.mxu0 0.0
        %1384 = vmatpush2.msra.mxu0 0.0
        %1385 = vmatprep.subr.mxu0 0.0
        %1386 = vmatpush2.msra.mxu0 0.0
        %1387 = vmatprep.subr.mxu0 0.0
        %1388 = vmatpush2.msra.mxu0 0.0
        %1389 = vmatprep.mubr.f32.mxu0 0.0
        %v1390 = vand.u32 %v1140, 4294901760
        %1391 = vmatmul.mubr.f32.gmra.mxu0 %v1390
        %v1392 = vpop.f32.mrf.mxu0
        %v1393 = vadd.f32 %v1256, %v1392
        %v1394 = vpop.f32.mrf.mxu0
        %v1395 = vadd.f32 %v1258, %v1394
        %1396 = vmatprep.mubr.f32.mxu0 0.0
        %v1397 = vand.u32 %v1143, 4294901760
        %1398 = vmatmul.mubr.f32.gmra.mxu0 %v1397
        %v1399 = vpop.f32.mrf.mxu0
        %v1400 = vadd.f32 %v1267, %v1399
        %v1401 = vpop.f32.mrf.mxu0
        %v1402 = vadd.f32 %v1269, %v1401
        %1403 = vmatprep.mubr.f32.mxu0 0.0
        %v1404 = vand.u32 %v1146, 4294901760
        %1405 = vmatmul.mubr.f32.gmra.mxu0 %v1404
        %v1406 = vpop.f32.mrf.mxu0
        %v1407 = vadd.f32 %v1278, %v1406
        %v1408 = vpop.f32.mrf.mxu0
        %v1409 = vadd.f32 %v1280, %v1408
        %1410 = vmatprep.mubr.f32.mxu0 0.0
        %v1411 = vand.u32 %v1149, 4294901760
        %1412 = vmatmul.mubr.f32.gmra.mxu0 %v1411
        %v1413 = vpop.f32.mrf.mxu0
        %v1414 = vadd.f32 %v1289, %v1413
        %v1415 = vpop.f32.mrf.mxu0
        %v1416 = vadd.f32 %v1291, %v1415
        %1417 = vmatprep.mubr.f32.mxu0 0.0
        %v1418 = vand.u32 %v1152, 4294901760
        %1419 = vmatmul.mubr.f32.gmra.mxu0 %v1418
        %v1420 = vpop.f32.mrf.mxu0
        %v1421 = vadd.f32 %v1300, %v1420
        %v1422 = vpop.f32.mrf.mxu0
        %v1423 = vadd.f32 %v1302, %v1422
        %1424 = vmatprep.mubr.f32.mxu0 0.0
        %v1425 = vand.u32 %v1155, 4294901760
        %1426 = vmatmul.mubr.f32.gmra.mxu0 %v1425
        %v1427 = vpop.f32.mrf.mxu0
        %v1428 = vadd.f32 %v1311, %v1427
        %v1429 = vpop.f32.mrf.mxu0
        %v1430 = vadd.f32 %v1313, %v1429
        %1431 = vdwg.mxu0
        %1432 = vmatprep.subr.mxu0 0.0
        %1433 = vmatpush1.msra.mxu0 0.0
        %1434 = vmatprep.subr.mxu0 0.0
        %1435 = vmatpush1.msra.mxu0 0.0
        %1436 = vmatprep.subr.mxu0 0.0
        %1437 = vmatpush1.msra.mxu0 0.0
        %1438 = vmatprep.subr.mxu0 0.0
        %1439 = vmatpush1.msra.mxu0 0.0
        %1440 = vmatprep.subr.mxu0 0.0
        %1441 = vmatpush1.msra.mxu0 0.0
        %1442 = vmatprep.subr.mxu0 0.0
        %1443 = vmatpush1.msra.mxu0 0.0
        %1444 = vmatprep.subr.mxu0 0.0
        %1445 = vmatpush1.msra.mxu0 0.0
        %1446 = vmatprep.subr.mxu0 0.0
        %1447 = vmatpush1.msra.mxu0 0.0
        %1448 = vmatprep.subr.mxu0 0.0
        %1449 = vmatpush1.msra.mxu0 0.0
        %1450 = vmatprep.subr.mxu0 0.0
        %1451 = vmatpush1.msra.mxu0 0.0
        %1452 = vmatprep.subr.mxu0 0.0
        %1453 = vmatpush1.msra.mxu0 0.0
        %1454 = vmatprep.subr.mxu0 0.0
        %1455 = vmatpush1.msra.mxu0 0.0
        %1456 = vmatprep.subr.mxu0 0.0
        %1457 = vmatpush1.msra.mxu0 0.0
        %1458 = vmatprep.subr.mxu0 0.0
        %1459 = vmatpush1.msra.mxu0 0.0
        %1460 = vmatprep.subr.mxu0 0.0
        %1461 = vmatpush1.msra.mxu0 0.0
        %v1462 = vand.u32 %v1162, 4294901760
        %v1463 = vsub.f32 %v1162, %v1462
        %1464 = vmatprep.subr.mxu0 %v1463
        %v1465 = vand.u32 %v1159, 4294901760
        %v1466 = vsub.f32 %v1159, %v1465
        %1467 = vmatpush1.msra.mxu0 %v1466
        %1468 = vmatprep.subr.mxu0 0.0
        %1469 = vmatpush2.msra.mxu0 0.0
        %1470 = vmatprep.subr.mxu0 0.0
        %1471 = vmatpush2.msra.mxu0 0.0
        %1472 = vmatprep.subr.mxu0 0.0
        %1473 = vmatpush2.msra.mxu0 0.0
        %1474 = vmatprep.subr.mxu0 0.0
        %1475 = vmatpush2.msra.mxu0 0.0
        %1476 = vmatprep.subr.mxu0 0.0
        %1477 = vmatpush2.msra.mxu0 0.0
        %1478 = vmatprep.subr.mxu0 0.0
        %1479 = vmatpush2.msra.mxu0 0.0
        %1480 = vmatprep.subr.mxu0 0.0
        %1481 = vmatpush2.msra.mxu0 0.0
        %1482 = vmatprep.subr.mxu0 0.0
        %1483 = vmatpush2.msra.mxu0 0.0
        %1484 = vmatprep.subr.mxu0 0.0
        %1485 = vmatpush2.msra.mxu0 0.0
        %1486 = vmatprep.subr.mxu0 0.0
        %1487 = vmatpush2.msra.mxu0 0.0
        %1488 = vmatprep.subr.mxu0 0.0
        %1489 = vmatpush2.msra.mxu0 0.0
        %1490 = vmatprep.subr.mxu0 0.0
        %1491 = vmatpush2.msra.mxu0 0.0
        %1492 = vmatprep.subr.mxu0 0.0
        %1493 = vmatpush2.msra.mxu0 0.0
        %1494 = vmatprep.subr.mxu0 0.0
        %1495 = vmatpush2.msra.mxu0 0.0
        %1496 = vmatprep.subr.mxu0 0.0
        %1497 = vmatpush2.msra.mxu0 0.0
        %1498 = vmatprep.subr.mxu0 0.0
        %1499 = vmatpush2.msra.mxu0 0.0
        %1500 = vmatprep.mubr.f32.mxu0 0.0
        %v1501 = vand.u32 %v1140, 4294901760
        %v1502 = vsub.f32 %v1140, %v1501
        %1503 = vmatmul.mubr.f32.gmra.mxu0 %v1502
        %v1504 = vpop.f32.mrf.mxu0
        %v1505 = vadd.f32 %v1393, %v1504
        %v1506 = vpop.f32.mrf.mxu0
        %v1507 = vadd.f32 %v1395, %v1506
        %1508 = vmatprep.mubr.f32.mxu0 0.0
        %v1509 = vand.u32 %v1143, 4294901760
        %v1510 = vsub.f32 %v1143, %v1509
        %1511 = vmatmul.mubr.f32.gmra.mxu0 %v1510
        %v1512 = vpop.f32.mrf.mxu0
        %v1513 = vadd.f32 %v1400, %v1512
        %v1514 = vpop.f32.mrf.mxu0
        %v1515 = vadd.f32 %v1402, %v1514
        %1516 = vmatprep.mubr.f32.mxu0 0.0
        %v1517 = vand.u32 %v1146, 4294901760
        %v1518 = vsub.f32 %v1146, %v1517
        %1519 = vmatmul.mubr.f32.gmra.mxu0 %v1518
        %v1520 = vpop.f32.mrf.mxu0
        %v1521 = vadd.f32 %v1407, %v1520
        %v1522 = vpop.f32.mrf.mxu0
        %v1523 = vadd.f32 %v1409, %v1522
        %1524 = vmatprep.mubr.f32.mxu0 0.0
        %v1525 = vand.u32 %v1149, 4294901760
        %v1526 = vsub.f32 %v1149, %v1525
        %1527 = vmatmul.mubr.f32.gmra.mxu0 %v1526
        %v1528 = vpop.f32.mrf.mxu0
        %v1529 = vadd.f32 %v1414, %v1528
        %v1530 = vpop.f32.mrf.mxu0
        %v1531 = vadd.f32 %v1416, %v1530
        %1532 = vmatprep.mubr.f32.mxu0 0.0
        %v1533 = vand.u32 %v1152, 4294901760
        %v1534 = vsub.f32 %v1152, %v1533
        %1535 = vmatmul.mubr.f32.gmra.mxu0 %v1534
        %v1536 = vpop.f32.mrf.mxu0
        %v1537 = vadd.f32 %v1421, %v1536
        %v1538 = vpop.f32.mrf.mxu0
        %v1539 = vadd.f32 %v1423, %v1538
        %1540 = vmatprep.mubr.f32.mxu0 0.0
        %v1541 = vand.u32 %v1155, 4294901760
        %v1542 = vsub.f32 %v1155, %v1541
        %1543 = vmatmul.mubr.f32.gmra.mxu0 %v1542
        %v1544 = vpop.f32.mrf.mxu0
        %v1545 = vadd.f32 %v1428, %v1544
        %v1546 = vpop.f32.mrf.mxu0
        %v1547 = vadd.f32 %v1430, %v1546
        %1548 = vdwg.mxu0
        %1549 = vmatprep.subr.mxu0 0.0
        %1550 = vmatpush1.msra.mxu0 0.0
        %1551 = vmatprep.subr.mxu0 0.0
        %1552 = vmatpush1.msra.mxu0 0.0
        %1553 = vmatprep.subr.mxu0 0.0
        %1554 = vmatpush1.msra.mxu0 0.0
        %1555 = vmatprep.subr.mxu0 0.0
        %1556 = vmatpush1.msra.mxu0 0.0
        %1557 = vmatprep.subr.mxu0 0.0
        %1558 = vmatpush1.msra.mxu0 0.0
        %1559 = vmatprep.subr.mxu0 0.0
        %1560 = vmatpush1.msra.mxu0 0.0
        %1561 = vmatprep.subr.mxu0 0.0
        %1562 = vmatpush1.msra.mxu0 0.0
        %1563 = vmatprep.subr.mxu0 0.0
        %1564 = vmatpush1.msra.mxu0 0.0
        %1565 = vmatprep.subr.mxu0 0.0
        %1566 = vmatpush1.msra.mxu0 0.0
        %1567 = vmatprep.subr.mxu0 0.0
        %1568 = vmatpush1.msra.mxu0 0.0
        %1569 = vmatprep.subr.mxu0 0.0
        %1570 = vmatpush1.msra.mxu0 0.0
        %1571 = vmatprep.subr.mxu0 0.0
        %1572 = vmatpush1.msra.mxu0 0.0
        %1573 = vmatprep.subr.mxu0 0.0
        %1574 = vmatpush1.msra.mxu0 0.0
        %1575 = vmatprep.subr.mxu0 0.0
        %1576 = vmatpush1.msra.mxu0 0.0
        %1577 = vmatprep.subr.mxu0 0.0
        %1578 = vmatpush1.msra.mxu0 0.0
        %v1579 = vand.u32 %v1162, 4294901760
        %1580 = vmatprep.subr.mxu0 %v1579
        %v1581 = vand.u32 %v1159, 4294901760
        %1582 = vmatpush1.msra.mxu0 %v1581
        %1583 = vmatprep.subr.mxu0 0.0
        %1584 = vmatpush2.msra.mxu0 0.0
        %1585 = vmatprep.subr.mxu0 0.0
        %1586 = vmatpush2.msra.mxu0 0.0
        %1587 = vmatprep.subr.mxu0 0.0
        %1588 = vmatpush2.msra.mxu0 0.0
        %1589 = vmatprep.subr.mxu0 0.0
        %1590 = vmatpush2.msra.mxu0 0.0
        %1591 = vmatprep.subr.mxu0 0.0
        %1592 = vmatpush2.msra.mxu0 0.0
        %1593 = vmatprep.subr.mxu0 0.0
        %1594 = vmatpush2.msra.mxu0 0.0
        %1595 = vmatprep.subr.mxu0 0.0
        %1596 = vmatpush2.msra.mxu0 0.0
        %1597 = vmatprep.subr.mxu0 0.0
        %1598 = vmatpush2.msra.mxu0 0.0
        %1599 = vmatprep.subr.mxu0 0.0
        %1600 = vmatpush2.msra.mxu0 0.0
        %1601 = vmatprep.subr.mxu0 0.0
        %1602 = vmatpush2.msra.mxu0 0.0
        %1603 = vmatprep.subr.mxu0 0.0
        %1604 = vmatpush2.msra.mxu0 0.0
        %1605 = vmatprep.subr.mxu0 0.0
        %1606 = vmatpush2.msra.mxu0 0.0
        %1607 = vmatprep.subr.mxu0 0.0
        %1608 = vmatpush2.msra.mxu0 0.0
        %1609 = vmatprep.subr.mxu0 0.0
        %1610 = vmatpush2.msra.mxu0 0.0
        %1611 = vmatprep.subr.mxu0 0.0
        %1612 = vmatpush2.msra.mxu0 0.0
        %1613 = vmatprep.subr.mxu0 0.0
        %1614 = vmatpush2.msra.mxu0 0.0
        %1615 = vmatprep.mubr.f32.mxu0 0.0
        %v1616 = vand.u32 %v1140, 4294901760
        %v1617 = vsub.f32 %v1140, %v1616
        %v1618 = vand.u32 %v1617, 4294901760
        %1619 = vmatmul.mubr.f32.gmra.mxu0 %v1618
        %v1620 = vpop.f32.mrf.mxu0
        %v1621 = vadd.f32 %v1505, %v1620
        %v1622 = vpop.f32.mrf.mxu0
        %v1623 = vadd.f32 %v1507, %v1622
        %1624 = vmatprep.mubr.f32.mxu0 0.0
        %v1625 = vand.u32 %v1143, 4294901760
        %v1626 = vsub.f32 %v1143, %v1625
        %v1627 = vand.u32 %v1626, 4294901760
        %1628 = vmatmul.mubr.f32.gmra.mxu0 %v1627
        %v1629 = vpop.f32.mrf.mxu0
        %v1630 = vadd.f32 %v1513, %v1629
        %v1631 = vpop.f32.mrf.mxu0
        %v1632 = vadd.f32 %v1515, %v1631
        %1633 = vmatprep.mubr.f32.mxu0 0.0
        %v1634 = vand.u32 %v1146, 4294901760
        %v1635 = vsub.f32 %v1146, %v1634
        %v1636 = vand.u32 %v1635, 4294901760
        %1637 = vmatmul.mubr.f32.gmra.mxu0 %v1636
        %v1638 = vpop.f32.mrf.mxu0
        %v1639 = vadd.f32 %v1521, %v1638
        %v1640 = vpop.f32.mrf.mxu0
        %v1641 = vadd.f32 %v1523, %v1640
        %1642 = vmatprep.mubr.f32.mxu0 0.0
        %v1643 = vand.u32 %v1149, 4294901760
        %v1644 = vsub.f32 %v1149, %v1643
        %v1645 = vand.u32 %v1644, 4294901760
        %1646 = vmatmul.mubr.f32.gmra.mxu0 %v1645
        %v1647 = vpop.f32.mrf.mxu0
        %v1648 = vadd.f32 %v1529, %v1647
        %v1649 = vpop.f32.mrf.mxu0
        %v1650 = vadd.f32 %v1531, %v1649
        %1651 = vmatprep.mubr.f32.mxu0 0.0
        %v1652 = vand.u32 %v1152, 4294901760
        %v1653 = vsub.f32 %v1152, %v1652
        %v1654 = vand.u32 %v1653, 4294901760
        %1655 = vmatmul.mubr.f32.gmra.mxu0 %v1654
        %v1656 = vpop.f32.mrf.mxu0
        %v1657 = vadd.f32 %v1537, %v1656
        %v1658 = vpop.f32.mrf.mxu0
        %v1659 = vadd.f32 %v1539, %v1658
        %1660 = vmatprep.mubr.f32.mxu0 0.0
        %v1661 = vand.u32 %v1155, 4294901760
        %v1662 = vsub.f32 %v1155, %v1661
        %v1663 = vand.u32 %v1662, 4294901760
        %1664 = vmatmul.mubr.f32.gmra.mxu0 %v1663
        %v1665 = vpop.f32.mrf.mxu0
        %v1666 = vadd.f32 %v1545, %v1665
        %v1667 = vpop.f32.mrf.mxu0
        %v1668 = vadd.f32 %v1547, %v1667
        %1669 = vdwg.mxu0
        %1670 = vmatprep.subr.mxu0 0.0
        %1671 = vmatpush1.msra.mxu0 0.0
        %1672 = vmatprep.subr.mxu0 0.0
        %1673 = vmatpush1.msra.mxu0 0.0
        %1674 = vmatprep.subr.mxu0 0.0
        %1675 = vmatpush1.msra.mxu0 0.0
        %1676 = vmatprep.subr.mxu0 0.0
        %1677 = vmatpush1.msra.mxu0 0.0
        %1678 = vmatprep.subr.mxu0 0.0
        %1679 = vmatpush1.msra.mxu0 0.0
        %1680 = vmatprep.subr.mxu0 0.0
        %1681 = vmatpush1.msra.mxu0 0.0
        %1682 = vmatprep.subr.mxu0 0.0
        %1683 = vmatpush1.msra.mxu0 0.0
        %1684 = vmatprep.subr.mxu0 0.0
        %1685 = vmatpush1.msra.mxu0 0.0
        %1686 = vmatprep.subr.mxu0 0.0
        %1687 = vmatpush1.msra.mxu0 0.0
        %1688 = vmatprep.subr.mxu0 0.0
        %1689 = vmatpush1.msra.mxu0 0.0
        %1690 = vmatprep.subr.mxu0 0.0
        %1691 = vmatpush1.msra.mxu0 0.0
        %1692 = vmatprep.subr.mxu0 0.0
        %1693 = vmatpush1.msra.mxu0 0.0
        %1694 = vmatprep.subr.mxu0 0.0
        %1695 = vmatpush1.msra.mxu0 0.0
        %1696 = vmatprep.subr.mxu0 0.0
        %1697 = vmatpush1.msra.mxu0 0.0
        %1698 = vmatprep.subr.mxu0 0.0
        %1699 = vmatpush1.msra.mxu0 0.0
        %v1700 = vand.u32 %v1162, 4294901760
        %v1701 = vsub.f32 %v1162, %v1700
        %v1702 = vand.u32 %v1701, 4294901760
        %1703 = vmatprep.subr.mxu0 %v1702
        %v1704 = vand.u32 %v1159, 4294901760
        %v1705 = vsub.f32 %v1159, %v1704
        %v1706 = vand.u32 %v1705, 4294901760
        %1707 = vmatpush1.msra.mxu0 %v1706
        %1708 = vmatprep.subr.mxu0 0.0
        %1709 = vmatpush2.msra.mxu0 0.0
        %1710 = vmatprep.subr.mxu0 0.0
        %1711 = vmatpush2.msra.mxu0 0.0
        %1712 = vmatprep.subr.mxu0 0.0
        %1713 = vmatpush2.msra.mxu0 0.0
        %1714 = vmatprep.subr.mxu0 0.0
        %1715 = vmatpush2.msra.mxu0 0.0
        %1716 = vmatprep.subr.mxu0 0.0
        %1717 = vmatpush2.msra.mxu0 0.0
        %1718 = vmatprep.subr.mxu0 0.0
        %1719 = vmatpush2.msra.mxu0 0.0
        %1720 = vmatprep.subr.mxu0 0.0
        %1721 = vmatpush2.msra.mxu0 0.0
        %1722 = vmatprep.subr.mxu0 0.0
        %1723 = vmatpush2.msra.mxu0 0.0
        %1724 = vmatprep.subr.mxu0 0.0
        %1725 = vmatpush2.msra.mxu0 0.0
        %1726 = vmatprep.subr.mxu0 0.0
        %1727 = vmatpush2.msra.mxu0 0.0
        %1728 = vmatprep.subr.mxu0 0.0
        %1729 = vmatpush2.msra.mxu0 0.0
        %1730 = vmatprep.subr.mxu0 0.0
        %1731 = vmatpush2.msra.mxu0 0.0
        %1732 = vmatprep.subr.mxu0 0.0
        %1733 = vmatpush2.msra.mxu0 0.0
        %1734 = vmatprep.subr.mxu0 0.0
        %1735 = vmatpush2.msra.mxu0 0.0
        %1736 = vmatprep.subr.mxu0 0.0
        %1737 = vmatpush2.msra.mxu0 0.0
        %1738 = vmatprep.subr.mxu0 0.0
        %1739 = vmatpush2.msra.mxu0 0.0
        %1740 = vmatprep.mubr.f32.mxu0 0.0
        %v1741 = vand.u32 %v1140, 4294901760
        %1742 = vmatmul.mubr.f32.gmra.mxu0 %v1741
        %v1743 = vpop.f32.mrf.mxu0
        %v1744 = vadd.f32 %v1621, %v1743
        %v1745 = vpop.f32.mrf.mxu0
        %v1746 = vadd.f32 %v1623, %v1745
        %1747 = vmatprep.mubr.f32.mxu0 0.0
        %v1748 = vand.u32 %v1143, 4294901760
        %1749 = vmatmul.mubr.f32.gmra.mxu0 %v1748
        %v1750 = vpop.f32.mrf.mxu0
        %v1751 = vadd.f32 %v1630, %v1750
        %v1752 = vpop.f32.mrf.mxu0
        %v1753 = vadd.f32 %v1632, %v1752
        %1754 = vmatprep.mubr.f32.mxu0 0.0
        %v1755 = vand.u32 %v1146, 4294901760
        %1756 = vmatmul.mubr.f32.gmra.mxu0 %v1755
        %v1757 = vpop.f32.mrf.mxu0
        %v1758 = vadd.f32 %v1639, %v1757
        %v1759 = vpop.f32.mrf.mxu0
        %v1760 = vadd.f32 %v1641, %v1759
        %1761 = vmatprep.mubr.f32.mxu0 0.0
        %v1762 = vand.u32 %v1149, 4294901760
        %1763 = vmatmul.mubr.f32.gmra.mxu0 %v1762
        %v1764 = vpop.f32.mrf.mxu0
        %v1765 = vadd.f32 %v1648, %v1764
        %v1766 = vpop.f32.mrf.mxu0
        %v1767 = vadd.f32 %v1650, %v1766
        %1768 = vmatprep.mubr.f32.mxu0 0.0
        %v1769 = vand.u32 %v1152, 4294901760
        %1770 = vmatmul.mubr.f32.gmra.mxu0 %v1769
        %v1771 = vpop.f32.mrf.mxu0
        %v1772 = vadd.f32 %v1657, %v1771
        %v1773 = vpop.f32.mrf.mxu0
        %v1774 = vadd.f32 %v1659, %v1773
        %1775 = vmatprep.mubr.f32.mxu0 0.0
        %v1776 = vand.u32 %v1155, 4294901760
        %1777 = vmatmul.mubr.f32.gmra.mxu0 %v1776
        %v1778 = vpop.f32.mrf.mxu0
        %v1779 = vadd.f32 %v1666, %v1778
        %v1780 = vpop.f32.mrf.mxu0
        %v1781 = vadd.f32 %v1668, %v1780
        %1782 = vdwg.mxu0
        %1783 = vmatprep.subr.mxu0 0.0
        %1784 = vmatpush1.msra.mxu0 0.0
        %1785 = vmatprep.subr.mxu0 0.0
        %1786 = vmatpush1.msra.mxu0 0.0
        %1787 = vmatprep.subr.mxu0 0.0
        %1788 = vmatpush1.msra.mxu0 0.0
        %1789 = vmatprep.subr.mxu0 0.0
        %1790 = vmatpush1.msra.mxu0 0.0
        %1791 = vmatprep.subr.mxu0 0.0
        %1792 = vmatpush1.msra.mxu0 0.0
        %1793 = vmatprep.subr.mxu0 0.0
        %1794 = vmatpush1.msra.mxu0 0.0
        %1795 = vmatprep.subr.mxu0 0.0
        %1796 = vmatpush1.msra.mxu0 0.0
        %1797 = vmatprep.subr.mxu0 0.0
        %1798 = vmatpush1.msra.mxu0 0.0
        %1799 = vmatprep.subr.mxu0 0.0
        %1800 = vmatpush1.msra.mxu0 0.0
        %1801 = vmatprep.subr.mxu0 0.0
        %1802 = vmatpush1.msra.mxu0 0.0
        %1803 = vmatprep.subr.mxu0 0.0
        %1804 = vmatpush1.msra.mxu0 0.0
        %1805 = vmatprep.subr.mxu0 0.0
        %1806 = vmatpush1.msra.mxu0 0.0
        %1807 = vmatprep.subr.mxu0 0.0
        %1808 = vmatpush1.msra.mxu0 0.0
        %1809 = vmatprep.subr.mxu0 0.0
        %1810 = vmatpush1.msra.mxu0 0.0
        %1811 = vmatprep.subr.mxu0 0.0
        %1812 = vmatpush1.msra.mxu0 0.0
        %v1813 = vand.u32 %v1162, 4294901760
        %1814 = vmatprep.subr.mxu0 %v1813
        %v1815 = vand.u32 %v1159, 4294901760
        %1816 = vmatpush1.msra.mxu0 %v1815
        %1817 = vmatprep.subr.mxu0 0.0
        %1818 = vmatpush2.msra.mxu0 0.0
        %1819 = vmatprep.subr.mxu0 0.0
        %1820 = vmatpush2.msra.mxu0 0.0
        %1821 = vmatprep.subr.mxu0 0.0
        %1822 = vmatpush2.msra.mxu0 0.0
        %1823 = vmatprep.subr.mxu0 0.0
        %1824 = vmatpush2.msra.mxu0 0.0
        %1825 = vmatprep.subr.mxu0 0.0
        %1826 = vmatpush2.msra.mxu0 0.0
        %1827 = vmatprep.subr.mxu0 0.0
        %1828 = vmatpush2.msra.mxu0 0.0
        %1829 = vmatprep.subr.mxu0 0.0
        %1830 = vmatpush2.msra.mxu0 0.0
        %1831 = vmatprep.subr.mxu0 0.0
        %1832 = vmatpush2.msra.mxu0 0.0
        %1833 = vmatprep.subr.mxu0 0.0
        %1834 = vmatpush2.msra.mxu0 0.0
        %1835 = vmatprep.subr.mxu0 0.0
        %1836 = vmatpush2.msra.mxu0 0.0
        %1837 = vmatprep.subr.mxu0 0.0
        %1838 = vmatpush2.msra.mxu0 0.0
        %1839 = vmatprep.subr.mxu0 0.0
        %1840 = vmatpush2.msra.mxu0 0.0
        %1841 = vmatprep.subr.mxu0 0.0
        %1842 = vmatpush2.msra.mxu0 0.0
        %1843 = vmatprep.subr.mxu0 0.0
        %1844 = vmatpush2.msra.mxu0 0.0
        %1845 = vmatprep.subr.mxu0 0.0
        %1846 = vmatpush2.msra.mxu0 0.0
        %1847 = vmatprep.subr.mxu0 0.0
        %1848 = vmatpush2.msra.mxu0 0.0
        %1849 = vmatprep.mubr.f32.mxu0 0.0
        %v1850 = vand.u32 %v1140, 4294901760
        %1851 = vmatmul.mubr.f32.gmra.mxu0 %v1850
        %v1852 = vpop.f32.mrf.mxu0
        %v1853 = vadd.f32 %v1744, %v1852
        %v1854 = vpop.f32.mrf.mxu0
        %v1855 = vadd.f32 %v1746, %v1854
        %1856 = vmatprep.mubr.f32.mxu0 0.0
        %v1857 = vand.u32 %v1143, 4294901760
        %1858 = vmatmul.mubr.f32.gmra.mxu0 %v1857
        %v1859 = vpop.f32.mrf.mxu0
        %v1860 = vadd.f32 %v1751, %v1859
        %v1861 = vpop.f32.mrf.mxu0
        %v1862 = vadd.f32 %v1753, %v1861
        %1863 = vmatprep.mubr.f32.mxu0 0.0
        %v1864 = vand.u32 %v1146, 4294901760
        %1865 = vmatmul.mubr.f32.gmra.mxu0 %v1864
        %v1866 = vpop.f32.mrf.mxu0
        %v1867 = vadd.f32 %v1758, %v1866
        %v1868 = vpop.f32.mrf.mxu0
        %v1869 = vadd.f32 %v1760, %v1868
        %1870 = vmatprep.mubr.f32.mxu0 0.0
        %v1871 = vand.u32 %v1149, 4294901760
        %1872 = vmatmul.mubr.f32.gmra.mxu0 %v1871
        %v1873 = vpop.f32.mrf.mxu0
        %v1874 = vadd.f32 %v1765, %v1873
        %v1875 = vpop.f32.mrf.mxu0
        %v1876 = vadd.f32 %v1767, %v1875
        %1877 = vmatprep.mubr.f32.mxu0 0.0
        %v1878 = vand.u32 %v1152, 4294901760
        %1879 = vmatmul.mubr.f32.gmra.mxu0 %v1878
        %v1880 = vpop.f32.mrf.mxu0
        %v1881 = vadd.f32 %v1772, %v1880
        %v1882 = vpop.f32.mrf.mxu0
        %v1883 = vadd.f32 %v1774, %v1882
        %1884 = vmatprep.mubr.f32.mxu0 0.0
        %v1885 = vand.u32 %v1155, 4294901760
        %1886 = vmatmul.mubr.f32.gmra.mxu0 %v1885
        %v1887 = vpop.f32.mrf.mxu0
        %v1888 = vadd.f32 %v1779, %v1887
        %v1889 = vpop.f32.mrf.mxu0
        %v1890 = vadd.f32 %v1781, %v1889
        %1891 = vdwg.mxu0
        %1892 = vmatprep.subr.mxu0 0.0
        %1893 = vmatpush1.msra.mxu0 0.0
        %1894 = vmatprep.subr.mxu0 0.0
        %1895 = vmatpush1.msra.mxu0 0.0
        %1896 = vmatprep.subr.mxu0 0.0
        %1897 = vmatpush1.msra.mxu0 0.0
        %1898 = vmatprep.subr.mxu0 0.0
        %1899 = vmatpush1.msra.mxu0 0.0
        %1900 = vmatprep.subr.mxu0 0.0
        %1901 = vmatpush1.msra.mxu0 0.0
        %1902 = vmatprep.subr.mxu0 0.0
        %1903 = vmatpush1.msra.mxu0 0.0
        %1904 = vmatprep.subr.mxu0 0.0
        %1905 = vmatpush1.msra.mxu0 0.0
        %1906 = vmatprep.subr.mxu0 0.0
        %1907 = vmatpush1.msra.mxu0 0.0
        %1908 = vmatprep.subr.mxu0 0.0
        %1909 = vmatpush1.msra.mxu0 0.0
        %1910 = vmatprep.subr.mxu0 0.0
        %1911 = vmatpush1.msra.mxu0 0.0
        %1912 = vmatprep.subr.mxu0 0.0
        %1913 = vmatpush1.msra.mxu0 0.0
        %1914 = vmatprep.subr.mxu0 0.0
        %1915 = vmatpush1.msra.mxu0 0.0
        %1916 = vmatprep.subr.mxu0 0.0
        %1917 = vmatpush1.msra.mxu0 0.0
        %1918 = vmatprep.subr.mxu0 0.0
        %1919 = vmatpush1.msra.mxu0 0.0
        %1920 = vmatprep.subr.mxu0 0.0
        %1921 = vmatpush1.msra.mxu0 0.0
        %v1922 = vand.u32 %v1168, 4294901760
        %1923 = vmatprep.subr.mxu0 %v1922
        %v1924 = vand.u32 %v1165, 4294901760
        %1925 = vmatpush1.msra.mxu0 %v1924
        %1926 = vmatprep.subr.mxu0 0.0
        %1927 = vmatpush2.msra.mxu0 0.0
        %1928 = vmatprep.subr.mxu0 0.0
        %1929 = vmatpush2.msra.mxu0 0.0
        %1930 = vmatprep.subr.mxu0 0.0
        %1931 = vmatpush2.msra.mxu0 0.0
        %1932 = vmatprep.subr.mxu0 0.0
        %1933 = vmatpush2.msra.mxu0 0.0
        %1934 = vmatprep.subr.mxu0 0.0
        %1935 = vmatpush2.msra.mxu0 0.0
        %1936 = vmatprep.subr.mxu0 0.0
        %1937 = vmatpush2.msra.mxu0 0.0
        %1938 = vmatprep.subr.mxu0 0.0
        %1939 = vmatpush2.msra.mxu0 0.0
        %1940 = vmatprep.subr.mxu0 0.0
        %1941 = vmatpush2.msra.mxu0 0.0
        %1942 = vmatprep.subr.mxu0 0.0
        %1943 = vmatpush2.msra.mxu0 0.0
        %1944 = vmatprep.subr.mxu0 0.0
        %1945 = vmatpush2.msra.mxu0 0.0
        %1946 = vmatprep.subr.mxu0 0.0
        %1947 = vmatpush2.msra.mxu0 0.0
        %1948 = vmatprep.subr.mxu0 0.0
        %1949 = vmatpush2.msra.mxu0 0.0
        %1950 = vmatprep.subr.mxu0 0.0
        %1951 = vmatpush2.msra.mxu0 0.0
        %1952 = vmatprep.subr.mxu0 0.0
        %1953 = vmatpush2.msra.mxu0 0.0
        %1954 = vmatprep.subr.mxu0 0.0
        %1955 = vmatpush2.msra.mxu0 0.0
        %1956 = vmatprep.subr.mxu0 0.0
        %1957 = vmatpush2.msra.mxu0 0.0
        %1958 = vmatprep.mubr.f32.mxu0 0.0
        %v1959 = vand.u32 %v1140, 4294901760
        %v1960 = vsub.f32 %v1140, %v1959
        %v1961 = vand.u32 %v1960, 4294901760
        %v1962 = vsub.f32 %v1960, %v1961
        %v1963 = vand.u32 %v1962, 4294901760
        %1964 = vmatmul.mubr.f32.gmra.mxu0 %v1963
        %v1965 = vpop.f32.mrf.mxu0
        %v1966 = vadd.f32 0.0, %v1965
        %v1967 = vpop.f32.mrf.mxu0
        %v1968 = vadd.f32 0.0, %v1967
        %1969 = vmatprep.mubr.f32.mxu0 0.0
        %v1970 = vand.u32 %v1143, 4294901760
        %v1971 = vsub.f32 %v1143, %v1970
        %v1972 = vand.u32 %v1971, 4294901760
        %v1973 = vsub.f32 %v1971, %v1972
        %v1974 = vand.u32 %v1973, 4294901760
        %1975 = vmatmul.mubr.f32.gmra.mxu0 %v1974
        %v1976 = vpop.f32.mrf.mxu0
        %v1977 = vadd.f32 0.0, %v1976
        %v1978 = vpop.f32.mrf.mxu0
        %v1979 = vadd.f32 0.0, %v1978
        %1980 = vmatprep.mubr.f32.mxu0 0.0
        %v1981 = vand.u32 %v1146, 4294901760
        %v1982 = vsub.f32 %v1146, %v1981
        %v1983 = vand.u32 %v1982, 4294901760
        %v1984 = vsub.f32 %v1982, %v1983
        %v1985 = vand.u32 %v1984, 4294901760
        %1986 = vmatmul.mubr.f32.gmra.mxu0 %v1985
        %v1987 = vpop.f32.mrf.mxu0
        %v1988 = vadd.f32 0.0, %v1987
        %v1989 = vpop.f32.mrf.mxu0
        %v1990 = vadd.f32 0.0, %v1989
        %1991 = vmatprep.mubr.f32.mxu0 0.0
        %v1992 = vand.u32 %v1149, 4294901760
        %v1993 = vsub.f32 %v1149, %v1992
        %v1994 = vand.u32 %v1993, 4294901760
        %v1995 = vsub.f32 %v1993, %v1994
        %v1996 = vand.u32 %v1995, 4294901760
        %1997 = vmatmul.mubr.f32.gmra.mxu0 %v1996
        %v1998 = vpop.f32.mrf.mxu0
        %v1999 = vadd.f32 0.0, %v1998
        %v2000 = vpop.f32.mrf.mxu0
        %v2001 = vadd.f32 0.0, %v2000
        %2002 = vmatprep.mubr.f32.mxu0 0.0
        %v2003 = vand.u32 %v1152, 4294901760
        %v2004 = vsub.f32 %v1152, %v2003
        %v2005 = vand.u32 %v2004, 4294901760
        %v2006 = vsub.f32 %v2004, %v2005
        %v2007 = vand.u32 %v2006, 4294901760
        %2008 = vmatmul.mubr.f32.gmra.mxu0 %v2007
        %v2009 = vpop.f32.mrf.mxu0
        %v2010 = vadd.f32 0.0, %v2009
        %v2011 = vpop.f32.mrf.mxu0
        %v2012 = vadd.f32 0.0, %v2011
        %2013 = vmatprep.mubr.f32.mxu0 0.0
        %v2014 = vand.u32 %v1155, 4294901760
        %v2015 = vsub.f32 %v1155, %v2014
        %v2016 = vand.u32 %v2015, 4294901760
        %v2017 = vsub.f32 %v2015, %v2016
        %v2018 = vand.u32 %v2017, 4294901760
        %2019 = vmatmul.mubr.f32.gmra.mxu0 %v2018
        %v2020 = vpop.f32.mrf.mxu0
        %v2021 = vadd.f32 0.0, %v2020
        %v2022 = vpop.f32.mrf.mxu0
        %v2023 = vadd.f32 0.0, %v2022
        %2024 = vdwg.mxu0
        %2025 = vmatprep.subr.mxu0 0.0
        %2026 = vmatpush1.msra.mxu0 0.0
        %2027 = vmatprep.subr.mxu0 0.0
        %2028 = vmatpush1.msra.mxu0 0.0
        %2029 = vmatprep.subr.mxu0 0.0
        %2030 = vmatpush1.msra.mxu0 0.0
        %2031 = vmatprep.subr.mxu0 0.0
        %2032 = vmatpush1.msra.mxu0 0.0
        %2033 = vmatprep.subr.mxu0 0.0
        %2034 = vmatpush1.msra.mxu0 0.0
        %2035 = vmatprep.subr.mxu0 0.0
        %2036 = vmatpush1.msra.mxu0 0.0
        %2037 = vmatprep.subr.mxu0 0.0
        %2038 = vmatpush1.msra.mxu0 0.0
        %2039 = vmatprep.subr.mxu0 0.0
        %2040 = vmatpush1.msra.mxu0 0.0
        %2041 = vmatprep.subr.mxu0 0.0
        %2042 = vmatpush1.msra.mxu0 0.0
        %2043 = vmatprep.subr.mxu0 0.0
        %2044 = vmatpush1.msra.mxu0 0.0
        %2045 = vmatprep.subr.mxu0 0.0
        %2046 = vmatpush1.msra.mxu0 0.0
        %2047 = vmatprep.subr.mxu0 0.0
        %2048 = vmatpush1.msra.mxu0 0.0
        %2049 = vmatprep.subr.mxu0 0.0
        %2050 = vmatpush1.msra.mxu0 0.0
        %2051 = vmatprep.subr.mxu0 0.0
        %2052 = vmatpush1.msra.mxu0 0.0
        %2053 = vmatprep.subr.mxu0 0.0
        %2054 = vmatpush1.msra.mxu0 0.0
        %v2055 = vand.u32 %v1168, 4294901760
        %v2056 = vsub.f32 %v1168, %v2055
        %v2057 = vand.u32 %v2056, 4294901760
        %v2058 = vsub.f32 %v2056, %v2057
        %v2059 = vand.u32 %v2058, 4294901760
        %2060 = vmatprep.subr.mxu0 %v2059
        %v2061 = vand.u32 %v1165, 4294901760
        %v2062 = vsub.f32 %v1165, %v2061
        %v2063 = vand.u32 %v2062, 4294901760
        %v2064 = vsub.f32 %v2062, %v2063
        %v2065 = vand.u32 %v2064, 4294901760
        %2066 = vmatpush1.msra.mxu0 %v2065
        %2067 = vmatprep.subr.mxu0 0.0
        %2068 = vmatpush2.msra.mxu0 0.0
        %2069 = vmatprep.subr.mxu0 0.0
        %2070 = vmatpush2.msra.mxu0 0.0
        %2071 = vmatprep.subr.mxu0 0.0
        %2072 = vmatpush2.msra.mxu0 0.0
        %2073 = vmatprep.subr.mxu0 0.0
        %2074 = vmatpush2.msra.mxu0 0.0
        %2075 = vmatprep.subr.mxu0 0.0
        %2076 = vmatpush2.msra.mxu0 0.0
        %2077 = vmatprep.subr.mxu0 0.0
        %2078 = vmatpush2.msra.mxu0 0.0
        %2079 = vmatprep.subr.mxu0 0.0
        %2080 = vmatpush2.msra.mxu0 0.0
        %2081 = vmatprep.subr.mxu0 0.0
        %2082 = vmatpush2.msra.mxu0 0.0
        %2083 = vmatprep.subr.mxu0 0.0
        %2084 = vmatpush2.msra.mxu0 0.0
        %2085 = vmatprep.subr.mxu0 0.0
        %2086 = vmatpush2.msra.mxu0 0.0
        %2087 = vmatprep.subr.mxu0 0.0
        %2088 = vmatpush2.msra.mxu0 0.0
        %2089 = vmatprep.subr.mxu0 0.0
        %2090 = vmatpush2.msra.mxu0 0.0
        %2091 = vmatprep.subr.mxu0 0.0
        %2092 = vmatpush2.msra.mxu0 0.0
        %2093 = vmatprep.subr.mxu0 0.0
        %2094 = vmatpush2.msra.mxu0 0.0
        %2095 = vmatprep.subr.mxu0 0.0
        %2096 = vmatpush2.msra.mxu0 0.0
        %2097 = vmatprep.subr.mxu0 0.0
        %2098 = vmatpush2.msra.mxu0 0.0
        %2099 = vmatprep.mubr.f32.mxu0 0.0
        %v2100 = vand.u32 %v1140, 4294901760
        %2101 = vmatmul.mubr.f32.gmra.mxu0 %v2100
        %v2102 = vpop.f32.mrf.mxu0
        %v2103 = vadd.f32 %v1966, %v2102
        %v2104 = vpop.f32.mrf.mxu0
        %v2105 = vadd.f32 %v1968, %v2104
        %2106 = vmatprep.mubr.f32.mxu0 0.0
        %v2107 = vand.u32 %v1143, 4294901760
        %2108 = vmatmul.mubr.f32.gmra.mxu0 %v2107
        %v2109 = vpop.f32.mrf.mxu0
        %v2110 = vadd.f32 %v1977, %v2109
        %v2111 = vpop.f32.mrf.mxu0
        %v2112 = vadd.f32 %v1979, %v2111
        %2113 = vmatprep.mubr.f32.mxu0 0.0
        %v2114 = vand.u32 %v1146, 4294901760
        %2115 = vmatmul.mubr.f32.gmra.mxu0 %v2114
        %v2116 = vpop.f32.mrf.mxu0
        %v2117 = vadd.f32 %v1988, %v2116
        %v2118 = vpop.f32.mrf.mxu0
        %v2119 = vadd.f32 %v1990, %v2118
        %2120 = vmatprep.mubr.f32.mxu0 0.0
        %v2121 = vand.u32 %v1149, 4294901760
        %2122 = vmatmul.mubr.f32.gmra.mxu0 %v2121
        %v2123 = vpop.f32.mrf.mxu0
        %v2124 = vadd.f32 %v1999, %v2123
        %v2125 = vpop.f32.mrf.mxu0
        %v2126 = vadd.f32 %v2001, %v2125
        %2127 = vmatprep.mubr.f32.mxu0 0.0
        %v2128 = vand.u32 %v1152, 4294901760
        %2129 = vmatmul.mubr.f32.gmra.mxu0 %v2128
        %v2130 = vpop.f32.mrf.mxu0
        %v2131 = vadd.f32 %v2010, %v2130
        %v2132 = vpop.f32.mrf.mxu0
        %v2133 = vadd.f32 %v2012, %v2132
        %2134 = vmatprep.mubr.f32.mxu0 0.0
        %v2135 = vand.u32 %v1155, 4294901760
        %2136 = vmatmul.mubr.f32.gmra.mxu0 %v2135
        %v2137 = vpop.f32.mrf.mxu0
        %v2138 = vadd.f32 %v2021, %v2137
        %v2139 = vpop.f32.mrf.mxu0
        %v2140 = vadd.f32 %v2023, %v2139
        %2141 = vdwg.mxu0
        %2142 = vmatprep.subr.mxu0 0.0
        %2143 = vmatpush1.msra.mxu0 0.0
        %2144 = vmatprep.subr.mxu0 0.0
        %2145 = vmatpush1.msra.mxu0 0.0
        %2146 = vmatprep.subr.mxu0 0.0
        %2147 = vmatpush1.msra.mxu0 0.0
        %2148 = vmatprep.subr.mxu0 0.0
        %2149 = vmatpush1.msra.mxu0 0.0
        %2150 = vmatprep.subr.mxu0 0.0
        %2151 = vmatpush1.msra.mxu0 0.0
        %2152 = vmatprep.subr.mxu0 0.0
        %2153 = vmatpush1.msra.mxu0 0.0
        %2154 = vmatprep.subr.mxu0 0.0
        %2155 = vmatpush1.msra.mxu0 0.0
        %2156 = vmatprep.subr.mxu0 0.0
        %2157 = vmatpush1.msra.mxu0 0.0
        %2158 = vmatprep.subr.mxu0 0.0
        %2159 = vmatpush1.msra.mxu0 0.0
        %2160 = vmatprep.subr.mxu0 0.0
        %2161 = vmatpush1.msra.mxu0 0.0
        %2162 = vmatprep.subr.mxu0 0.0
        %2163 = vmatpush1.msra.mxu0 0.0
        %2164 = vmatprep.subr.mxu0 0.0
        %2165 = vmatpush1.msra.mxu0 0.0
        %2166 = vmatprep.subr.mxu0 0.0
        %2167 = vmatpush1.msra.mxu0 0.0
        %2168 = vmatprep.subr.mxu0 0.0
        %2169 = vmatpush1.msra.mxu0 0.0
        %2170 = vmatprep.subr.mxu0 0.0
        %2171 = vmatpush1.msra.mxu0 0.0
        %v2172 = vand.u32 %v1168, 4294901760
        %v2173 = vsub.f32 %v1168, %v2172
        %2174 = vmatprep.subr.mxu0 %v2173
        %v2175 = vand.u32 %v1165, 4294901760
        %v2176 = vsub.f32 %v1165, %v2175
        %2177 = vmatpush1.msra.mxu0 %v2176
        %2178 = vmatprep.subr.mxu0 0.0
        %2179 = vmatpush2.msra.mxu0 0.0
        %2180 = vmatprep.subr.mxu0 0.0
        %2181 = vmatpush2.msra.mxu0 0.0
        %2182 = vmatprep.subr.mxu0 0.0
        %2183 = vmatpush2.msra.mxu0 0.0
        %2184 = vmatprep.subr.mxu0 0.0
        %2185 = vmatpush2.msra.mxu0 0.0
        %2186 = vmatprep.subr.mxu0 0.0
        %2187 = vmatpush2.msra.mxu0 0.0
        %2188 = vmatprep.subr.mxu0 0.0
        %2189 = vmatpush2.msra.mxu0 0.0
        %2190 = vmatprep.subr.mxu0 0.0
        %2191 = vmatpush2.msra.mxu0 0.0
        %2192 = vmatprep.subr.mxu0 0.0
        %2193 = vmatpush2.msra.mxu0 0.0
        %2194 = vmatprep.subr.mxu0 0.0
        %2195 = vmatpush2.msra.mxu0 0.0
        %2196 = vmatprep.subr.mxu0 0.0
        %2197 = vmatpush2.msra.mxu0 0.0
        %2198 = vmatprep.subr.mxu0 0.0
        %2199 = vmatpush2.msra.mxu0 0.0
        %2200 = vmatprep.subr.mxu0 0.0
        %2201 = vmatpush2.msra.mxu0 0.0
        %2202 = vmatprep.subr.mxu0 0.0
        %2203 = vmatpush2.msra.mxu0 0.0
        %2204 = vmatprep.subr.mxu0 0.0
        %2205 = vmatpush2.msra.mxu0 0.0
        %2206 = vmatprep.subr.mxu0 0.0
        %2207 = vmatpush2.msra.mxu0 0.0
        %2208 = vmatprep.subr.mxu0 0.0
        %2209 = vmatpush2.msra.mxu0 0.0
        %2210 = vmatprep.mubr.f32.mxu0 0.0
        %v2211 = vand.u32 %v1140, 4294901760
        %v2212 = vsub.f32 %v1140, %v2211
        %2213 = vmatmul.mubr.f32.gmra.mxu0 %v2212
        %v2214 = vpop.f32.mrf.mxu0
        %v2215 = vadd.f32 %v2103, %v2214
        %v2216 = vpop.f32.mrf.mxu0
        %v2217 = vadd.f32 %v2105, %v2216
        %2218 = vmatprep.mubr.f32.mxu0 0.0
        %v2219 = vand.u32 %v1143, 4294901760
        %v2220 = vsub.f32 %v1143, %v2219
        %2221 = vmatmul.mubr.f32.gmra.mxu0 %v2220
        %v2222 = vpop.f32.mrf.mxu0
        %v2223 = vadd.f32 %v2110, %v2222
        %v2224 = vpop.f32.mrf.mxu0
        %v2225 = vadd.f32 %v2112, %v2224
        %2226 = vmatprep.mubr.f32.mxu0 0.0
        %v2227 = vand.u32 %v1146, 4294901760
        %v2228 = vsub.f32 %v1146, %v2227
        %2229 = vmatmul.mubr.f32.gmra.mxu0 %v2228
        %v2230 = vpop.f32.mrf.mxu0
        %v2231 = vadd.f32 %v2117, %v2230
        %v2232 = vpop.f32.mrf.mxu0
        %v2233 = vadd.f32 %v2119, %v2232
        %2234 = vmatprep.mubr.f32.mxu0 0.0
        %v2235 = vand.u32 %v1149, 4294901760
        %v2236 = vsub.f32 %v1149, %v2235
        %2237 = vmatmul.mubr.f32.gmra.mxu0 %v2236
        %v2238 = vpop.f32.mrf.mxu0
        %v2239 = vadd.f32 %v2124, %v2238
        %v2240 = vpop.f32.mrf.mxu0
        %v2241 = vadd.f32 %v2126, %v2240
        %2242 = vmatprep.mubr.f32.mxu0 0.0
        %v2243 = vand.u32 %v1152, 4294901760
        %v2244 = vsub.f32 %v1152, %v2243
        %2245 = vmatmul.mubr.f32.gmra.mxu0 %v2244
        %v2246 = vpop.f32.mrf.mxu0
        %v2247 = vadd.f32 %v2131, %v2246
        %v2248 = vpop.f32.mrf.mxu0
        %v2249 = vadd.f32 %v2133, %v2248
        %2250 = vmatprep.mubr.f32.mxu0 0.0
        %v2251 = vand.u32 %v1155, 4294901760
        %v2252 = vsub.f32 %v1155, %v2251
        %2253 = vmatmul.mubr.f32.gmra.mxu0 %v2252
        %v2254 = vpop.f32.mrf.mxu0
        %v2255 = vadd.f32 %v2138, %v2254
        %v2256 = vpop.f32.mrf.mxu0
        %v2257 = vadd.f32 %v2140, %v2256
        %2258 = vdwg.mxu0
        %2259 = vmatprep.subr.mxu0 0.0
        %2260 = vmatpush1.msra.mxu0 0.0
        %2261 = vmatprep.subr.mxu0 0.0
        %2262 = vmatpush1.msra.mxu0 0.0
        %2263 = vmatprep.subr.mxu0 0.0
        %2264 = vmatpush1.msra.mxu0 0.0
        %2265 = vmatprep.subr.mxu0 0.0
        %2266 = vmatpush1.msra.mxu0 0.0
        %2267 = vmatprep.subr.mxu0 0.0
        %2268 = vmatpush1.msra.mxu0 0.0
        %2269 = vmatprep.subr.mxu0 0.0
        %2270 = vmatpush1.msra.mxu0 0.0
        %2271 = vmatprep.subr.mxu0 0.0
        %2272 = vmatpush1.msra.mxu0 0.0
        %2273 = vmatprep.subr.mxu0 0.0
        %2274 = vmatpush1.msra.mxu0 0.0
        %2275 = vmatprep.subr.mxu0 0.0
        %2276 = vmatpush1.msra.mxu0 0.0
        %2277 = vmatprep.subr.mxu0 0.0
        %2278 = vmatpush1.msra.mxu0 0.0
        %2279 = vmatprep.subr.mxu0 0.0
        %2280 = vmatpush1.msra.mxu0 0.0
        %2281 = vmatprep.subr.mxu0 0.0
        %2282 = vmatpush1.msra.mxu0 0.0
        %2283 = vmatprep.subr.mxu0 0.0
        %2284 = vmatpush1.msra.mxu0 0.0
        %2285 = vmatprep.subr.mxu0 0.0
        %2286 = vmatpush1.msra.mxu0 0.0
        %2287 = vmatprep.subr.mxu0 0.0
        %2288 = vmatpush1.msra.mxu0 0.0
        %v2289 = vand.u32 %v1168, 4294901760
        %2290 = vmatprep.subr.mxu0 %v2289
        %v2291 = vand.u32 %v1165, 4294901760
        %2292 = vmatpush1.msra.mxu0 %v2291
        %2293 = vmatprep.subr.mxu0 0.0
        %2294 = vmatpush2.msra.mxu0 0.0
        %2295 = vmatprep.subr.mxu0 0.0
        %2296 = vmatpush2.msra.mxu0 0.0
        %2297 = vmatprep.subr.mxu0 0.0
        %2298 = vmatpush2.msra.mxu0 0.0
        %2299 = vmatprep.subr.mxu0 0.0
        %2300 = vmatpush2.msra.mxu0 0.0
        %2301 = vmatprep.subr.mxu0 0.0
        %2302 = vmatpush2.msra.mxu0 0.0
        %2303 = vmatprep.subr.mxu0 0.0
        %2304 = vmatpush2.msra.mxu0 0.0
        %2305 = vmatprep.subr.mxu0 0.0
        %2306 = vmatpush2.msra.mxu0 0.0
        %2307 = vmatprep.subr.mxu0 0.0
        %2308 = vmatpush2.msra.mxu0 0.0
        %2309 = vmatprep.subr.mxu0 0.0
        %2310 = vmatpush2.msra.mxu0 0.0
        %2311 = vmatprep.subr.mxu0 0.0
        %2312 = vmatpush2.msra.mxu0 0.0
        %2313 = vmatprep.subr.mxu0 0.0
        %2314 = vmatpush2.msra.mxu0 0.0
        %2315 = vmatprep.subr.mxu0 0.0
        %2316 = vmatpush2.msra.mxu0 0.0
        %2317 = vmatprep.subr.mxu0 0.0
        %2318 = vmatpush2.msra.mxu0 0.0
        %2319 = vmatprep.subr.mxu0 0.0
        %2320 = vmatpush2.msra.mxu0 0.0
        %2321 = vmatprep.subr.mxu0 0.0
        %2322 = vmatpush2.msra.mxu0 0.0
        %2323 = vmatprep.subr.mxu0 0.0
        %2324 = vmatpush2.msra.mxu0 0.0
        %2325 = vmatprep.mubr.f32.mxu0 0.0
        %v2326 = vand.u32 %v1140, 4294901760
        %v2327 = vsub.f32 %v1140, %v2326
        %v2328 = vand.u32 %v2327, 4294901760
        %2329 = vmatmul.mubr.f32.gmra.mxu0 %v2328
        %v2330 = vpop.f32.mrf.mxu0
        %v2331 = vadd.f32 %v2215, %v2330
        %v2332 = vpop.f32.mrf.mxu0
        %v2333 = vadd.f32 %v2217, %v2332
        %2334 = vmatprep.mubr.f32.mxu0 0.0
        %v2335 = vand.u32 %v1143, 4294901760
        %v2336 = vsub.f32 %v1143, %v2335
        %v2337 = vand.u32 %v2336, 4294901760
        %2338 = vmatmul.mubr.f32.gmra.mxu0 %v2337
        %v2339 = vpop.f32.mrf.mxu0
        %v2340 = vadd.f32 %v2223, %v2339
        %v2341 = vpop.f32.mrf.mxu0
        %v2342 = vadd.f32 %v2225, %v2341
        %2343 = vmatprep.mubr.f32.mxu0 0.0
        %v2344 = vand.u32 %v1146, 4294901760
        %v2345 = vsub.f32 %v1146, %v2344
        %v2346 = vand.u32 %v2345, 4294901760
        %2347 = vmatmul.mubr.f32.gmra.mxu0 %v2346
        %v2348 = vpop.f32.mrf.mxu0
        %v2349 = vadd.f32 %v2231, %v2348
        %v2350 = vpop.f32.mrf.mxu0
        %v2351 = vadd.f32 %v2233, %v2350
        %2352 = vmatprep.mubr.f32.mxu0 0.0
        %v2353 = vand.u32 %v1149, 4294901760
        %v2354 = vsub.f32 %v1149, %v2353
        %v2355 = vand.u32 %v2354, 4294901760
        %2356 = vmatmul.mubr.f32.gmra.mxu0 %v2355
        %v2357 = vpop.f32.mrf.mxu0
        %v2358 = vadd.f32 %v2239, %v2357
        %v2359 = vpop.f32.mrf.mxu0
        %v2360 = vadd.f32 %v2241, %v2359
        %2361 = vmatprep.mubr.f32.mxu0 0.0
        %v2362 = vand.u32 %v1152, 4294901760
        %v2363 = vsub.f32 %v1152, %v2362
        %v2364 = vand.u32 %v2363, 4294901760
        %2365 = vmatmul.mubr.f32.gmra.mxu0 %v2364
        %v2366 = vpop.f32.mrf.mxu0
        %v2367 = vadd.f32 %v2247, %v2366
        %v2368 = vpop.f32.mrf.mxu0
        %v2369 = vadd.f32 %v2249, %v2368
        %2370 = vmatprep.mubr.f32.mxu0 0.0
        %v2371 = vand.u32 %v1155, 4294901760
        %v2372 = vsub.f32 %v1155, %v2371
        %v2373 = vand.u32 %v2372, 4294901760
        %2374 = vmatmul.mubr.f32.gmra.mxu0 %v2373
        %v2375 = vpop.f32.mrf.mxu0
        %v2376 = vadd.f32 %v2255, %v2375
        %v2377 = vpop.f32.mrf.mxu0
        %v2378 = vadd.f32 %v2257, %v2377
        %2379 = vdwg.mxu0
        %2380 = vmatprep.subr.mxu0 0.0
        %2381 = vmatpush1.msra.mxu0 0.0
        %2382 = vmatprep.subr.mxu0 0.0
        %2383 = vmatpush1.msra.mxu0 0.0
        %2384 = vmatprep.subr.mxu0 0.0
        %2385 = vmatpush1.msra.mxu0 0.0
        %2386 = vmatprep.subr.mxu0 0.0
        %2387 = vmatpush1.msra.mxu0 0.0
        %2388 = vmatprep.subr.mxu0 0.0
        %2389 = vmatpush1.msra.mxu0 0.0
        %2390 = vmatprep.subr.mxu0 0.0
        %2391 = vmatpush1.msra.mxu0 0.0
        %2392 = vmatprep.subr.mxu0 0.0
        %2393 = vmatpush1.msra.mxu0 0.0
        %2394 = vmatprep.subr.mxu0 0.0
        %2395 = vmatpush1.msra.mxu0 0.0
        %2396 = vmatprep.subr.mxu0 0.0
        %2397 = vmatpush1.msra.mxu0 0.0
        %2398 = vmatprep.subr.mxu0 0.0
        %2399 = vmatpush1.msra.mxu0 0.0
        %2400 = vmatprep.subr.mxu0 0.0
        %2401 = vmatpush1.msra.mxu0 0.0
        %2402 = vmatprep.subr.mxu0 0.0
        %2403 = vmatpush1.msra.mxu0 0.0
        %2404 = vmatprep.subr.mxu0 0.0
        %2405 = vmatpush1.msra.mxu0 0.0
        %2406 = vmatprep.subr.mxu0 0.0
        %2407 = vmatpush1.msra.mxu0 0.0
        %2408 = vmatprep.subr.mxu0 0.0
        %2409 = vmatpush1.msra.mxu0 0.0
        %v2410 = vand.u32 %v1168, 4294901760
        %v2411 = vsub.f32 %v1168, %v2410
        %v2412 = vand.u32 %v2411, 4294901760
        %2413 = vmatprep.subr.mxu0 %v2412
        %v2414 = vand.u32 %v1165, 4294901760
        %v2415 = vsub.f32 %v1165, %v2414
        %v2416 = vand.u32 %v2415, 4294901760
        %2417 = vmatpush1.msra.mxu0 %v2416
        %2418 = vmatprep.subr.mxu0 0.0
        %2419 = vmatpush2.msra.mxu0 0.0
        %2420 = vmatprep.subr.mxu0 0.0
        %2421 = vmatpush2.msra.mxu0 0.0
        %2422 = vmatprep.subr.mxu0 0.0
        %2423 = vmatpush2.msra.mxu0 0.0
        %2424 = vmatprep.subr.mxu0 0.0
        %2425 = vmatpush2.msra.mxu0 0.0
        %2426 = vmatprep.subr.mxu0 0.0
        %2427 = vmatpush2.msra.mxu0 0.0
        %2428 = vmatprep.subr.mxu0 0.0
        %2429 = vmatpush2.msra.mxu0 0.0
        %2430 = vmatprep.subr.mxu0 0.0
        %2431 = vmatpush2.msra.mxu0 0.0
        %2432 = vmatprep.subr.mxu0 0.0
        %2433 = vmatpush2.msra.mxu0 0.0
        %2434 = vmatprep.subr.mxu0 0.0
        %2435 = vmatpush2.msra.mxu0 0.0
        %2436 = vmatprep.subr.mxu0 0.0
        %2437 = vmatpush2.msra.mxu0 0.0
        %2438 = vmatprep.subr.mxu0 0.0
        %2439 = vmatpush2.msra.mxu0 0.0
        %2440 = vmatprep.subr.mxu0 0.0
        %2441 = vmatpush2.msra.mxu0 0.0
        %2442 = vmatprep.subr.mxu0 0.0
        %2443 = vmatpush2.msra.mxu0 0.0
        %2444 = vmatprep.subr.mxu0 0.0
        %2445 = vmatpush2.msra.mxu0 0.0
        %2446 = vmatprep.subr.mxu0 0.0
        %2447 = vmatpush2.msra.mxu0 0.0
        %2448 = vmatprep.subr.mxu0 0.0
        %2449 = vmatpush2.msra.mxu0 0.0
        %2450 = vmatprep.mubr.f32.mxu0 0.0
        %v2451 = vand.u32 %v1140, 4294901760
        %2452 = vmatmul.mubr.f32.gmra.mxu0 %v2451
        %v2453 = vpop.f32.mrf.mxu0
        %v2454 = vadd.f32 %v2331, %v2453
        %v2455 = vpop.f32.mrf.mxu0
        %v2456 = vadd.f32 %v2333, %v2455
        %2457 = vmatprep.mubr.f32.mxu0 0.0
        %v2458 = vand.u32 %v1143, 4294901760
        %2459 = vmatmul.mubr.f32.gmra.mxu0 %v2458
        %v2460 = vpop.f32.mrf.mxu0
        %v2461 = vadd.f32 %v2340, %v2460
        %v2462 = vpop.f32.mrf.mxu0
        %v2463 = vadd.f32 %v2342, %v2462
        %2464 = vmatprep.mubr.f32.mxu0 0.0
        %v2465 = vand.u32 %v1146, 4294901760
        %2466 = vmatmul.mubr.f32.gmra.mxu0 %v2465
        %v2467 = vpop.f32.mrf.mxu0
        %v2468 = vadd.f32 %v2349, %v2467
        %v2469 = vpop.f32.mrf.mxu0
        %v2470 = vadd.f32 %v2351, %v2469
        %2471 = vmatprep.mubr.f32.mxu0 0.0
        %v2472 = vand.u32 %v1149, 4294901760
        %2473 = vmatmul.mubr.f32.gmra.mxu0 %v2472
        %v2474 = vpop.f32.mrf.mxu0
        %v2475 = vadd.f32 %v2358, %v2474
        %v2476 = vpop.f32.mrf.mxu0
        %v2477 = vadd.f32 %v2360, %v2476
        %2478 = vmatprep.mubr.f32.mxu0 0.0
        %v2479 = vand.u32 %v1152, 4294901760
        %2480 = vmatmul.mubr.f32.gmra.mxu0 %v2479
        %v2481 = vpop.f32.mrf.mxu0
        %v2482 = vadd.f32 %v2367, %v2481
        %v2483 = vpop.f32.mrf.mxu0
        %v2484 = vadd.f32 %v2369, %v2483
        %2485 = vmatprep.mubr.f32.mxu0 0.0
        %v2486 = vand.u32 %v1155, 4294901760
        %2487 = vmatmul.mubr.f32.gmra.mxu0 %v2486
        %v2488 = vpop.f32.mrf.mxu0
        %v2489 = vadd.f32 %v2376, %v2488
        %v2490 = vpop.f32.mrf.mxu0
        %v2491 = vadd.f32 %v2378, %v2490
        %2492 = vdwg.mxu0
        %2493 = vmatprep.subr.mxu0 0.0
        %2494 = vmatpush1.msra.mxu0 0.0
        %2495 = vmatprep.subr.mxu0 0.0
        %2496 = vmatpush1.msra.mxu0 0.0
        %2497 = vmatprep.subr.mxu0 0.0
        %2498 = vmatpush1.msra.mxu0 0.0
        %2499 = vmatprep.subr.mxu0 0.0
        %2500 = vmatpush1.msra.mxu0 0.0
        %2501 = vmatprep.subr.mxu0 0.0
        %2502 = vmatpush1.msra.mxu0 0.0
        %2503 = vmatprep.subr.mxu0 0.0
        %2504 = vmatpush1.msra.mxu0 0.0
        %2505 = vmatprep.subr.mxu0 0.0
        %2506 = vmatpush1.msra.mxu0 0.0
        %2507 = vmatprep.subr.mxu0 0.0
        %2508 = vmatpush1.msra.mxu0 0.0
        %2509 = vmatprep.subr.mxu0 0.0
        %2510 = vmatpush1.msra.mxu0 0.0
        %2511 = vmatprep.subr.mxu0 0.0
        %2512 = vmatpush1.msra.mxu0 0.0
        %2513 = vmatprep.subr.mxu0 0.0
        %2514 = vmatpush1.msra.mxu0 0.0
        %2515 = vmatprep.subr.mxu0 0.0
        %2516 = vmatpush1.msra.mxu0 0.0
        %2517 = vmatprep.subr.mxu0 0.0
        %2518 = vmatpush1.msra.mxu0 0.0
        %2519 = vmatprep.subr.mxu0 0.0
        %2520 = vmatpush1.msra.mxu0 0.0
        %2521 = vmatprep.subr.mxu0 0.0
        %2522 = vmatpush1.msra.mxu0 0.0
        %v2523 = vand.u32 %v1168, 4294901760
        %2524 = vmatprep.subr.mxu0 %v2523
        %v2525 = vand.u32 %v1165, 4294901760
        %2526 = vmatpush1.msra.mxu0 %v2525
        %2527 = vmatprep.subr.mxu0 0.0
        %2528 = vmatpush2.msra.mxu0 0.0
        %2529 = vmatprep.subr.mxu0 0.0
        %2530 = vmatpush2.msra.mxu0 0.0
        %2531 = vmatprep.subr.mxu0 0.0
        %2532 = vmatpush2.msra.mxu0 0.0
        %2533 = vmatprep.subr.mxu0 0.0
        %2534 = vmatpush2.msra.mxu0 0.0
        %2535 = vmatprep.subr.mxu0 0.0
        %2536 = vmatpush2.msra.mxu0 0.0
        %2537 = vmatprep.subr.mxu0 0.0
        %2538 = vmatpush2.msra.mxu0 0.0
        %2539 = vmatprep.subr.mxu0 0.0
        %2540 = vmatpush2.msra.mxu0 0.0
        %2541 = vmatprep.subr.mxu0 0.0
        %2542 = vmatpush2.msra.mxu0 0.0
        %2543 = vmatprep.subr.mxu0 0.0
        %2544 = vmatpush2.msra.mxu0 0.0
        %2545 = vmatprep.subr.mxu0 0.0
        %2546 = vmatpush2.msra.mxu0 0.0
        %2547 = vmatprep.subr.mxu0 0.0
        %2548 = vmatpush2.msra.mxu0 0.0
        %2549 = vmatprep.subr.mxu0 0.0
        %2550 = vmatpush2.msra.mxu0 0.0
        %2551 = vmatprep.subr.mxu0 0.0
        %2552 = vmatpush2.msra.mxu0 0.0
        %2553 = vmatprep.subr.mxu0 0.0
        %2554 = vmatpush2.msra.mxu0 0.0
        %2555 = vmatprep.subr.mxu0 0.0
        %2556 = vmatpush2.msra.mxu0 0.0
        %2557 = vmatprep.subr.mxu0 0.0
        %2558 = vmatpush2.msra.mxu0 0.0
        %2559 = vmatprep.mubr.f32.mxu0 0.0
        %v2560 = vand.u32 %v1140, 4294901760
        %2561 = vmatmul.mubr.f32.gmra.mxu0 %v2560
        %v2562 = vpop.f32.mrf.mxu0
        %v2563 = vadd.f32 %v2454, %v2562
        %v2564 = vpop.f32.mrf.mxu0
        %v2565 = vadd.f32 %v2456, %v2564
        %2566 = vmatprep.mubr.f32.mxu0 0.0
        %v2567 = vand.u32 %v1143, 4294901760
        %2568 = vmatmul.mubr.f32.gmra.mxu0 %v2567
        %v2569 = vpop.f32.mrf.mxu0
        %v2570 = vadd.f32 %v2461, %v2569
        %v2571 = vpop.f32.mrf.mxu0
        %v2572 = vadd.f32 %v2463, %v2571
        %2573 = vmatprep.mubr.f32.mxu0 0.0
        %v2574 = vand.u32 %v1146, 4294901760
        %2575 = vmatmul.mubr.f32.gmra.mxu0 %v2574
        %v2576 = vpop.f32.mrf.mxu0
        %v2577 = vadd.f32 %v2468, %v2576
        %v2578 = vpop.f32.mrf.mxu0
        %v2579 = vadd.f32 %v2470, %v2578
        %2580 = vmatprep.mubr.f32.mxu0 0.0
        %v2581 = vand.u32 %v1149, 4294901760
        %2582 = vmatmul.mubr.f32.gmra.mxu0 %v2581
        %v2583 = vpop.f32.mrf.mxu0
        %v2584 = vadd.f32 %v2475, %v2583
        %v2585 = vpop.f32.mrf.mxu0
        %v2586 = vadd.f32 %v2477, %v2585
        %2587 = vmatprep.mubr.f32.mxu0 0.0
        %v2588 = vand.u32 %v1152, 4294901760
        %2589 = vmatmul.mubr.f32.gmra.mxu0 %v2588
        %v2590 = vpop.f32.mrf.mxu0
        %v2591 = vadd.f32 %v2482, %v2590
        %v2592 = vpop.f32.mrf.mxu0
        %v2593 = vadd.f32 %v2484, %v2592
        %2594 = vmatprep.mubr.f32.mxu0 0.0
        %v2595 = vand.u32 %v1155, 4294901760
        %2596 = vmatmul.mubr.f32.gmra.mxu0 %v2595
        %v2597 = vpop.f32.mrf.mxu0
        %v2598 = vadd.f32 %v2489, %v2597
        %v2599 = vpop.f32.mrf.mxu0
        %v2600 = vadd.f32 %v2491, %v2599
        %2601 = vdwg.mxu0
        %2602 = vmatprep.subr.mxu0 0.0
        %2603 = vmatpush1.msra.mxu0 0.0
        %2604 = vmatprep.subr.mxu0 0.0
        %2605 = vmatpush1.msra.mxu0 0.0
        %2606 = vmatprep.subr.mxu0 0.0
        %2607 = vmatpush1.msra.mxu0 0.0
        %2608 = vmatprep.subr.mxu0 0.0
        %2609 = vmatpush1.msra.mxu0 0.0
        %2610 = vmatprep.subr.mxu0 0.0
        %2611 = vmatpush1.msra.mxu0 0.0
        %2612 = vmatprep.subr.mxu0 0.0
        %2613 = vmatpush1.msra.mxu0 0.0
        %2614 = vmatprep.subr.mxu0 0.0
        %2615 = vmatpush1.msra.mxu0 0.0
        %2616 = vmatprep.subr.mxu0 0.0
        %2617 = vmatpush1.msra.mxu0 0.0
        %2618 = vmatprep.subr.mxu0 0.0
        %2619 = vmatpush1.msra.mxu0 0.0
        %2620 = vmatprep.subr.mxu0 0.0
        %2621 = vmatpush1.msra.mxu0 0.0
        %2622 = vmatprep.subr.mxu0 0.0
        %2623 = vmatpush1.msra.mxu0 0.0
        %2624 = vmatprep.subr.mxu0 0.0
        %2625 = vmatpush1.msra.mxu0 0.0
        %2626 = vmatprep.subr.mxu0 0.0
        %2627 = vmatpush1.msra.mxu0 0.0
        %2628 = vmatprep.subr.mxu0 0.0
        %2629 = vmatpush1.msra.mxu0 0.0
        %2630 = vmatprep.subr.mxu0 0.0
        %2631 = vmatpush1.msra.mxu0 0.0
        %v2632 = vand.u32 %v1174, 4294901760
        %2633 = vmatprep.subr.mxu0 %v2632
        %v2634 = vand.u32 %v1171, 4294901760
        %2635 = vmatpush1.msra.mxu0 %v2634
        %2636 = vmatprep.subr.mxu0 0.0
        %2637 = vmatpush2.msra.mxu0 0.0
        %2638 = vmatprep.subr.mxu0 0.0
        %2639 = vmatpush2.msra.mxu0 0.0
        %2640 = vmatprep.subr.mxu0 0.0
        %2641 = vmatpush2.msra.mxu0 0.0
        %2642 = vmatprep.subr.mxu0 0.0
        %2643 = vmatpush2.msra.mxu0 0.0
        %2644 = vmatprep.subr.mxu0 0.0
        %2645 = vmatpush2.msra.mxu0 0.0
        %2646 = vmatprep.subr.mxu0 0.0
        %2647 = vmatpush2.msra.mxu0 0.0
        %2648 = vmatprep.subr.mxu0 0.0
        %2649 = vmatpush2.msra.mxu0 0.0
        %2650 = vmatprep.subr.mxu0 0.0
        %2651 = vmatpush2.msra.mxu0 0.0
        %2652 = vmatprep.subr.mxu0 0.0
        %2653 = vmatpush2.msra.mxu0 0.0
        %2654 = vmatprep.subr.mxu0 0.0
        %2655 = vmatpush2.msra.mxu0 0.0
        %2656 = vmatprep.subr.mxu0 0.0
        %2657 = vmatpush2.msra.mxu0 0.0
        %2658 = vmatprep.subr.mxu0 0.0
        %2659 = vmatpush2.msra.mxu0 0.0
        %2660 = vmatprep.subr.mxu0 0.0
        %2661 = vmatpush2.msra.mxu0 0.0
        %2662 = vmatprep.subr.mxu0 0.0
        %2663 = vmatpush2.msra.mxu0 0.0
        %2664 = vmatprep.subr.mxu0 0.0
        %2665 = vmatpush2.msra.mxu0 0.0
        %2666 = vmatprep.subr.mxu0 0.0
        %2667 = vmatpush2.msra.mxu0 0.0
        %2668 = vmatprep.mubr.f32.mxu0 0.0
        %v2669 = vand.u32 %v1140, 4294901760
        %v2670 = vsub.f32 %v1140, %v2669
        %v2671 = vand.u32 %v2670, 4294901760
        %v2672 = vsub.f32 %v2670, %v2671
        %v2673 = vand.u32 %v2672, 4294901760
        %2674 = vmatmul.mubr.f32.gmra.mxu0 %v2673
        %v2675 = vpop.f32.mrf.mxu0
        %v2676 = vadd.f32 0.0, %v2675
        %v2677 = vpop.f32.mrf.mxu0
        %v2678 = vadd.f32 0.0, %v2677
        %2679 = vmatprep.mubr.f32.mxu0 0.0
        %v2680 = vand.u32 %v1143, 4294901760
        %v2681 = vsub.f32 %v1143, %v2680
        %v2682 = vand.u32 %v2681, 4294901760
        %v2683 = vsub.f32 %v2681, %v2682
        %v2684 = vand.u32 %v2683, 4294901760
        %2685 = vmatmul.mubr.f32.gmra.mxu0 %v2684
        %v2686 = vpop.f32.mrf.mxu0
        %v2687 = vadd.f32 0.0, %v2686
        %v2688 = vpop.f32.mrf.mxu0
        %v2689 = vadd.f32 0.0, %v2688
        %2690 = vmatprep.mubr.f32.mxu0 0.0
        %v2691 = vand.u32 %v1146, 4294901760
        %v2692 = vsub.f32 %v1146, %v2691
        %v2693 = vand.u32 %v2692, 4294901760
        %v2694 = vsub.f32 %v2692, %v2693
        %v2695 = vand.u32 %v2694, 4294901760
        %2696 = vmatmul.mubr.f32.gmra.mxu0 %v2695
        %v2697 = vpop.f32.mrf.mxu0
        %v2698 = vadd.f32 0.0, %v2697
        %v2699 = vpop.f32.mrf.mxu0
        %v2700 = vadd.f32 0.0, %v2699
        %2701 = vmatprep.mubr.f32.mxu0 0.0
        %v2702 = vand.u32 %v1149, 4294901760
        %v2703 = vsub.f32 %v1149, %v2702
        %v2704 = vand.u32 %v2703, 4294901760
        %v2705 = vsub.f32 %v2703, %v2704
        %v2706 = vand.u32 %v2705, 4294901760
        %2707 = vmatmul.mubr.f32.gmra.mxu0 %v2706
        %v2708 = vpop.f32.mrf.mxu0
        %v2709 = vadd.f32 0.0, %v2708
        %v2710 = vpop.f32.mrf.mxu0
        %v2711 = vadd.f32 0.0, %v2710
        %2712 = vmatprep.mubr.f32.mxu0 0.0
        %v2713 = vand.u32 %v1152, 4294901760
        %v2714 = vsub.f32 %v1152, %v2713
        %v2715 = vand.u32 %v2714, 4294901760
        %v2716 = vsub.f32 %v2714, %v2715
        %v2717 = vand.u32 %v2716, 4294901760
        %2718 = vmatmul.mubr.f32.gmra.mxu0 %v2717
        %v2719 = vpop.f32.mrf.mxu0
        %v2720 = vadd.f32 0.0, %v2719
        %v2721 = vpop.f32.mrf.mxu0
        %v2722 = vadd.f32 0.0, %v2721
        %2723 = vmatprep.mubr.f32.mxu0 0.0
        %v2724 = vand.u32 %v1155, 4294901760
        %v2725 = vsub.f32 %v1155, %v2724
        %v2726 = vand.u32 %v2725, 4294901760
        %v2727 = vsub.f32 %v2725, %v2726
        %v2728 = vand.u32 %v2727, 4294901760
        %2729 = vmatmul.mubr.f32.gmra.mxu0 %v2728
        %v2730 = vpop.f32.mrf.mxu0
        %v2731 = vadd.f32 0.0, %v2730
        %v2732 = vpop.f32.mrf.mxu0
        %v2733 = vadd.f32 0.0, %v2732
        %2734 = vdwg.mxu0
        %2735 = vmatprep.subr.mxu0 0.0
        %2736 = vmatpush1.msra.mxu0 0.0
        %2737 = vmatprep.subr.mxu0 0.0
        %2738 = vmatpush1.msra.mxu0 0.0
        %2739 = vmatprep.subr.mxu0 0.0
        %2740 = vmatpush1.msra.mxu0 0.0
        %2741 = vmatprep.subr.mxu0 0.0
        %2742 = vmatpush1.msra.mxu0 0.0
        %2743 = vmatprep.subr.mxu0 0.0
        %2744 = vmatpush1.msra.mxu0 0.0
        %2745 = vmatprep.subr.mxu0 0.0
        %2746 = vmatpush1.msra.mxu0 0.0
        %2747 = vmatprep.subr.mxu0 0.0
        %2748 = vmatpush1.msra.mxu0 0.0
        %2749 = vmatprep.subr.mxu0 0.0
        %2750 = vmatpush1.msra.mxu0 0.0
        %2751 = vmatprep.subr.mxu0 0.0
        %2752 = vmatpush1.msra.mxu0 0.0
        %2753 = vmatprep.subr.mxu0 0.0
        %2754 = vmatpush1.msra.mxu0 0.0
        %2755 = vmatprep.subr.mxu0 0.0
        %2756 = vmatpush1.msra.mxu0 0.0
        %2757 = vmatprep.subr.mxu0 0.0
        %2758 = vmatpush1.msra.mxu0 0.0
        %2759 = vmatprep.subr.mxu0 0.0
        %2760 = vmatpush1.msra.mxu0 0.0
        %2761 = vmatprep.subr.mxu0 0.0
        %2762 = vmatpush1.msra.mxu0 0.0
        %2763 = vmatprep.subr.mxu0 0.0
        %2764 = vmatpush1.msra.mxu0 0.0
        %v2765 = vand.u32 %v1174, 4294901760
        %v2766 = vsub.f32 %v1174, %v2765
        %v2767 = vand.u32 %v2766, 4294901760
        %v2768 = vsub.f32 %v2766, %v2767
        %v2769 = vand.u32 %v2768, 4294901760
        %2770 = vmatprep.subr.mxu0 %v2769
        %v2771 = vand.u32 %v1171, 4294901760
        %v2772 = vsub.f32 %v1171, %v2771
        %v2773 = vand.u32 %v2772, 4294901760
        %v2774 = vsub.f32 %v2772, %v2773
        %v2775 = vand.u32 %v2774, 4294901760
        %2776 = vmatpush1.msra.mxu0 %v2775
        %2777 = vmatprep.subr.mxu0 0.0
        %2778 = vmatpush2.msra.mxu0 0.0
        %2779 = vmatprep.subr.mxu0 0.0
        %2780 = vmatpush2.msra.mxu0 0.0
        %2781 = vmatprep.subr.mxu0 0.0
        %2782 = vmatpush2.msra.mxu0 0.0
        %2783 = vmatprep.subr.mxu0 0.0
        %2784 = vmatpush2.msra.mxu0 0.0
        %2785 = vmatprep.subr.mxu0 0.0
        %2786 = vmatpush2.msra.mxu0 0.0
        %2787 = vmatprep.subr.mxu0 0.0
        %2788 = vmatpush2.msra.mxu0 0.0
        %2789 = vmatprep.subr.mxu0 0.0
        %2790 = vmatpush2.msra.mxu0 0.0
        %2791 = vmatprep.subr.mxu0 0.0
        %2792 = vmatpush2.msra.mxu0 0.0
        %2793 = vmatprep.subr.mxu0 0.0
        %2794 = vmatpush2.msra.mxu0 0.0
        %2795 = vmatprep.subr.mxu0 0.0
        %2796 = vmatpush2.msra.mxu0 0.0
        %2797 = vmatprep.subr.mxu0 0.0
        %2798 = vmatpush2.msra.mxu0 0.0
        %2799 = vmatprep.subr.mxu0 0.0
        %2800 = vmatpush2.msra.mxu0 0.0
        %2801 = vmatprep.subr.mxu0 0.0
        %2802 = vmatpush2.msra.mxu0 0.0
        %2803 = vmatprep.subr.mxu0 0.0
        %2804 = vmatpush2.msra.mxu0 0.0
        %2805 = vmatprep.subr.mxu0 0.0
        %2806 = vmatpush2.msra.mxu0 0.0
        %2807 = vmatprep.subr.mxu0 0.0
        %2808 = vmatpush2.msra.mxu0 0.0
        %2809 = vmatprep.mubr.f32.mxu0 0.0
        %v2810 = vand.u32 %v1140, 4294901760
        %2811 = vmatmul.mubr.f32.gmra.mxu0 %v2810
        %v2812 = vpop.f32.mrf.mxu0
        %v2813 = vadd.f32 %v2676, %v2812
        %v2814 = vpop.f32.mrf.mxu0
        %v2815 = vadd.f32 %v2678, %v2814
        %2816 = vmatprep.mubr.f32.mxu0 0.0
        %v2817 = vand.u32 %v1143, 4294901760
        %2818 = vmatmul.mubr.f32.gmra.mxu0 %v2817
        %v2819 = vpop.f32.mrf.mxu0
        %v2820 = vadd.f32 %v2687, %v2819
        %v2821 = vpop.f32.mrf.mxu0
        %v2822 = vadd.f32 %v2689, %v2821
        %2823 = vmatprep.mubr.f32.mxu0 0.0
        %v2824 = vand.u32 %v1146, 4294901760
        %2825 = vmatmul.mubr.f32.gmra.mxu0 %v2824
        %v2826 = vpop.f32.mrf.mxu0
        %v2827 = vadd.f32 %v2698, %v2826
        %v2828 = vpop.f32.mrf.mxu0
        %v2829 = vadd.f32 %v2700, %v2828
        %2830 = vmatprep.mubr.f32.mxu0 0.0
        %v2831 = vand.u32 %v1149, 4294901760
        %2832 = vmatmul.mubr.f32.gmra.mxu0 %v2831
        %v2833 = vpop.f32.mrf.mxu0
        %v2834 = vadd.f32 %v2709, %v2833
        %v2835 = vpop.f32.mrf.mxu0
        %v2836 = vadd.f32 %v2711, %v2835
        %2837 = vmatprep.mubr.f32.mxu0 0.0
        %v2838 = vand.u32 %v1152, 4294901760
        %2839 = vmatmul.mubr.f32.gmra.mxu0 %v2838
        %v2840 = vpop.f32.mrf.mxu0
        %v2841 = vadd.f32 %v2720, %v2840
        %v2842 = vpop.f32.mrf.mxu0
        %v2843 = vadd.f32 %v2722, %v2842
        %2844 = vmatprep.mubr.f32.mxu0 0.0
        %v2845 = vand.u32 %v1155, 4294901760
        %2846 = vmatmul.mubr.f32.gmra.mxu0 %v2845
        %v2847 = vpop.f32.mrf.mxu0
        %v2848 = vadd.f32 %v2731, %v2847
        %v2849 = vpop.f32.mrf.mxu0
        %v2850 = vadd.f32 %v2733, %v2849
        %2851 = vdwg.mxu0
        %2852 = vmatprep.subr.mxu0 0.0
        %2853 = vmatpush1.msra.mxu0 0.0
        %2854 = vmatprep.subr.mxu0 0.0
        %2855 = vmatpush1.msra.mxu0 0.0
        %2856 = vmatprep.subr.mxu0 0.0
        %2857 = vmatpush1.msra.mxu0 0.0
        %2858 = vmatprep.subr.mxu0 0.0
        %2859 = vmatpush1.msra.mxu0 0.0
        %2860 = vmatprep.subr.mxu0 0.0
        %2861 = vmatpush1.msra.mxu0 0.0
        %2862 = vmatprep.subr.mxu0 0.0
        %2863 = vmatpush1.msra.mxu0 0.0
        %2864 = vmatprep.subr.mxu0 0.0
        %2865 = vmatpush1.msra.mxu0 0.0
        %2866 = vmatprep.subr.mxu0 0.0
        %2867 = vmatpush1.msra.mxu0 0.0
        %2868 = vmatprep.subr.mxu0 0.0
        %2869 = vmatpush1.msra.mxu0 0.0
        %2870 = vmatprep.subr.mxu0 0.0
        %2871 = vmatpush1.msra.mxu0 0.0
        %2872 = vmatprep.subr.mxu0 0.0
        %2873 = vmatpush1.msra.mxu0 0.0
        %2874 = vmatprep.subr.mxu0 0.0
        %2875 = vmatpush1.msra.mxu0 0.0
        %2876 = vmatprep.subr.mxu0 0.0
        %2877 = vmatpush1.msra.mxu0 0.0
        %2878 = vmatprep.subr.mxu0 0.0
        %2879 = vmatpush1.msra.mxu0 0.0
        %2880 = vmatprep.subr.mxu0 0.0
        %2881 = vmatpush1.msra.mxu0 0.0
        %v2882 = vand.u32 %v1174, 4294901760
        %v2883 = vsub.f32 %v1174, %v2882
        %2884 = vmatprep.subr.mxu0 %v2883
        %v2885 = vand.u32 %v1171, 4294901760
        %v2886 = vsub.f32 %v1171, %v2885
        %2887 = vmatpush1.msra.mxu0 %v2886
        %2888 = vmatprep.subr.mxu0 0.0
        %2889 = vmatpush2.msra.mxu0 0.0
        %2890 = vmatprep.subr.mxu0 0.0
        %2891 = vmatpush2.msra.mxu0 0.0
        %2892 = vmatprep.subr.mxu0 0.0
        %2893 = vmatpush2.msra.mxu0 0.0
        %2894 = vmatprep.subr.mxu0 0.0
        %2895 = vmatpush2.msra.mxu0 0.0
        %2896 = vmatprep.subr.mxu0 0.0
        %2897 = vmatpush2.msra.mxu0 0.0
        %2898 = vmatprep.subr.mxu0 0.0
        %2899 = vmatpush2.msra.mxu0 0.0
        %2900 = vmatprep.subr.mxu0 0.0
        %2901 = vmatpush2.msra.mxu0 0.0
        %2902 = vmatprep.subr.mxu0 0.0
        %2903 = vmatpush2.msra.mxu0 0.0
        %2904 = vmatprep.subr.mxu0 0.0
        %2905 = vmatpush2.msra.mxu0 0.0
        %2906 = vmatprep.subr.mxu0 0.0
        %2907 = vmatpush2.msra.mxu0 0.0
        %2908 = vmatprep.subr.mxu0 0.0
        %2909 = vmatpush2.msra.mxu0 0.0
        %2910 = vmatprep.subr.mxu0 0.0
        %2911 = vmatpush2.msra.mxu0 0.0
        %2912 = vmatprep.subr.mxu0 0.0
        %2913 = vmatpush2.msra.mxu0 0.0
        %2914 = vmatprep.subr.mxu0 0.0
        %2915 = vmatpush2.msra.mxu0 0.0
        %2916 = vmatprep.subr.mxu0 0.0
        %2917 = vmatpush2.msra.mxu0 0.0
        %2918 = vmatprep.subr.mxu0 0.0
        %2919 = vmatpush2.msra.mxu0 0.0
        %2920 = vmatprep.mubr.f32.mxu0 0.0
        %v2921 = vand.u32 %v1140, 4294901760
        %v2922 = vsub.f32 %v1140, %v2921
        %2923 = vmatmul.mubr.f32.gmra.mxu0 %v2922
        %v2924 = vpop.f32.mrf.mxu0
        %v2925 = vadd.f32 %v2813, %v2924
        %v2926 = vpop.f32.mrf.mxu0
        %v2927 = vadd.f32 %v2815, %v2926
        %2928 = vmatprep.mubr.f32.mxu0 0.0
        %v2929 = vand.u32 %v1143, 4294901760
        %v2930 = vsub.f32 %v1143, %v2929
        %2931 = vmatmul.mubr.f32.gmra.mxu0 %v2930
        %v2932 = vpop.f32.mrf.mxu0
        %v2933 = vadd.f32 %v2820, %v2932
        %v2934 = vpop.f32.mrf.mxu0
        %v2935 = vadd.f32 %v2822, %v2934
        %2936 = vmatprep.mubr.f32.mxu0 0.0
        %v2937 = vand.u32 %v1146, 4294901760
        %v2938 = vsub.f32 %v1146, %v2937
        %2939 = vmatmul.mubr.f32.gmra.mxu0 %v2938
        %v2940 = vpop.f32.mrf.mxu0
        %v2941 = vadd.f32 %v2827, %v2940
        %v2942 = vpop.f32.mrf.mxu0
        %v2943 = vadd.f32 %v2829, %v2942
        %2944 = vmatprep.mubr.f32.mxu0 0.0
        %v2945 = vand.u32 %v1149, 4294901760
        %v2946 = vsub.f32 %v1149, %v2945
        %2947 = vmatmul.mubr.f32.gmra.mxu0 %v2946
        %v2948 = vpop.f32.mrf.mxu0
        %v2949 = vadd.f32 %v2834, %v2948
        %v2950 = vpop.f32.mrf.mxu0
        %v2951 = vadd.f32 %v2836, %v2950
        %2952 = vmatprep.mubr.f32.mxu0 0.0
        %v2953 = vand.u32 %v1152, 4294901760
        %v2954 = vsub.f32 %v1152, %v2953
        %2955 = vmatmul.mubr.f32.gmra.mxu0 %v2954
        %v2956 = vpop.f32.mrf.mxu0
        %v2957 = vadd.f32 %v2841, %v2956
        %v2958 = vpop.f32.mrf.mxu0
        %v2959 = vadd.f32 %v2843, %v2958
        %2960 = vmatprep.mubr.f32.mxu0 0.0
        %v2961 = vand.u32 %v1155, 4294901760
        %v2962 = vsub.f32 %v1155, %v2961
        %2963 = vmatmul.mubr.f32.gmra.mxu0 %v2962
        %v2964 = vpop.f32.mrf.mxu0
        %v2965 = vadd.f32 %v2848, %v2964
        %v2966 = vpop.f32.mrf.mxu0
        %v2967 = vadd.f32 %v2850, %v2966
        %2968 = vdwg.mxu0
        %2969 = vmatprep.subr.mxu0 0.0
        %2970 = vmatpush1.msra.mxu0 0.0
        %2971 = vmatprep.subr.mxu0 0.0
        %2972 = vmatpush1.msra.mxu0 0.0
        %2973 = vmatprep.subr.mxu0 0.0
        %2974 = vmatpush1.msra.mxu0 0.0
        %2975 = vmatprep.subr.mxu0 0.0
        %2976 = vmatpush1.msra.mxu0 0.0
        %2977 = vmatprep.subr.mxu0 0.0
        %2978 = vmatpush1.msra.mxu0 0.0
        %2979 = vmatprep.subr.mxu0 0.0
        %2980 = vmatpush1.msra.mxu0 0.0
        %2981 = vmatprep.subr.mxu0 0.0
        %2982 = vmatpush1.msra.mxu0 0.0
        %2983 = vmatprep.subr.mxu0 0.0
        %2984 = vmatpush1.msra.mxu0 0.0
        %2985 = vmatprep.subr.mxu0 0.0
        %2986 = vmatpush1.msra.mxu0 0.0
        %2987 = vmatprep.subr.mxu0 0.0
        %2988 = vmatpush1.msra.mxu0 0.0
        %2989 = vmatprep.subr.mxu0 0.0
        %2990 = vmatpush1.msra.mxu0 0.0
        %2991 = vmatprep.subr.mxu0 0.0
        %2992 = vmatpush1.msra.mxu0 0.0
        %2993 = vmatprep.subr.mxu0 0.0
        %2994 = vmatpush1.msra.mxu0 0.0
        %2995 = vmatprep.subr.mxu0 0.0
        %2996 = vmatpush1.msra.mxu0 0.0
        %2997 = vmatprep.subr.mxu0 0.0
        %2998 = vmatpush1.msra.mxu0 0.0
        %v2999 = vand.u32 %v1174, 4294901760
        %3000 = vmatprep.subr.mxu0 %v2999
        %v3001 = vand.u32 %v1171, 4294901760
        %3002 = vmatpush1.msra.mxu0 %v3001
        %3003 = vmatprep.subr.mxu0 0.0
        %3004 = vmatpush2.msra.mxu0 0.0
        %3005 = vmatprep.subr.mxu0 0.0
        %3006 = vmatpush2.msra.mxu0 0.0
        %3007 = vmatprep.subr.mxu0 0.0
        %3008 = vmatpush2.msra.mxu0 0.0
        %3009 = vmatprep.subr.mxu0 0.0
        %3010 = vmatpush2.msra.mxu0 0.0
        %3011 = vmatprep.subr.mxu0 0.0
        %3012 = vmatpush2.msra.mxu0 0.0
        %3013 = vmatprep.subr.mxu0 0.0
        %3014 = vmatpush2.msra.mxu0 0.0
        %3015 = vmatprep.subr.mxu0 0.0
        %3016 = vmatpush2.msra.mxu0 0.0
        %3017 = vmatprep.subr.mxu0 0.0
        %3018 = vmatpush2.msra.mxu0 0.0
        %3019 = vmatprep.subr.mxu0 0.0
        %3020 = vmatpush2.msra.mxu0 0.0
        %3021 = vmatprep.subr.mxu0 0.0
        %3022 = vmatpush2.msra.mxu0 0.0
        %3023 = vmatprep.subr.mxu0 0.0
        %3024 = vmatpush2.msra.mxu0 0.0
        %3025 = vmatprep.subr.mxu0 0.0
        %3026 = vmatpush2.msra.mxu0 0.0
        %3027 = vmatprep.subr.mxu0 0.0
        %3028 = vmatpush2.msra.mxu0 0.0
        %3029 = vmatprep.subr.mxu0 0.0
        %3030 = vmatpush2.msra.mxu0 0.0
        %3031 = vmatprep.subr.mxu0 0.0
        %3032 = vmatpush2.msra.mxu0 0.0
        %3033 = vmatprep.subr.mxu0 0.0
        %3034 = vmatpush2.msra.mxu0 0.0
        %3035 = vmatprep.mubr.f32.mxu0 0.0
        %v3036 = vand.u32 %v1140, 4294901760
        %v3037 = vsub.f32 %v1140, %v3036
        %v3038 = vand.u32 %v3037, 4294901760
        %3039 = vmatmul.mubr.f32.gmra.mxu0 %v3038
        %v3040 = vpop.f32.mrf.mxu0
        %v3041 = vadd.f32 %v2925, %v3040
        %v3042 = vpop.f32.mrf.mxu0
        %v3043 = vadd.f32 %v2927, %v3042
        %3044 = vmatprep.mubr.f32.mxu0 0.0
        %v3045 = vand.u32 %v1143, 4294901760
        %v3046 = vsub.f32 %v1143, %v3045
        %v3047 = vand.u32 %v3046, 4294901760
        %3048 = vmatmul.mubr.f32.gmra.mxu0 %v3047
        %v3049 = vpop.f32.mrf.mxu0
        %v3050 = vadd.f32 %v2933, %v3049
        %v3051 = vpop.f32.mrf.mxu0
        %v3052 = vadd.f32 %v2935, %v3051
        %3053 = vmatprep.mubr.f32.mxu0 0.0
        %v3054 = vand.u32 %v1146, 4294901760
        %v3055 = vsub.f32 %v1146, %v3054
        %v3056 = vand.u32 %v3055, 4294901760
        %3057 = vmatmul.mubr.f32.gmra.mxu0 %v3056
        %v3058 = vpop.f32.mrf.mxu0
        %v3059 = vadd.f32 %v2941, %v3058
        %v3060 = vpop.f32.mrf.mxu0
        %v3061 = vadd.f32 %v2943, %v3060
        %3062 = vmatprep.mubr.f32.mxu0 0.0
        %v3063 = vand.u32 %v1149, 4294901760
        %v3064 = vsub.f32 %v1149, %v3063
        %v3065 = vand.u32 %v3064, 4294901760
        %3066 = vmatmul.mubr.f32.gmra.mxu0 %v3065
        %v3067 = vpop.f32.mrf.mxu0
        %v3068 = vadd.f32 %v2949, %v3067
        %v3069 = vpop.f32.mrf.mxu0
        %v3070 = vadd.f32 %v2951, %v3069
        %3071 = vmatprep.mubr.f32.mxu0 0.0
        %v3072 = vand.u32 %v1152, 4294901760
        %v3073 = vsub.f32 %v1152, %v3072
        %v3074 = vand.u32 %v3073, 4294901760
        %3075 = vmatmul.mubr.f32.gmra.mxu0 %v3074
        %v3076 = vpop.f32.mrf.mxu0
        %v3077 = vadd.f32 %v2957, %v3076
        %v3078 = vpop.f32.mrf.mxu0
        %v3079 = vadd.f32 %v2959, %v3078
        %3080 = vmatprep.mubr.f32.mxu0 0.0
        %v3081 = vand.u32 %v1155, 4294901760
        %v3082 = vsub.f32 %v1155, %v3081
        %v3083 = vand.u32 %v3082, 4294901760
        %3084 = vmatmul.mubr.f32.gmra.mxu0 %v3083
        %v3085 = vpop.f32.mrf.mxu0
        %v3086 = vadd.f32 %v2965, %v3085
        %v3087 = vpop.f32.mrf.mxu0
        %v3088 = vadd.f32 %v2967, %v3087
        %3089 = vdwg.mxu0
        %3090 = vmatprep.subr.mxu0 0.0
        %3091 = vmatpush1.msra.mxu0 0.0
        %3092 = vmatprep.subr.mxu0 0.0
        %3093 = vmatpush1.msra.mxu0 0.0
        %3094 = vmatprep.subr.mxu0 0.0
        %3095 = vmatpush1.msra.mxu0 0.0
        %3096 = vmatprep.subr.mxu0 0.0
        %3097 = vmatpush1.msra.mxu0 0.0
        %3098 = vmatprep.subr.mxu0 0.0
        %3099 = vmatpush1.msra.mxu0 0.0
        %3100 = vmatprep.subr.mxu0 0.0
        %3101 = vmatpush1.msra.mxu0 0.0
        %3102 = vmatprep.subr.mxu0 0.0
        %3103 = vmatpush1.msra.mxu0 0.0
        %3104 = vmatprep.subr.mxu0 0.0
        %3105 = vmatpush1.msra.mxu0 0.0
        %3106 = vmatprep.subr.mxu0 0.0
        %3107 = vmatpush1.msra.mxu0 0.0
        %3108 = vmatprep.subr.mxu0 0.0
        %3109 = vmatpush1.msra.mxu0 0.0
        %3110 = vmatprep.subr.mxu0 0.0
        %3111 = vmatpush1.msra.mxu0 0.0
        %3112 = vmatprep.subr.mxu0 0.0
        %3113 = vmatpush1.msra.mxu0 0.0
        %3114 = vmatprep.subr.mxu0 0.0
        %3115 = vmatpush1.msra.mxu0 0.0
        %3116 = vmatprep.subr.mxu0 0.0
        %3117 = vmatpush1.msra.mxu0 0.0
        %3118 = vmatprep.subr.mxu0 0.0
        %3119 = vmatpush1.msra.mxu0 0.0
        %v3120 = vand.u32 %v1174, 4294901760
        %v3121 = vsub.f32 %v1174, %v3120
        %v3122 = vand.u32 %v3121, 4294901760
        %3123 = vmatprep.subr.mxu0 %v3122
        %v3124 = vand.u32 %v1171, 4294901760
        %v3125 = vsub.f32 %v1171, %v3124
        %v3126 = vand.u32 %v3125, 4294901760
        %3127 = vmatpush1.msra.mxu0 %v3126
        %3128 = vmatprep.subr.mxu0 0.0
        %3129 = vmatpush2.msra.mxu0 0.0
        %3130 = vmatprep.subr.mxu0 0.0
        %3131 = vmatpush2.msra.mxu0 0.0
        %3132 = vmatprep.subr.mxu0 0.0
        %3133 = vmatpush2.msra.mxu0 0.0
        %3134 = vmatprep.subr.mxu0 0.0
        %3135 = vmatpush2.msra.mxu0 0.0
        %3136 = vmatprep.subr.mxu0 0.0
        %3137 = vmatpush2.msra.mxu0 0.0
        %3138 = vmatprep.subr.mxu0 0.0
        %3139 = vmatpush2.msra.mxu0 0.0
        %3140 = vmatprep.subr.mxu0 0.0
        %3141 = vmatpush2.msra.mxu0 0.0
        %3142 = vmatprep.subr.mxu0 0.0
        %3143 = vmatpush2.msra.mxu0 0.0
        %3144 = vmatprep.subr.mxu0 0.0
        %3145 = vmatpush2.msra.mxu0 0.0
        %3146 = vmatprep.subr.mxu0 0.0
        %3147 = vmatpush2.msra.mxu0 0.0
        %3148 = vmatprep.subr.mxu0 0.0
        %3149 = vmatpush2.msra.mxu0 0.0
        %3150 = vmatprep.subr.mxu0 0.0
        %3151 = vmatpush2.msra.mxu0 0.0
        %3152 = vmatprep.subr.mxu0 0.0
        %3153 = vmatpush2.msra.mxu0 0.0
        %3154 = vmatprep.subr.mxu0 0.0
        %3155 = vmatpush2.msra.mxu0 0.0
        %3156 = vmatprep.subr.mxu0 0.0
        %3157 = vmatpush2.msra.mxu0 0.0
        %3158 = vmatprep.subr.mxu0 0.0
        %3159 = vmatpush2.msra.mxu0 0.0
        %3160 = vmatprep.mubr.f32.mxu0 0.0
        %v3161 = vand.u32 %v1140, 4294901760
        %3162 = vmatmul.mubr.f32.gmra.mxu0 %v3161
        %v3163 = vpop.f32.mrf.mxu0
        %v3164 = vadd.f32 %v3041, %v3163
        %v3165 = vpop.f32.mrf.mxu0
        %v3166 = vadd.f32 %v3043, %v3165
        %3167 = vmatprep.mubr.f32.mxu0 0.0
        %v3168 = vand.u32 %v1143, 4294901760
        %3169 = vmatmul.mubr.f32.gmra.mxu0 %v3168
        %v3170 = vpop.f32.mrf.mxu0
        %v3171 = vadd.f32 %v3050, %v3170
        %v3172 = vpop.f32.mrf.mxu0
        %v3173 = vadd.f32 %v3052, %v3172
        %3174 = vmatprep.mubr.f32.mxu0 0.0
        %v3175 = vand.u32 %v1146, 4294901760
        %3176 = vmatmul.mubr.f32.gmra.mxu0 %v3175
        %v3177 = vpop.f32.mrf.mxu0
        %v3178 = vadd.f32 %v3059, %v3177
        %v3179 = vpop.f32.mrf.mxu0
        %v3180 = vadd.f32 %v3061, %v3179
        %3181 = vmatprep.mubr.f32.mxu0 0.0
        %v3182 = vand.u32 %v1149, 4294901760
        %3183 = vmatmul.mubr.f32.gmra.mxu0 %v3182
        %v3184 = vpop.f32.mrf.mxu0
        %v3185 = vadd.f32 %v3068, %v3184
        %v3186 = vpop.f32.mrf.mxu0
        %v3187 = vadd.f32 %v3070, %v3186
        %3188 = vmatprep.mubr.f32.mxu0 0.0
        %v3189 = vand.u32 %v1152, 4294901760
        %3190 = vmatmul.mubr.f32.gmra.mxu0 %v3189
        %v3191 = vpop.f32.mrf.mxu0
        %v3192 = vadd.f32 %v3077, %v3191
        %v3193 = vpop.f32.mrf.mxu0
        %v3194 = vadd.f32 %v3079, %v3193
        %3195 = vmatprep.mubr.f32.mxu0 0.0
        %v3196 = vand.u32 %v1155, 4294901760
        %3197 = vmatmul.mubr.f32.gmra.mxu0 %v3196
        %v3198 = vpop.f32.mrf.mxu0
        %v3199 = vadd.f32 %v3086, %v3198
        %v3200 = vpop.f32.mrf.mxu0
        %v3201 = vadd.f32 %v3088, %v3200
        %3202 = vdwg.mxu0
        %3203 = vmatprep.subr.mxu0 0.0
        %3204 = vmatpush1.msra.mxu0 0.0
        %3205 = vmatprep.subr.mxu0 0.0
        %3206 = vmatpush1.msra.mxu0 0.0
        %3207 = vmatprep.subr.mxu0 0.0
        %3208 = vmatpush1.msra.mxu0 0.0
        %3209 = vmatprep.subr.mxu0 0.0
        %3210 = vmatpush1.msra.mxu0 0.0
        %3211 = vmatprep.subr.mxu0 0.0
        %3212 = vmatpush1.msra.mxu0 0.0
        %3213 = vmatprep.subr.mxu0 0.0
        %3214 = vmatpush1.msra.mxu0 0.0
        %3215 = vmatprep.subr.mxu0 0.0
        %3216 = vmatpush1.msra.mxu0 0.0
        %3217 = vmatprep.subr.mxu0 0.0
        %3218 = vmatpush1.msra.mxu0 0.0
        %3219 = vmatprep.subr.mxu0 0.0
        %3220 = vmatpush1.msra.mxu0 0.0
        %3221 = vmatprep.subr.mxu0 0.0
        %3222 = vmatpush1.msra.mxu0 0.0
        %3223 = vmatprep.subr.mxu0 0.0
        %3224 = vmatpush1.msra.mxu0 0.0
        %3225 = vmatprep.subr.mxu0 0.0
        %3226 = vmatpush1.msra.mxu0 0.0
        %3227 = vmatprep.subr.mxu0 0.0
        %3228 = vmatpush1.msra.mxu0 0.0
        %3229 = vmatprep.subr.mxu0 0.0
        %3230 = vmatpush1.msra.mxu0 0.0
        %3231 = vmatprep.subr.mxu0 0.0
        %3232 = vmatpush1.msra.mxu0 0.0
        %v3233 = vand.u32 %v1174, 4294901760
        %3234 = vmatprep.subr.mxu0 %v3233
        %v3235 = vand.u32 %v1171, 4294901760
        %3236 = vmatpush1.msra.mxu0 %v3235
        %3237 = vmatprep.subr.mxu0 0.0
        %3238 = vmatpush2.msra.mxu0 0.0
        %3239 = vmatprep.subr.mxu0 0.0
        %3240 = vmatpush2.msra.mxu0 0.0
        %3241 = vmatprep.subr.mxu0 0.0
        %3242 = vmatpush2.msra.mxu0 0.0
        %3243 = vmatprep.subr.mxu0 0.0
        %3244 = vmatpush2.msra.mxu0 0.0
        %3245 = vmatprep.subr.mxu0 0.0
        %3246 = vmatpush2.msra.mxu0 0.0
        %3247 = vmatprep.subr.mxu0 0.0
        %3248 = vmatpush2.msra.mxu0 0.0
        %3249 = vmatprep.subr.mxu0 0.0
        %3250 = vmatpush2.msra.mxu0 0.0
        %3251 = vmatprep.subr.mxu0 0.0
        %3252 = vmatpush2.msra.mxu0 0.0
        %3253 = vmatprep.subr.mxu0 0.0
        %3254 = vmatpush2.msra.mxu0 0.0
        %3255 = vmatprep.subr.mxu0 0.0
        %3256 = vmatpush2.msra.mxu0 0.0
        %3257 = vmatprep.subr.mxu0 0.0
        %3258 = vmatpush2.msra.mxu0 0.0
        %3259 = vmatprep.subr.mxu0 0.0
        %3260 = vmatpush2.msra.mxu0 0.0
        %3261 = vmatprep.subr.mxu0 0.0
        %3262 = vmatpush2.msra.mxu0 0.0
        %3263 = vmatprep.subr.mxu0 0.0
        %3264 = vmatpush2.msra.mxu0 0.0
        %3265 = vmatprep.subr.mxu0 0.0
        %3266 = vmatpush2.msra.mxu0 0.0
        %3267 = vmatprep.subr.mxu0 0.0
        %3268 = vmatpush2.msra.mxu0 0.0
        %3269 = vmatprep.mubr.f32.mxu0 0.0
        %v3270 = vand.u32 %v1140, 4294901760
        %3271 = vmatmul.mubr.f32.gmra.mxu0 %v3270
        %v3272 = vpop.f32.mrf.mxu0
        %v3273 = vadd.f32 %v3164, %v3272
        %v3274 = vpop.f32.mrf.mxu0
        %v3275 = vadd.f32 %v3166, %v3274
        %3276 = vmatprep.mubr.f32.mxu0 0.0
        %v3277 = vand.u32 %v1143, 4294901760
        %3278 = vmatmul.mubr.f32.gmra.mxu0 %v3277
        %v3279 = vpop.f32.mrf.mxu0
        %v3280 = vadd.f32 %v3171, %v3279
        %v3281 = vpop.f32.mrf.mxu0
        %v3282 = vadd.f32 %v3173, %v3281
        %3283 = vmatprep.mubr.f32.mxu0 0.0
        %v3284 = vand.u32 %v1146, 4294901760
        %3285 = vmatmul.mubr.f32.gmra.mxu0 %v3284
        %v3286 = vpop.f32.mrf.mxu0
        %v3287 = vadd.f32 %v3178, %v3286
        %v3288 = vpop.f32.mrf.mxu0
        %v3289 = vadd.f32 %v3180, %v3288
        %3290 = vmatprep.mubr.f32.mxu0 0.0
        %v3291 = vand.u32 %v1149, 4294901760
        %3292 = vmatmul.mubr.f32.gmra.mxu0 %v3291
        %v3293 = vpop.f32.mrf.mxu0
        %v3294 = vadd.f32 %v3185, %v3293
        %v3295 = vpop.f32.mrf.mxu0
        %v3296 = vadd.f32 %v3187, %v3295
        %3297 = vmatprep.mubr.f32.mxu0 0.0
        %v3298 = vand.u32 %v1152, 4294901760
        %3299 = vmatmul.mubr.f32.gmra.mxu0 %v3298
        %v3300 = vpop.f32.mrf.mxu0
        %v3301 = vadd.f32 %v3192, %v3300
        %v3302 = vpop.f32.mrf.mxu0
        %v3303 = vadd.f32 %v3194, %v3302
        %3304 = vmatprep.mubr.f32.mxu0 0.0
        %v3305 = vand.u32 %v1155, 4294901760
        %3306 = vmatmul.mubr.f32.gmra.mxu0 %v3305
        %v3307 = vpop.f32.mrf.mxu0
        %v3308 = vadd.f32 %v3199, %v3307
        %v3309 = vpop.f32.mrf.mxu0
        %v3310 = vadd.f32 %v3201, %v3309
        %3311 = vdwg.mxu0
        %3312 = vmatprep.subr.mxu0 0.0
        %3313 = vmatpush1.msra.mxu0 0.0
        %3314 = vmatprep.subr.mxu0 0.0
        %3315 = vmatpush1.msra.mxu0 0.0
        %3316 = vmatprep.subr.mxu0 0.0
        %3317 = vmatpush1.msra.mxu0 0.0
        %3318 = vmatprep.subr.mxu0 0.0
        %3319 = vmatpush1.msra.mxu0 0.0
        %3320 = vmatprep.subr.mxu0 0.0
        %3321 = vmatpush1.msra.mxu0 0.0
        %3322 = vmatprep.subr.mxu0 0.0
        %3323 = vmatpush1.msra.mxu0 0.0
        %3324 = vmatprep.subr.mxu0 0.0
        %3325 = vmatpush1.msra.mxu0 0.0
        %3326 = vmatprep.subr.mxu0 0.0
        %3327 = vmatpush1.msra.mxu0 0.0
        %3328 = vmatprep.subr.mxu0 0.0
        %3329 = vmatpush1.msra.mxu0 0.0
        %3330 = vmatprep.subr.mxu0 0.0
        %3331 = vmatpush1.msra.mxu0 0.0
        %3332 = vmatprep.subr.mxu0 0.0
        %3333 = vmatpush1.msra.mxu0 0.0
        %3334 = vmatprep.subr.mxu0 0.0
        %3335 = vmatpush1.msra.mxu0 0.0
        %3336 = vmatprep.subr.mxu0 0.0
        %3337 = vmatpush1.msra.mxu0 0.0
        %3338 = vmatprep.subr.mxu0 0.0
        %3339 = vmatpush1.msra.mxu0 0.0
        %3340 = vmatprep.subr.mxu0 0.0
        %3341 = vmatpush1.msra.mxu0 0.0
        %v3342 = vand.u32 %v1180, 4294901760
        %3343 = vmatprep.subr.mxu0 %v3342
        %v3344 = vand.u32 %v1177, 4294901760
        %3345 = vmatpush1.msra.mxu0 %v3344
        %3346 = vmatprep.subr.mxu0 0.0
        %3347 = vmatpush2.msra.mxu0 0.0
        %3348 = vmatprep.subr.mxu0 0.0
        %3349 = vmatpush2.msra.mxu0 0.0
        %3350 = vmatprep.subr.mxu0 0.0
        %3351 = vmatpush2.msra.mxu0 0.0
        %3352 = vmatprep.subr.mxu0 0.0
        %3353 = vmatpush2.msra.mxu0 0.0
        %3354 = vmatprep.subr.mxu0 0.0
        %3355 = vmatpush2.msra.mxu0 0.0
        %3356 = vmatprep.subr.mxu0 0.0
        %3357 = vmatpush2.msra.mxu0 0.0
        %3358 = vmatprep.subr.mxu0 0.0
        %3359 = vmatpush2.msra.mxu0 0.0
        %3360 = vmatprep.subr.mxu0 0.0
        %3361 = vmatpush2.msra.mxu0 0.0
        %3362 = vmatprep.subr.mxu0 0.0
        %3363 = vmatpush2.msra.mxu0 0.0
        %3364 = vmatprep.subr.mxu0 0.0
        %3365 = vmatpush2.msra.mxu0 0.0
        %3366 = vmatprep.subr.mxu0 0.0
        %3367 = vmatpush2.msra.mxu0 0.0
        %3368 = vmatprep.subr.mxu0 0.0
        %3369 = vmatpush2.msra.mxu0 0.0
        %3370 = vmatprep.subr.mxu0 0.0
        %3371 = vmatpush2.msra.mxu0 0.0
        %3372 = vmatprep.subr.mxu0 0.0
        %3373 = vmatpush2.msra.mxu0 0.0
        %3374 = vmatprep.subr.mxu0 0.0
        %3375 = vmatpush2.msra.mxu0 0.0
        %3376 = vmatprep.subr.mxu0 0.0
        %3377 = vmatpush2.msra.mxu0 0.0
        %3378 = vmatprep.mubr.f32.mxu0 0.0
        %v3379 = vand.u32 %v1140, 4294901760
        %v3380 = vsub.f32 %v1140, %v3379
        %v3381 = vand.u32 %v3380, 4294901760
        %v3382 = vsub.f32 %v3380, %v3381
        %v3383 = vand.u32 %v3382, 4294901760
        %3384 = vmatmul.mubr.f32.gmra.mxu0 %v3383
        %v3385 = vpop.f32.mrf.mxu0
        %v3386 = vadd.f32 0.0, %v3385
        %v3387 = vpop.f32.mrf.mxu0
        %v3388 = vadd.f32 0.0, %v3387
        %3389 = vmatprep.mubr.f32.mxu0 0.0
        %v3390 = vand.u32 %v1143, 4294901760
        %v3391 = vsub.f32 %v1143, %v3390
        %v3392 = vand.u32 %v3391, 4294901760
        %v3393 = vsub.f32 %v3391, %v3392
        %v3394 = vand.u32 %v3393, 4294901760
        %3395 = vmatmul.mubr.f32.gmra.mxu0 %v3394
        %v3396 = vpop.f32.mrf.mxu0
        %v3397 = vadd.f32 0.0, %v3396
        %v3398 = vpop.f32.mrf.mxu0
        %v3399 = vadd.f32 0.0, %v3398
        %3400 = vmatprep.mubr.f32.mxu0 0.0
        %v3401 = vand.u32 %v1146, 4294901760
        %v3402 = vsub.f32 %v1146, %v3401
        %v3403 = vand.u32 %v3402, 4294901760
        %v3404 = vsub.f32 %v3402, %v3403
        %v3405 = vand.u32 %v3404, 4294901760
        %3406 = vmatmul.mubr.f32.gmra.mxu0 %v3405
        %v3407 = vpop.f32.mrf.mxu0
        %v3408 = vadd.f32 0.0, %v3407
        %v3409 = vpop.f32.mrf.mxu0
        %v3410 = vadd.f32 0.0, %v3409
        %3411 = vmatprep.mubr.f32.mxu0 0.0
        %v3412 = vand.u32 %v1149, 4294901760
        %v3413 = vsub.f32 %v1149, %v3412
        %v3414 = vand.u32 %v3413, 4294901760
        %v3415 = vsub.f32 %v3413, %v3414
        %v3416 = vand.u32 %v3415, 4294901760
        %3417 = vmatmul.mubr.f32.gmra.mxu0 %v3416
        %v3418 = vpop.f32.mrf.mxu0
        %v3419 = vadd.f32 0.0, %v3418
        %v3420 = vpop.f32.mrf.mxu0
        %v3421 = vadd.f32 0.0, %v3420
        %3422 = vmatprep.mubr.f32.mxu0 0.0
        %v3423 = vand.u32 %v1152, 4294901760
        %v3424 = vsub.f32 %v1152, %v3423
        %v3425 = vand.u32 %v3424, 4294901760
        %v3426 = vsub.f32 %v3424, %v3425
        %v3427 = vand.u32 %v3426, 4294901760
        %3428 = vmatmul.mubr.f32.gmra.mxu0 %v3427
        %v3429 = vpop.f32.mrf.mxu0
        %v3430 = vadd.f32 0.0, %v3429
        %v3431 = vpop.f32.mrf.mxu0
        %v3432 = vadd.f32 0.0, %v3431
        %3433 = vmatprep.mubr.f32.mxu0 0.0
        %v3434 = vand.u32 %v1155, 4294901760
        %v3435 = vsub.f32 %v1155, %v3434
        %v3436 = vand.u32 %v3435, 4294901760
        %v3437 = vsub.f32 %v3435, %v3436
        %v3438 = vand.u32 %v3437, 4294901760
        %3439 = vmatmul.mubr.f32.gmra.mxu0 %v3438
        %v3440 = vpop.f32.mrf.mxu0
        %v3441 = vadd.f32 0.0, %v3440
        %v3442 = vpop.f32.mrf.mxu0
        %v3443 = vadd.f32 0.0, %v3442
        %3444 = vdwg.mxu0
        %3445 = vmatprep.subr.mxu0 0.0
        %3446 = vmatpush1.msra.mxu0 0.0
        %3447 = vmatprep.subr.mxu0 0.0
        %3448 = vmatpush1.msra.mxu0 0.0
        %3449 = vmatprep.subr.mxu0 0.0
        %3450 = vmatpush1.msra.mxu0 0.0
        %3451 = vmatprep.subr.mxu0 0.0
        %3452 = vmatpush1.msra.mxu0 0.0
        %3453 = vmatprep.subr.mxu0 0.0
        %3454 = vmatpush1.msra.mxu0 0.0
        %3455 = vmatprep.subr.mxu0 0.0
        %3456 = vmatpush1.msra.mxu0 0.0
        %3457 = vmatprep.subr.mxu0 0.0
        %3458 = vmatpush1.msra.mxu0 0.0
        %3459 = vmatprep.subr.mxu0 0.0
        %3460 = vmatpush1.msra.mxu0 0.0
        %3461 = vmatprep.subr.mxu0 0.0
        %3462 = vmatpush1.msra.mxu0 0.0
        %3463 = vmatprep.subr.mxu0 0.0
        %3464 = vmatpush1.msra.mxu0 0.0
        %3465 = vmatprep.subr.mxu0 0.0
        %3466 = vmatpush1.msra.mxu0 0.0
        %3467 = vmatprep.subr.mxu0 0.0
        %3468 = vmatpush1.msra.mxu0 0.0
        %3469 = vmatprep.subr.mxu0 0.0
        %3470 = vmatpush1.msra.mxu0 0.0
        %3471 = vmatprep.subr.mxu0 0.0
        %3472 = vmatpush1.msra.mxu0 0.0
        %3473 = vmatprep.subr.mxu0 0.0
        %3474 = vmatpush1.msra.mxu0 0.0
        %v3475 = vand.u32 %v1180, 4294901760
        %v3476 = vsub.f32 %v1180, %v3475
        %v3477 = vand.u32 %v3476, 4294901760
        %v3478 = vsub.f32 %v3476, %v3477
        %v3479 = vand.u32 %v3478, 4294901760
        %3480 = vmatprep.subr.mxu0 %v3479
        %v3481 = vand.u32 %v1177, 4294901760
        %v3482 = vsub.f32 %v1177, %v3481
        %v3483 = vand.u32 %v3482, 4294901760
        %v3484 = vsub.f32 %v3482, %v3483
        %v3485 = vand.u32 %v3484, 4294901760
        %3486 = vmatpush1.msra.mxu0 %v3485
        %3487 = vmatprep.subr.mxu0 0.0
        %3488 = vmatpush2.msra.mxu0 0.0
        %3489 = vmatprep.subr.mxu0 0.0
        %3490 = vmatpush2.msra.mxu0 0.0
        %3491 = vmatprep.subr.mxu0 0.0
        %3492 = vmatpush2.msra.mxu0 0.0
        %3493 = vmatprep.subr.mxu0 0.0
        %3494 = vmatpush2.msra.mxu0 0.0
        %3495 = vmatprep.subr.mxu0 0.0
        %3496 = vmatpush2.msra.mxu0 0.0
        %3497 = vmatprep.subr.mxu0 0.0
        %3498 = vmatpush2.msra.mxu0 0.0
        %3499 = vmatprep.subr.mxu0 0.0
        %3500 = vmatpush2.msra.mxu0 0.0
        %3501 = vmatprep.subr.mxu0 0.0
        %3502 = vmatpush2.msra.mxu0 0.0
        %3503 = vmatprep.subr.mxu0 0.0
        %3504 = vmatpush2.msra.mxu0 0.0
        %3505 = vmatprep.subr.mxu0 0.0
        %3506 = vmatpush2.msra.mxu0 0.0
        %3507 = vmatprep.subr.mxu0 0.0
        %3508 = vmatpush2.msra.mxu0 0.0
        %3509 = vmatprep.subr.mxu0 0.0
        %3510 = vmatpush2.msra.mxu0 0.0
        %3511 = vmatprep.subr.mxu0 0.0
        %3512 = vmatpush2.msra.mxu0 0.0
        %3513 = vmatprep.subr.mxu0 0.0
        %3514 = vmatpush2.msra.mxu0 0.0
        %3515 = vmatprep.subr.mxu0 0.0
        %3516 = vmatpush2.msra.mxu0 0.0
        %3517 = vmatprep.subr.mxu0 0.0
        %3518 = vmatpush2.msra.mxu0 0.0
        %3519 = vmatprep.mubr.f32.mxu0 0.0
        %v3520 = vand.u32 %v1140, 4294901760
        %3521 = vmatmul.mubr.f32.gmra.mxu0 %v3520
        %v3522 = vpop.f32.mrf.mxu0
        %v3523 = vadd.f32 %v3386, %v3522
        %v3524 = vpop.f32.mrf.mxu0
        %v3525 = vadd.f32 %v3388, %v3524
        %3526 = vmatprep.mubr.f32.mxu0 0.0
        %v3527 = vand.u32 %v1143, 4294901760
        %3528 = vmatmul.mubr.f32.gmra.mxu0 %v3527
        %v3529 = vpop.f32.mrf.mxu0
        %v3530 = vadd.f32 %v3397, %v3529
        %v3531 = vpop.f32.mrf.mxu0
        %v3532 = vadd.f32 %v3399, %v3531
        %3533 = vmatprep.mubr.f32.mxu0 0.0
        %v3534 = vand.u32 %v1146, 4294901760
        %3535 = vmatmul.mubr.f32.gmra.mxu0 %v3534
        %v3536 = vpop.f32.mrf.mxu0
        %v3537 = vadd.f32 %v3408, %v3536
        %v3538 = vpop.f32.mrf.mxu0
        %v3539 = vadd.f32 %v3410, %v3538
        %3540 = vmatprep.mubr.f32.mxu0 0.0
        %v3541 = vand.u32 %v1149, 4294901760
        %3542 = vmatmul.mubr.f32.gmra.mxu0 %v3541
        %v3543 = vpop.f32.mrf.mxu0
        %v3544 = vadd.f32 %v3419, %v3543
        %v3545 = vpop.f32.mrf.mxu0
        %v3546 = vadd.f32 %v3421, %v3545
        %3547 = vmatprep.mubr.f32.mxu0 0.0
        %v3548 = vand.u32 %v1152, 4294901760
        %3549 = vmatmul.mubr.f32.gmra.mxu0 %v3548
        %v3550 = vpop.f32.mrf.mxu0
        %v3551 = vadd.f32 %v3430, %v3550
        %v3552 = vpop.f32.mrf.mxu0
        %v3553 = vadd.f32 %v3432, %v3552
        %3554 = vmatprep.mubr.f32.mxu0 0.0
        %v3555 = vand.u32 %v1155, 4294901760
        %3556 = vmatmul.mubr.f32.gmra.mxu0 %v3555
        %v3557 = vpop.f32.mrf.mxu0
        %v3558 = vadd.f32 %v3441, %v3557
        %v3559 = vpop.f32.mrf.mxu0
        %v3560 = vadd.f32 %v3443, %v3559
        %3561 = vdwg.mxu0
        %3562 = vmatprep.subr.mxu0 0.0
        %3563 = vmatpush1.msra.mxu0 0.0
        %3564 = vmatprep.subr.mxu0 0.0
        %3565 = vmatpush1.msra.mxu0 0.0
        %3566 = vmatprep.subr.mxu0 0.0
        %3567 = vmatpush1.msra.mxu0 0.0
        %3568 = vmatprep.subr.mxu0 0.0
        %3569 = vmatpush1.msra.mxu0 0.0
        %3570 = vmatprep.subr.mxu0 0.0
        %3571 = vmatpush1.msra.mxu0 0.0
        %3572 = vmatprep.subr.mxu0 0.0
        %3573 = vmatpush1.msra.mxu0 0.0
        %3574 = vmatprep.subr.mxu0 0.0
        %3575 = vmatpush1.msra.mxu0 0.0
        %3576 = vmatprep.subr.mxu0 0.0
        %3577 = vmatpush1.msra.mxu0 0.0
        %3578 = vmatprep.subr.mxu0 0.0
        %3579 = vmatpush1.msra.mxu0 0.0
        %3580 = vmatprep.subr.mxu0 0.0
        %3581 = vmatpush1.msra.mxu0 0.0
        %3582 = vmatprep.subr.mxu0 0.0
        %3583 = vmatpush1.msra.mxu0 0.0
        %3584 = vmatprep.subr.mxu0 0.0
        %3585 = vmatpush1.msra.mxu0 0.0
        %3586 = vmatprep.subr.mxu0 0.0
        %3587 = vmatpush1.msra.mxu0 0.0
        %3588 = vmatprep.subr.mxu0 0.0
        %3589 = vmatpush1.msra.mxu0 0.0
        %3590 = vmatprep.subr.mxu0 0.0
        %3591 = vmatpush1.msra.mxu0 0.0
        %v3592 = vand.u32 %v1180, 4294901760
        %v3593 = vsub.f32 %v1180, %v3592
        %3594 = vmatprep.subr.mxu0 %v3593
        %v3595 = vand.u32 %v1177, 4294901760
        %v3596 = vsub.f32 %v1177, %v3595
        %3597 = vmatpush1.msra.mxu0 %v3596
        %3598 = vmatprep.subr.mxu0 0.0
        %3599 = vmatpush2.msra.mxu0 0.0
        %3600 = vmatprep.subr.mxu0 0.0
        %3601 = vmatpush2.msra.mxu0 0.0
        %3602 = vmatprep.subr.mxu0 0.0
        %3603 = vmatpush2.msra.mxu0 0.0
        %3604 = vmatprep.subr.mxu0 0.0
        %3605 = vmatpush2.msra.mxu0 0.0
        %3606 = vmatprep.subr.mxu0 0.0
        %3607 = vmatpush2.msra.mxu0 0.0
        %3608 = vmatprep.subr.mxu0 0.0
        %3609 = vmatpush2.msra.mxu0 0.0
        %3610 = vmatprep.subr.mxu0 0.0
        %3611 = vmatpush2.msra.mxu0 0.0
        %3612 = vmatprep.subr.mxu0 0.0
        %3613 = vmatpush2.msra.mxu0 0.0
        %3614 = vmatprep.subr.mxu0 0.0
        %3615 = vmatpush2.msra.mxu0 0.0
        %3616 = vmatprep.subr.mxu0 0.0
        %3617 = vmatpush2.msra.mxu0 0.0
        %3618 = vmatprep.subr.mxu0 0.0
        %3619 = vmatpush2.msra.mxu0 0.0
        %3620 = vmatprep.subr.mxu0 0.0
        %3621 = vmatpush2.msra.mxu0 0.0
        %3622 = vmatprep.subr.mxu0 0.0
        %3623 = vmatpush2.msra.mxu0 0.0
        %3624 = vmatprep.subr.mxu0 0.0
        %3625 = vmatpush2.msra.mxu0 0.0
        %3626 = vmatprep.subr.mxu0 0.0
        %3627 = vmatpush2.msra.mxu0 0.0
        %3628 = vmatprep.subr.mxu0 0.0
        %3629 = vmatpush2.msra.mxu0 0.0
        %3630 = vmatprep.mubr.f32.mxu0 0.0
        %v3631 = vand.u32 %v1140, 4294901760
        %v3632 = vsub.f32 %v1140, %v3631
        %3633 = vmatmul.mubr.f32.gmra.mxu0 %v3632
        %v3634 = vpop.f32.mrf.mxu0
        %v3635 = vadd.f32 %v3523, %v3634
        %v3636 = vpop.f32.mrf.mxu0
        %v3637 = vadd.f32 %v3525, %v3636
        %3638 = vmatprep.mubr.f32.mxu0 0.0
        %v3639 = vand.u32 %v1143, 4294901760
        %v3640 = vsub.f32 %v1143, %v3639
        %3641 = vmatmul.mubr.f32.gmra.mxu0 %v3640
        %v3642 = vpop.f32.mrf.mxu0
        %v3643 = vadd.f32 %v3530, %v3642
        %v3644 = vpop.f32.mrf.mxu0
        %v3645 = vadd.f32 %v3532, %v3644
        %3646 = vmatprep.mubr.f32.mxu0 0.0
        %v3647 = vand.u32 %v1146, 4294901760
        %v3648 = vsub.f32 %v1146, %v3647
        %3649 = vmatmul.mubr.f32.gmra.mxu0 %v3648
        %v3650 = vpop.f32.mrf.mxu0
        %v3651 = vadd.f32 %v3537, %v3650
        %v3652 = vpop.f32.mrf.mxu0
        %v3653 = vadd.f32 %v3539, %v3652
        %3654 = vmatprep.mubr.f32.mxu0 0.0
        %v3655 = vand.u32 %v1149, 4294901760
        %v3656 = vsub.f32 %v1149, %v3655
        %3657 = vmatmul.mubr.f32.gmra.mxu0 %v3656
        %v3658 = vpop.f32.mrf.mxu0
        %v3659 = vadd.f32 %v3544, %v3658
        %v3660 = vpop.f32.mrf.mxu0
        %v3661 = vadd.f32 %v3546, %v3660
        %3662 = vmatprep.mubr.f32.mxu0 0.0
        %v3663 = vand.u32 %v1152, 4294901760
        %v3664 = vsub.f32 %v1152, %v3663
        %3665 = vmatmul.mubr.f32.gmra.mxu0 %v3664
        %v3666 = vpop.f32.mrf.mxu0
        %v3667 = vadd.f32 %v3551, %v3666
        %v3668 = vpop.f32.mrf.mxu0
        %v3669 = vadd.f32 %v3553, %v3668
        %3670 = vmatprep.mubr.f32.mxu0 0.0
        %v3671 = vand.u32 %v1155, 4294901760
        %v3672 = vsub.f32 %v1155, %v3671
        %3673 = vmatmul.mubr.f32.gmra.mxu0 %v3672
        %v3674 = vpop.f32.mrf.mxu0
        %v3675 = vadd.f32 %v3558, %v3674
        %v3676 = vpop.f32.mrf.mxu0
        %v3677 = vadd.f32 %v3560, %v3676
        %3678 = vdwg.mxu0
        %3679 = vmatprep.subr.mxu0 0.0
        %3680 = vmatpush1.msra.mxu0 0.0
        %3681 = vmatprep.subr.mxu0 0.0
        %3682 = vmatpush1.msra.mxu0 0.0
        %3683 = vmatprep.subr.mxu0 0.0
        %3684 = vmatpush1.msra.mxu0 0.0
        %3685 = vmatprep.subr.mxu0 0.0
        %3686 = vmatpush1.msra.mxu0 0.0
        %3687 = vmatprep.subr.mxu0 0.0
        %3688 = vmatpush1.msra.mxu0 0.0
        %3689 = vmatprep.subr.mxu0 0.0
        %3690 = vmatpush1.msra.mxu0 0.0
        %3691 = vmatprep.subr.mxu0 0.0
        %3692 = vmatpush1.msra.mxu0 0.0
        %3693 = vmatprep.subr.mxu0 0.0
        %3694 = vmatpush1.msra.mxu0 0.0
        %3695 = vmatprep.subr.mxu0 0.0
        %3696 = vmatpush1.msra.mxu0 0.0
        %3697 = vmatprep.subr.mxu0 0.0
        %3698 = vmatpush1.msra.mxu0 0.0
        %3699 = vmatprep.subr.mxu0 0.0
        %3700 = vmatpush1.msra.mxu0 0.0
        %3701 = vmatprep.subr.mxu0 0.0
        %3702 = vmatpush1.msra.mxu0 0.0
        %3703 = vmatprep.subr.mxu0 0.0
        %3704 = vmatpush1.msra.mxu0 0.0
        %3705 = vmatprep.subr.mxu0 0.0
        %3706 = vmatpush1.msra.mxu0 0.0
        %3707 = vmatprep.subr.mxu0 0.0
        %3708 = vmatpush1.msra.mxu0 0.0
        %v3709 = vand.u32 %v1180, 4294901760
        %3710 = vmatprep.subr.mxu0 %v3709
        %v3711 = vand.u32 %v1177, 4294901760
        %3712 = vmatpush1.msra.mxu0 %v3711
        %3713 = vmatprep.subr.mxu0 0.0
        %3714 = vmatpush2.msra.mxu0 0.0
        %3715 = vmatprep.subr.mxu0 0.0
        %3716 = vmatpush2.msra.mxu0 0.0
        %3717 = vmatprep.subr.mxu0 0.0
        %3718 = vmatpush2.msra.mxu0 0.0
        %3719 = vmatprep.subr.mxu0 0.0
        %3720 = vmatpush2.msra.mxu0 0.0
        %3721 = vmatprep.subr.mxu0 0.0
        %3722 = vmatpush2.msra.mxu0 0.0
        %3723 = vmatprep.subr.mxu0 0.0
        %3724 = vmatpush2.msra.mxu0 0.0
        %3725 = vmatprep.subr.mxu0 0.0
        %3726 = vmatpush2.msra.mxu0 0.0
        %3727 = vmatprep.subr.mxu0 0.0
        %3728 = vmatpush2.msra.mxu0 0.0
        %3729 = vmatprep.subr.mxu0 0.0
        %3730 = vmatpush2.msra.mxu0 0.0
        %3731 = vmatprep.subr.mxu0 0.0
        %3732 = vmatpush2.msra.mxu0 0.0
        %3733 = vmatprep.subr.mxu0 0.0
        %3734 = vmatpush2.msra.mxu0 0.0
        %3735 = vmatprep.subr.mxu0 0.0
        %3736 = vmatpush2.msra.mxu0 0.0
        %3737 = vmatprep.subr.mxu0 0.0
        %3738 = vmatpush2.msra.mxu0 0.0
        %3739 = vmatprep.subr.mxu0 0.0
        %3740 = vmatpush2.msra.mxu0 0.0
        %3741 = vmatprep.subr.mxu0 0.0
        %3742 = vmatpush2.msra.mxu0 0.0
        %3743 = vmatprep.subr.mxu0 0.0
        %3744 = vmatpush2.msra.mxu0 0.0
        %3745 = vmatprep.mubr.f32.mxu0 0.0
        %v3746 = vand.u32 %v1140, 4294901760
        %v3747 = vsub.f32 %v1140, %v3746
        %v3748 = vand.u32 %v3747, 4294901760
        %3749 = vmatmul.mubr.f32.gmra.mxu0 %v3748
        %v3750 = vpop.f32.mrf.mxu0
        %v3751 = vadd.f32 %v3635, %v3750
        %v3752 = vpop.f32.mrf.mxu0
        %v3753 = vadd.f32 %v3637, %v3752
        %3754 = vmatprep.mubr.f32.mxu0 0.0
        %v3755 = vand.u32 %v1143, 4294901760
        %v3756 = vsub.f32 %v1143, %v3755
        %v3757 = vand.u32 %v3756, 4294901760
        %3758 = vmatmul.mubr.f32.gmra.mxu0 %v3757
        %v3759 = vpop.f32.mrf.mxu0
        %v3760 = vadd.f32 %v3643, %v3759
        %v3761 = vpop.f32.mrf.mxu0
        %v3762 = vadd.f32 %v3645, %v3761
        %3763 = vmatprep.mubr.f32.mxu0 0.0
        %v3764 = vand.u32 %v1146, 4294901760
        %v3765 = vsub.f32 %v1146, %v3764
        %v3766 = vand.u32 %v3765, 4294901760
        %3767 = vmatmul.mubr.f32.gmra.mxu0 %v3766
        %v3768 = vpop.f32.mrf.mxu0
        %v3769 = vadd.f32 %v3651, %v3768
        %v3770 = vpop.f32.mrf.mxu0
        %v3771 = vadd.f32 %v3653, %v3770
        %3772 = vmatprep.mubr.f32.mxu0 0.0
        %v3773 = vand.u32 %v1149, 4294901760
        %v3774 = vsub.f32 %v1149, %v3773
        %v3775 = vand.u32 %v3774, 4294901760
        %3776 = vmatmul.mubr.f32.gmra.mxu0 %v3775
        %v3777 = vpop.f32.mrf.mxu0
        %v3778 = vadd.f32 %v3659, %v3777
        %v3779 = vpop.f32.mrf.mxu0
        %v3780 = vadd.f32 %v3661, %v3779
        %3781 = vmatprep.mubr.f32.mxu0 0.0
        %v3782 = vand.u32 %v1152, 4294901760
        %v3783 = vsub.f32 %v1152, %v3782
        %v3784 = vand.u32 %v3783, 4294901760
        %3785 = vmatmul.mubr.f32.gmra.mxu0 %v3784
        %v3786 = vpop.f32.mrf.mxu0
        %v3787 = vadd.f32 %v3667, %v3786
        %v3788 = vpop.f32.mrf.mxu0
        %v3789 = vadd.f32 %v3669, %v3788
        %3790 = vmatprep.mubr.f32.mxu0 0.0
        %v3791 = vand.u32 %v1155, 4294901760
        %v3792 = vsub.f32 %v1155, %v3791
        %v3793 = vand.u32 %v3792, 4294901760
        %3794 = vmatmul.mubr.f32.gmra.mxu0 %v3793
        %v3795 = vpop.f32.mrf.mxu0
        %v3796 = vadd.f32 %v3675, %v3795
        %v3797 = vpop.f32.mrf.mxu0
        %v3798 = vadd.f32 %v3677, %v3797
        %3799 = vdwg.mxu0
        %3800 = vmatprep.subr.mxu0 0.0
        %3801 = vmatpush1.msra.mxu0 0.0
        %3802 = vmatprep.subr.mxu0 0.0
        %3803 = vmatpush1.msra.mxu0 0.0
        %3804 = vmatprep.subr.mxu0 0.0
        %3805 = vmatpush1.msra.mxu0 0.0
        %3806 = vmatprep.subr.mxu0 0.0
        %3807 = vmatpush1.msra.mxu0 0.0
        %3808 = vmatprep.subr.mxu0 0.0
        %3809 = vmatpush1.msra.mxu0 0.0
        %3810 = vmatprep.subr.mxu0 0.0
        %3811 = vmatpush1.msra.mxu0 0.0
        %3812 = vmatprep.subr.mxu0 0.0
        %3813 = vmatpush1.msra.mxu0 0.0
        %3814 = vmatprep.subr.mxu0 0.0
        %3815 = vmatpush1.msra.mxu0 0.0
        %3816 = vmatprep.subr.mxu0 0.0
        %3817 = vmatpush1.msra.mxu0 0.0
        %3818 = vmatprep.subr.mxu0 0.0
        %3819 = vmatpush1.msra.mxu0 0.0
        %3820 = vmatprep.subr.mxu0 0.0
        %3821 = vmatpush1.msra.mxu0 0.0
        %3822 = vmatprep.subr.mxu0 0.0
        %3823 = vmatpush1.msra.mxu0 0.0
        %3824 = vmatprep.subr.mxu0 0.0
        %3825 = vmatpush1.msra.mxu0 0.0
        %3826 = vmatprep.subr.mxu0 0.0
        %3827 = vmatpush1.msra.mxu0 0.0
        %3828 = vmatprep.subr.mxu0 0.0
        %3829 = vmatpush1.msra.mxu0 0.0
        %v3830 = vand.u32 %v1180, 4294901760
        %v3831 = vsub.f32 %v1180, %v3830
        %v3832 = vand.u32 %v3831, 4294901760
        %3833 = vmatprep.subr.mxu0 %v3832
        %v3834 = vand.u32 %v1177, 4294901760
        %v3835 = vsub.f32 %v1177, %v3834
        %v3836 = vand.u32 %v3835, 4294901760
        %3837 = vmatpush1.msra.mxu0 %v3836
        %3838 = vmatprep.subr.mxu0 0.0
        %3839 = vmatpush2.msra.mxu0 0.0
        %3840 = vmatprep.subr.mxu0 0.0
        %3841 = vmatpush2.msra.mxu0 0.0
        %3842 = vmatprep.subr.mxu0 0.0
        %3843 = vmatpush2.msra.mxu0 0.0
        %3844 = vmatprep.subr.mxu0 0.0
        %3845 = vmatpush2.msra.mxu0 0.0
        %3846 = vmatprep.subr.mxu0 0.0
        %3847 = vmatpush2.msra.mxu0 0.0
        %3848 = vmatprep.subr.mxu0 0.0
        %3849 = vmatpush2.msra.mxu0 0.0
        %3850 = vmatprep.subr.mxu0 0.0
        %3851 = vmatpush2.msra.mxu0 0.0
        %3852 = vmatprep.subr.mxu0 0.0
        %3853 = vmatpush2.msra.mxu0 0.0
        %3854 = vmatprep.subr.mxu0 0.0
        %3855 = vmatpush2.msra.mxu0 0.0
        %3856 = vmatprep.subr.mxu0 0.0
        %3857 = vmatpush2.msra.mxu0 0.0
        %3858 = vmatprep.subr.mxu0 0.0
        %3859 = vmatpush2.msra.mxu0 0.0
        %3860 = vmatprep.subr.mxu0 0.0
        %3861 = vmatpush2.msra.mxu0 0.0
        %3862 = vmatprep.subr.mxu0 0.0
        %3863 = vmatpush2.msra.mxu0 0.0
        %3864 = vmatprep.subr.mxu0 0.0
        %3865 = vmatpush2.msra.mxu0 0.0
        %3866 = vmatprep.subr.mxu0 0.0
        %3867 = vmatpush2.msra.mxu0 0.0
        %3868 = vmatprep.subr.mxu0 0.0
        %3869 = vmatpush2.msra.mxu0 0.0
        %3870 = vmatprep.mubr.f32.mxu0 0.0
        %v3871 = vand.u32 %v1140, 4294901760
        %3872 = vmatmul.mubr.f32.gmra.mxu0 %v3871
        %v3873 = vpop.f32.mrf.mxu0
        %v3874 = vadd.f32 %v3751, %v3873
        %v3875 = vpop.f32.mrf.mxu0
        %v3876 = vadd.f32 %v3753, %v3875
        %3877 = vmatprep.mubr.f32.mxu0 0.0
        %v3878 = vand.u32 %v1143, 4294901760
        %3879 = vmatmul.mubr.f32.gmra.mxu0 %v3878
        %v3880 = vpop.f32.mrf.mxu0
        %v3881 = vadd.f32 %v3760, %v3880
        %v3882 = vpop.f32.mrf.mxu0
        %v3883 = vadd.f32 %v3762, %v3882
        %3884 = vmatprep.mubr.f32.mxu0 0.0
        %v3885 = vand.u32 %v1146, 4294901760
        %3886 = vmatmul.mubr.f32.gmra.mxu0 %v3885
        %v3887 = vpop.f32.mrf.mxu0
        %v3888 = vadd.f32 %v3769, %v3887
        %v3889 = vpop.f32.mrf.mxu0
        %v3890 = vadd.f32 %v3771, %v3889
        %3891 = vmatprep.mubr.f32.mxu0 0.0
        %v3892 = vand.u32 %v1149, 4294901760
        %3893 = vmatmul.mubr.f32.gmra.mxu0 %v3892
        %v3894 = vpop.f32.mrf.mxu0
        %v3895 = vadd.f32 %v3778, %v3894
        %v3896 = vpop.f32.mrf.mxu0
        %v3897 = vadd.f32 %v3780, %v3896
        %3898 = vmatprep.mubr.f32.mxu0 0.0
        %v3899 = vand.u32 %v1152, 4294901760
        %3900 = vmatmul.mubr.f32.gmra.mxu0 %v3899
        %v3901 = vpop.f32.mrf.mxu0
        %v3902 = vadd.f32 %v3787, %v3901
        %v3903 = vpop.f32.mrf.mxu0
        %v3904 = vadd.f32 %v3789, %v3903
        %3905 = vmatprep.mubr.f32.mxu0 0.0
        %v3906 = vand.u32 %v1155, 4294901760
        %3907 = vmatmul.mubr.f32.gmra.mxu0 %v3906
        %v3908 = vpop.f32.mrf.mxu0
        %v3909 = vadd.f32 %v3796, %v3908
        %v3910 = vpop.f32.mrf.mxu0
        %v3911 = vadd.f32 %v3798, %v3910
        %3912 = vdwg.mxu0
        %3913 = vmatprep.subr.mxu0 0.0
        %3914 = vmatpush1.msra.mxu0 0.0
        %3915 = vmatprep.subr.mxu0 0.0
        %3916 = vmatpush1.msra.mxu0 0.0
        %3917 = vmatprep.subr.mxu0 0.0
        %3918 = vmatpush1.msra.mxu0 0.0
        %3919 = vmatprep.subr.mxu0 0.0
        %3920 = vmatpush1.msra.mxu0 0.0
        %3921 = vmatprep.subr.mxu0 0.0
        %3922 = vmatpush1.msra.mxu0 0.0
        %3923 = vmatprep.subr.mxu0 0.0
        %3924 = vmatpush1.msra.mxu0 0.0
        %3925 = vmatprep.subr.mxu0 0.0
        %3926 = vmatpush1.msra.mxu0 0.0
        %3927 = vmatprep.subr.mxu0 0.0
        %3928 = vmatpush1.msra.mxu0 0.0
        %3929 = vmatprep.subr.mxu0 0.0
        %3930 = vmatpush1.msra.mxu0 0.0
        %3931 = vmatprep.subr.mxu0 0.0
        %3932 = vmatpush1.msra.mxu0 0.0
        %3933 = vmatprep.subr.mxu0 0.0
        %3934 = vmatpush1.msra.mxu0 0.0
        %3935 = vmatprep.subr.mxu0 0.0
        %3936 = vmatpush1.msra.mxu0 0.0
        %3937 = vmatprep.subr.mxu0 0.0
        %3938 = vmatpush1.msra.mxu0 0.0
        %3939 = vmatprep.subr.mxu0 0.0
        %3940 = vmatpush1.msra.mxu0 0.0
        %3941 = vmatprep.subr.mxu0 0.0
        %3942 = vmatpush1.msra.mxu0 0.0
        %v3943 = vand.u32 %v1180, 4294901760
        %3944 = vmatprep.subr.mxu0 %v3943
        %v3945 = vand.u32 %v1177, 4294901760
        %3946 = vmatpush1.msra.mxu0 %v3945
        %3947 = vmatprep.subr.mxu0 0.0
        %3948 = vmatpush2.msra.mxu0 0.0
        %3949 = vmatprep.subr.mxu0 0.0
        %3950 = vmatpush2.msra.mxu0 0.0
        %3951 = vmatprep.subr.mxu0 0.0
        %3952 = vmatpush2.msra.mxu0 0.0
        %3953 = vmatprep.subr.mxu0 0.0
        %3954 = vmatpush2.msra.mxu0 0.0
        %3955 = vmatprep.subr.mxu0 0.0
        %3956 = vmatpush2.msra.mxu0 0.0
        %3957 = vmatprep.subr.mxu0 0.0
        %3958 = vmatpush2.msra.mxu0 0.0
        %3959 = vmatprep.subr.mxu0 0.0
        %3960 = vmatpush2.msra.mxu0 0.0
        %3961 = vmatprep.subr.mxu0 0.0
        %3962 = vmatpush2.msra.mxu0 0.0
        %3963 = vmatprep.subr.mxu0 0.0
        %3964 = vmatpush2.msra.mxu0 0.0
        %3965 = vmatprep.subr.mxu0 0.0
        %3966 = vmatpush2.msra.mxu0 0.0
        %3967 = vmatprep.subr.mxu0 0.0
        %3968 = vmatpush2.msra.mxu0 0.0
        %3969 = vmatprep.subr.mxu0 0.0
        %3970 = vmatpush2.msra.mxu0 0.0
        %3971 = vmatprep.subr.mxu0 0.0
        %3972 = vmatpush2.msra.mxu0 0.0
        %3973 = vmatprep.subr.mxu0 0.0
        %3974 = vmatpush2.msra.mxu0 0.0
        %3975 = vmatprep.subr.mxu0 0.0
        %3976 = vmatpush2.msra.mxu0 0.0
        %3977 = vmatprep.subr.mxu0 0.0
        %3978 = vmatpush2.msra.mxu0 0.0
        %3979 = vmatprep.mubr.f32.mxu0 0.0
        %v3980 = vand.u32 %v1140, 4294901760
        %3981 = vmatmul.mubr.f32.gmra.mxu0 %v3980
        %v3982 = vpop.f32.mrf.mxu0
        %v3983 = vadd.f32 %v3874, %v3982
        %v3984 = vpop.f32.mrf.mxu0
        %v3985 = vadd.f32 %v3876, %v3984
        %3986 = vmatprep.mubr.f32.mxu0 0.0
        %v3987 = vand.u32 %v1143, 4294901760
        %3988 = vmatmul.mubr.f32.gmra.mxu0 %v3987
        %v3989 = vpop.f32.mrf.mxu0
        %v3990 = vadd.f32 %v3881, %v3989
        %v3991 = vpop.f32.mrf.mxu0
        %v3992 = vadd.f32 %v3883, %v3991
        %3993 = vmatprep.mubr.f32.mxu0 0.0
        %v3994 = vand.u32 %v1146, 4294901760
        %3995 = vmatmul.mubr.f32.gmra.mxu0 %v3994
        %v3996 = vpop.f32.mrf.mxu0
        %v3997 = vadd.f32 %v3888, %v3996
        %v3998 = vpop.f32.mrf.mxu0
        %v3999 = vadd.f32 %v3890, %v3998
        %4000 = vmatprep.mubr.f32.mxu0 0.0
        %v4001 = vand.u32 %v1149, 4294901760
        %4002 = vmatmul.mubr.f32.gmra.mxu0 %v4001
        %v4003 = vpop.f32.mrf.mxu0
        %v4004 = vadd.f32 %v3895, %v4003
        %v4005 = vpop.f32.mrf.mxu0
        %v4006 = vadd.f32 %v3897, %v4005
        %4007 = vmatprep.mubr.f32.mxu0 0.0
        %v4008 = vand.u32 %v1152, 4294901760
        %4009 = vmatmul.mubr.f32.gmra.mxu0 %v4008
        %v4010 = vpop.f32.mrf.mxu0
        %v4011 = vadd.f32 %v3902, %v4010
        %v4012 = vpop.f32.mrf.mxu0
        %v4013 = vadd.f32 %v3904, %v4012
        %4014 = vmatprep.mubr.f32.mxu0 0.0
        %v4015 = vand.u32 %v1155, 4294901760
        %4016 = vmatmul.mubr.f32.gmra.mxu0 %v4015
        %v4017 = vpop.f32.mrf.mxu0
        %v4018 = vadd.f32 %v3909, %v4017
        %v4019 = vpop.f32.mrf.mxu0
        %v4020 = vadd.f32 %v3911, %v4019
        %4021 = vdwg.mxu0
        %4022 = vst [vmem:[#allocation2] sm:$0xff] %v1853
        %4023 = vst [vmem:[#allocation2 + $0x8] sm:$0xff] %v1855
        %4024 = vst [vmem:[#allocation2 + $0x10] sm:$0xff] %v2563
        %4025 = vst [vmem:[#allocation2 + $0x18] sm:$0xff] %v2565
        %4026 = vst [vmem:[#allocation2 + $0x20] sm:$0xff] %v3273
        %4027 = vst [vmem:[#allocation2 + $0x28] sm:$0xff] %v3275
        %4028 = vst [vmem:[#allocation2 + $0x30] sm:$0xff] %v3983
        %4029 = vst [vmem:[#allocation2 + $0x38] sm:$0xff] %v3985
        %4030 = vst [vmem:[#allocation2 + $0x40] sm:$0xff] %v1860
        %4031 = vst [vmem:[#allocation2 + $0x48] sm:$0xff] %v1862
        %4032 = vst [vmem:[#allocation2 + $0x50] sm:$0xff] %v2570
        %4033 = vst [vmem:[#allocation2 + $0x58] sm:$0xff] %v2572
        %4034 = vst [vmem:[#allocation2 + $0x60] sm:$0xff] %v3280
        %4035 = vst [vmem:[#allocation2 + $0x68] sm:$0xff] %v3282
        %4036 = vst [vmem:[#allocation2 + $0x70] sm:$0xff] %v3990
        %4037 = vst [vmem:[#allocation2 + $0x78] sm:$0xff] %v3992
        %4038 = vst [vmem:[#allocation2 + $0x80] sm:$0xff] %v1867
        %4039 = vst [vmem:[#allocation2 + $0x88] sm:$0xff] %v1869
        %4040 = vst [vmem:[#allocation2 + $0x90] sm:$0xff] %v2577
        %4041 = vst [vmem:[#allocation2 + $0x98] sm:$0xff] %v2579
        %4042 = vst [vmem:[#allocation2 + $0xa0] sm:$0xff] %v3287
        %4043 = vst [vmem:[#allocation2 + $0xa8] sm:$0xff] %v3289
        %4044 = vst [vmem:[#allocation2 + $0xb0] sm:$0xff] %v3997
        %4045 = vst [vmem:[#allocation2 + $0xb8] sm:$0xff] %v3999
        %4046 = vst [vmem:[#allocation2 + $0xc0] sm:$0xff] %v1874
        %4047 = vst [vmem:[#allocation2 + $0xc8] sm:$0xff] %v1876
        %4048 = vst [vmem:[#allocation2 + $0xd0] sm:$0xff] %v2584
        %4049 = vst [vmem:[#allocation2 + $0xd8] sm:$0xff] %v2586
        %4050 = vst [vmem:[#allocation2 + $0xe0] sm:$0xff] %v3294
        %4051 = vst [vmem:[#allocation2 + $0xe8] sm:$0xff] %v3296
        %4052 = vst [vmem:[#allocation2 + $0xf0] sm:$0xff] %v4004
        %4053 = vst [vmem:[#allocation2 + $0xf8] sm:$0xff] %v4006
        %4054 = vst [vmem:[#allocation2 + $0x100] sm:$0xff] %v1881
        %4055 = vst [vmem:[#allocation2 + $0x108] sm:$0xff] %v1883
        %4056 = vst [vmem:[#allocation2 + $0x110] sm:$0xff] %v2591
        %4057 = vst [vmem:[#allocation2 + $0x118] sm:$0xff] %v2593
        %4058 = vst [vmem:[#allocation2 + $0x120] sm:$0xff] %v3301
        %4059 = vst [vmem:[#allocation2 + $0x128] sm:$0xff] %v3303
        %4060 = vst [vmem:[#allocation2 + $0x130] sm:$0xff] %v4011
        %4061 = vst [vmem:[#allocation2 + $0x138] sm:$0xff] %v4013
        %4062 = vst [vmem:[#allocation2 + $0x140] sm:$0xff] %v1888
        %4063 = vst [vmem:[#allocation2 + $0x148] sm:$0xff] %v1890
        %4064 = vst [vmem:[#allocation2 + $0x150] sm:$0xff] %v2598
        %4065 = vst [vmem:[#allocation2 + $0x158] sm:$0xff] %v2600
        %4066 = vst [vmem:[#allocation2 + $0x160] sm:$0xff] %v3308
        %4067 = vst [vmem:[#allocation2 + $0x168] sm:$0xff] %v3310
        %4068 = vst [vmem:[#allocation2 + $0x170] sm:$0xff] %v4018
        %4069 = vst [vmem:[#allocation2 + $0x178] sm:$0xff] %v4020
        %v4070 = vld [vmem:[#allocation2] sm:$0xff]
        %v4071 = vld [vmem:[#allocation2 + $0x8] sm:$0xff]
        %v4072 = vld [vmem:[#allocation2 + $0x10] sm:$0xff]
        %v4073 = vld [vmem:[#allocation2 + $0x18] sm:$0xff]
        %v4074 = vld [vmem:[#allocation2 + $0x20] sm:$0xff]
        %v4075 = vld [vmem:[#allocation2 + $0x28] sm:$0xff]
        %v4076 = vld [vmem:[#allocation2 + $0x30] sm:$0xff]
        %v4077 = vld [vmem:[#allocation2 + $0x38] sm:$0xff]
        %v4078 = vld [vmem:[#allocation2 + $0x40] sm:$0xff]
        %v4079 = vld [vmem:[#allocation2 + $0x48] sm:$0xff]
        %v4080 = vld [vmem:[#allocation2 + $0x50] sm:$0xff]
        %v4081 = vld [vmem:[#allocation2 + $0x58] sm:$0xff]
        %v4082 = vld [vmem:[#allocation2 + $0x60] sm:$0xff]
        %v4083 = vld [vmem:[#allocation2 + $0x68] sm:$0xff]
        %v4084 = vld [vmem:[#allocation2 + $0x70] sm:$0xff]
        %v4085 = vld [vmem:[#allocation2 + $0x78] sm:$0xff]
        %v4086 = vlaneseq
        %v4087 = vshrl.u32 %v4086, 7
        %v4088 = vsub.s32 0, %v4087
        %v4089 = vrot.slane %v854, %v4088
        %v4090 = vlaneseq
        %v4091 = vshrl.u32 %v4090, 7
        %v4092 = vsub.s32 0, %v4091
        %v4093 = vrot.slane %v855, %v4092
        %v4094 = vlaneseq
        %v4095 = vshrl.u32 %v4094, 7
        %v4096 = vsub.s32 0, %v4095
        %v4097 = vrot.slane %v856, %v4096
        %v4098 = vlaneseq
        %v4099 = vshrl.u32 %v4098, 7
        %v4100 = vsub.s32 0, %v4099
        %v4101 = vrot.slane %v857, %v4100
        %v4102 = vlaneseq
        %v4103 = vshrl.u32 %v4102, 7
        %v4104 = vsub.s32 0, %v4103
        %v4105 = vrot.slane %v858, %v4104
        %v4106 = vlaneseq
        %v4107 = vshrl.u32 %v4106, 7
        %v4108 = vsub.s32 0, %v4107
        %v4109 = vrot.slane %v859, %v4108
        %v4110 = vlaneseq
        %v4111 = vshrl.u32 %v4110, 7
        %v4112 = vsub.s32 0, %v4111
        %v4113 = vrot.slane %v860, %v4112
        %v4114 = vlaneseq
        %v4115 = vshrl.u32 %v4114, 7
        %v4116 = vsub.s32 0, %v4115
        %v4117 = vrot.slane %v861, %v4116
        %v4118 = vmul.f32 %v4070, %v4089
        %v4119 = vmul.f32 %v4071, %v4093
        %v4120 = vmul.f32 %v4072, %v4097
        %v4121 = vmul.f32 %v4073, %v4101
        %v4122 = vmul.f32 %v4074, %v4105
        %v4123 = vmul.f32 %v4075, %v4109
        %v4124 = vmul.f32 %v4076, %v4113
        %v4125 = vmul.f32 %v4077, %v4117
        %v4126 = vmul.f32 %v4078, %v4089
        %v4127 = vmul.f32 %v4079, %v4093
        %v4128 = vmul.f32 %v4080, %v4097
        %v4129 = vmul.f32 %v4081, %v4101
        %v4130 = vmul.f32 %v4082, %v4105
        %v4131 = vmul.f32 %v4083, %v4109
        %v4132 = vmul.f32 %v4084, %v4113
        %v4133 = vmul.f32 %v4085, %v4117
        %v4134 = vld [vmem:[#allocation2 + $0x80] sm:$0xff]
        %v4135 = vld [vmem:[#allocation2 + $0x88] sm:$0xff]
        %v4136 = vld [vmem:[#allocation2 + $0x90] sm:$0xff]
        %v4137 = vld [vmem:[#allocation2 + $0x98] sm:$0xff]
        %v4138 = vld [vmem:[#allocation2 + $0xa0] sm:$0xff]
        %v4139 = vld [vmem:[#allocation2 + $0xa8] sm:$0xff]
        %v4140 = vld [vmem:[#allocation2 + $0xb0] sm:$0xff]
        %v4141 = vld [vmem:[#allocation2 + $0xb8] sm:$0xff]
        %v4142 = vld [vmem:[#allocation2 + $0xc0] sm:$0xff]
        %v4143 = vld [vmem:[#allocation2 + $0xc8] sm:$0xff]
        %v4144 = vld [vmem:[#allocation2 + $0xd0] sm:$0xff]
        %v4145 = vld [vmem:[#allocation2 + $0xd8] sm:$0xff]
        %v4146 = vld [vmem:[#allocation2 + $0xe0] sm:$0xff]
        %v4147 = vld [vmem:[#allocation2 + $0xe8] sm:$0xff]
        %v4148 = vld [vmem:[#allocation2 + $0xf0] sm:$0xff]
        %v4149 = vld [vmem:[#allocation2 + $0xf8] sm:$0xff]
        %v4150 = vlaneseq
        %v4151 = vshrl.u32 %v4150, 7
        %v4152 = vsub.s32 1, %v4151
        %v4153 = vrot.slane %v854, %v4152
        %v4154 = vlaneseq
        %v4155 = vshrl.u32 %v4154, 7
        %v4156 = vsub.s32 1, %v4155
        %v4157 = vrot.slane %v855, %v4156
        %v4158 = vlaneseq
        %v4159 = vshrl.u32 %v4158, 7
        %v4160 = vsub.s32 1, %v4159
        %v4161 = vrot.slane %v856, %v4160
        %v4162 = vlaneseq
        %v4163 = vshrl.u32 %v4162, 7
        %v4164 = vsub.s32 1, %v4163
        %v4165 = vrot.slane %v857, %v4164
        %v4166 = vlaneseq
        %v4167 = vshrl.u32 %v4166, 7
        %v4168 = vsub.s32 1, %v4167
        %v4169 = vrot.slane %v858, %v4168
        %v4170 = vlaneseq
        %v4171 = vshrl.u32 %v4170, 7
        %v4172 = vsub.s32 1, %v4171
        %v4173 = vrot.slane %v859, %v4172
        %v4174 = vlaneseq
        %v4175 = vshrl.u32 %v4174, 7
        %v4176 = vsub.s32 1, %v4175
        %v4177 = vrot.slane %v860, %v4176
        %v4178 = vlaneseq
        %v4179 = vshrl.u32 %v4178, 7
        %v4180 = vsub.s32 1, %v4179
        %v4181 = vrot.slane %v861, %v4180
        %v4182 = vmul.f32 %v4134, %v4153
        %v4183 = vmul.f32 %v4135, %v4157
        %v4184 = vmul.f32 %v4136, %v4161
        %v4185 = vmul.f32 %v4137, %v4165
        %v4186 = vmul.f32 %v4138, %v4169
        %v4187 = vmul.f32 %v4139, %v4173
        %v4188 = vmul.f32 %v4140, %v4177
        %v4189 = vmul.f32 %v4141, %v4181
        %v4190 = vmul.f32 %v4142, %v4153
        %v4191 = vmul.f32 %v4143, %v4157
        %v4192 = vmul.f32 %v4144, %v4161
        %v4193 = vmul.f32 %v4145, %v4165
        %v4194 = vmul.f32 %v4146, %v4169
        %v4195 = vmul.f32 %v4147, %v4173
        %v4196 = vmul.f32 %v4148, %v4177
        %v4197 = vmul.f32 %v4149, %v4181
        %v4198 = vadd.f32 %v4118, %v4182
        %v4199 = vadd.f32 %v4119, %v4183
        %v4200 = vadd.f32 %v4120, %v4184
        %v4201 = vadd.f32 %v4121, %v4185
        %v4202 = vadd.f32 %v4122, %v4186
        %v4203 = vadd.f32 %v4123, %v4187
        %v4204 = vadd.f32 %v4124, %v4188
        %v4205 = vadd.f32 %v4125, %v4189
        %v4206 = vadd.f32 %v4126, %v4190
        %v4207 = vadd.f32 %v4127, %v4191
        %v4208 = vadd.f32 %v4128, %v4192
        %v4209 = vadd.f32 %v4129, %v4193
        %v4210 = vadd.f32 %v4130, %v4194
        %v4211 = vadd.f32 %v4131, %v4195
        %v4212 = vadd.f32 %v4132, %v4196
        %v4213 = vadd.f32 %v4133, %v4197
        %v4214 = vld [vmem:[#allocation2 + $0x100] sm:$0xff]
        %v4215 = vld [vmem:[#allocation2 + $0x108] sm:$0xff]
        %v4216 = vld [vmem:[#allocation2 + $0x110] sm:$0xff]
        %v4217 = vld [vmem:[#allocation2 + $0x118] sm:$0xff]
        %v4218 = vld [vmem:[#allocation2 + $0x120] sm:$0xff]
        %v4219 = vld [vmem:[#allocation2 + $0x128] sm:$0xff]
        %v4220 = vld [vmem:[#allocation2 + $0x130] sm:$0xff]
        %v4221 = vld [vmem:[#allocation2 + $0x138] sm:$0xff]
        %v4222 = vld [vmem:[#allocation2 + $0x140] sm:$0xff]
        %v4223 = vld [vmem:[#allocation2 + $0x148] sm:$0xff]
        %v4224 = vld [vmem:[#allocation2 + $0x150] sm:$0xff]
        %v4225 = vld [vmem:[#allocation2 + $0x158] sm:$0xff]
        %v4226 = vld [vmem:[#allocation2 + $0x160] sm:$0xff]
        %v4227 = vld [vmem:[#allocation2 + $0x168] sm:$0xff]
        %v4228 = vld [vmem:[#allocation2 + $0x170] sm:$0xff]
        %v4229 = vld [vmem:[#allocation2 + $0x178] sm:$0xff]
        %v4230 = vlaneseq
        %v4231 = vshrl.u32 %v4230, 7
        %v4232 = vsub.s32 2, %v4231
        %v4233 = vrot.slane %v854, %v4232
        %v4234 = vlaneseq
        %v4235 = vshrl.u32 %v4234, 7
        %v4236 = vsub.s32 2, %v4235
        %v4237 = vrot.slane %v855, %v4236
        %v4238 = vlaneseq
        %v4239 = vshrl.u32 %v4238, 7
        %v4240 = vsub.s32 2, %v4239
        %v4241 = vrot.slane %v856, %v4240
        %v4242 = vlaneseq
        %v4243 = vshrl.u32 %v4242, 7
        %v4244 = vsub.s32 2, %v4243
        %v4245 = vrot.slane %v857, %v4244
        %v4246 = vlaneseq
        %v4247 = vshrl.u32 %v4246, 7
        %v4248 = vsub.s32 2, %v4247
        %v4249 = vrot.slane %v858, %v4248
        %v4250 = vlaneseq
        %v4251 = vshrl.u32 %v4250, 7
        %v4252 = vsub.s32 2, %v4251
        %v4253 = vrot.slane %v859, %v4252
        %v4254 = vlaneseq
        %v4255 = vshrl.u32 %v4254, 7
        %v4256 = vsub.s32 2, %v4255
        %v4257 = vrot.slane %v860, %v4256
        %v4258 = vlaneseq
        %v4259 = vshrl.u32 %v4258, 7
        %v4260 = vsub.s32 2, %v4259
        %v4261 = vrot.slane %v861, %v4260
        %v4262 = vmul.f32 %v4214, %v4233
        %v4263 = vmul.f32 %v4215, %v4237
        %v4264 = vmul.f32 %v4216, %v4241
        %v4265 = vmul.f32 %v4217, %v4245
        %v4266 = vmul.f32 %v4218, %v4249
        %v4267 = vmul.f32 %v4219, %v4253
        %v4268 = vmul.f32 %v4220, %v4257
        %v4269 = vmul.f32 %v4221, %v4261
        %v4270 = vmul.f32 %v4222, %v4233
        %v4271 = vmul.f32 %v4223, %v4237
        %v4272 = vmul.f32 %v4224, %v4241
        %v4273 = vmul.f32 %v4225, %v4245
        %v4274 = vmul.f32 %v4226, %v4249
        %v4275 = vmul.f32 %v4227, %v4253
        %v4276 = vmul.f32 %v4228, %v4257
        %v4277 = vmul.f32 %v4229, %v4261
        %v4278 = vadd.f32 %v4198, %v4262
        %v4279 = vadd.f32 %v4199, %v4263
        %v4280 = vadd.f32 %v4200, %v4264
        %v4281 = vadd.f32 %v4201, %v4265
        %v4282 = vadd.f32 %v4202, %v4266
        %v4283 = vadd.f32 %v4203, %v4267
        %v4284 = vadd.f32 %v4204, %v4268
        %v4285 = vadd.f32 %v4205, %v4269
        %v4286 = vadd.f32 %v4206, %v4270
        %v4287 = vadd.f32 %v4207, %v4271
        %v4288 = vadd.f32 %v4208, %v4272
        %v4289 = vadd.f32 %v4209, %v4273
        %v4290 = vadd.f32 %v4210, %v4274
        %v4291 = vadd.f32 %v4211, %v4275
        %v4292 = vadd.f32 %v4212, %v4276
        %v4293 = vadd.f32 %v4213, %v4277
        %v4294 = vlaneseq
        %v4295 = vshrl.u32 %v4294, 7
        %v4296 = vsub.s32 0, %v4295
        %v4297 = vrot.slane %v584, %v4296
        %v4298 = vlaneseq
        %v4299 = vshrl.u32 %v4298, 7
        %v4300 = vsub.s32 0, %v4299
        %v4301 = vrot.slane %v585, %v4300
        %v4302 = vlaneseq
        %v4303 = vshrl.u32 %v4302, 7
        %v4304 = vsub.s32 0, %v4303
        %v4305 = vrot.slane %v586, %v4304
        %v4306 = vlaneseq
        %v4307 = vshrl.u32 %v4306, 7
        %v4308 = vsub.s32 0, %v4307
        %v4309 = vrot.slane %v587, %v4308
        %v4310 = vlaneseq
        %v4311 = vshrl.u32 %v4310, 7
        %v4312 = vsub.s32 0, %v4311
        %v4313 = vrot.slane %v588, %v4312
        %v4314 = vlaneseq
        %v4315 = vshrl.u32 %v4314, 7
        %v4316 = vsub.s32 0, %v4315
        %v4317 = vrot.slane %v589, %v4316
        %v4318 = vlaneseq
        %v4319 = vshrl.u32 %v4318, 7
        %v4320 = vsub.s32 0, %v4319
        %v4321 = vrot.slane %v590, %v4320
        %v4322 = vlaneseq
        %v4323 = vshrl.u32 %v4322, 7
        %v4324 = vsub.s32 0, %v4323
        %v4325 = vrot.slane %v591, %v4324
        %v4326 = vmul.f32 %v4278, %v4297
        %v4327 = vmul.f32 %v4279, %v4301
        %v4328 = vmul.f32 %v4280, %v4305
        %v4329 = vmul.f32 %v4281, %v4309
        %v4330 = vmul.f32 %v4282, %v4313
        %v4331 = vmul.f32 %v4283, %v4317
        %v4332 = vmul.f32 %v4284, %v4321
        %v4333 = vmul.f32 %v4285, %v4325
        %v4334 = vlaneseq
        %v4335 = vshrl.u32 %v4334, 7
        %v4336 = vsub.s32 1, %v4335
        %v4337 = vrot.slane %v584, %v4336
        %v4338 = vlaneseq
        %v4339 = vshrl.u32 %v4338, 7
        %v4340 = vsub.s32 1, %v4339
        %v4341 = vrot.slane %v585, %v4340
        %v4342 = vlaneseq
        %v4343 = vshrl.u32 %v4342, 7
        %v4344 = vsub.s32 1, %v4343
        %v4345 = vrot.slane %v586, %v4344
        %v4346 = vlaneseq
        %v4347 = vshrl.u32 %v4346, 7
        %v4348 = vsub.s32 1, %v4347
        %v4349 = vrot.slane %v587, %v4348
        %v4350 = vlaneseq
        %v4351 = vshrl.u32 %v4350, 7
        %v4352 = vsub.s32 1, %v4351
        %v4353 = vrot.slane %v588, %v4352
        %v4354 = vlaneseq
        %v4355 = vshrl.u32 %v4354, 7
        %v4356 = vsub.s32 1, %v4355
        %v4357 = vrot.slane %v589, %v4356
        %v4358 = vlaneseq
        %v4359 = vshrl.u32 %v4358, 7
        %v4360 = vsub.s32 1, %v4359
        %v4361 = vrot.slane %v590, %v4360
        %v4362 = vlaneseq
        %v4363 = vshrl.u32 %v4362, 7
        %v4364 = vsub.s32 1, %v4363
        %v4365 = vrot.slane %v591, %v4364
        %v4366 = vmul.f32 %v4278, %v4337
        %v4367 = vmul.f32 %v4279, %v4341
        %v4368 = vmul.f32 %v4280, %v4345
        %v4369 = vmul.f32 %v4281, %v4349
        %v4370 = vmul.f32 %v4282, %v4353
        %v4371 = vmul.f32 %v4283, %v4357
        %v4372 = vmul.f32 %v4284, %v4361
        %v4373 = vmul.f32 %v4285, %v4365
        %v4382 = vrot.slane %v4366, 3
        %v4383 = vrot.slane %v4367, 3
        %v4384 = vrot.slane %v4368, 3
        %v4385 = vrot.slane %v4369, 3
        %v4386 = vrot.slane %v4370, 3
        %v4387 = vrot.slane %v4371, 3
        %v4388 = vrot.slane %v4372, 3
        %v4389 = vrot.slane %v4373, 3
        %v4398 = vadd.f32 %v4326, %v4382
        %v4399 = vadd.f32 %v4327, %v4383
        %v4400 = vadd.f32 %v4328, %v4384
        %v4401 = vadd.f32 %v4329, %v4385
        %v4402 = vadd.f32 %v4330, %v4386
        %v4403 = vadd.f32 %v4331, %v4387
        %v4404 = vadd.f32 %v4332, %v4388
        %v4405 = vadd.f32 %v4333, %v4389
        %v4406 = vlaneseq
        %v4407 = vshrl.u32 %v4406, 7
        %v4408 = vsub.s32 2, %v4407
        %v4409 = vrot.slane %v584, %v4408
        %v4410 = vlaneseq
        %v4411 = vshrl.u32 %v4410, 7
        %v4412 = vsub.s32 2, %v4411
        %v4413 = vrot.slane %v585, %v4412
        %v4414 = vlaneseq
        %v4415 = vshrl.u32 %v4414, 7
        %v4416 = vsub.s32 2, %v4415
        %v4417 = vrot.slane %v586, %v4416
        %v4418 = vlaneseq
        %v4419 = vshrl.u32 %v4418, 7
        %v4420 = vsub.s32 2, %v4419
        %v4421 = vrot.slane %v587, %v4420
        %v4422 = vlaneseq
        %v4423 = vshrl.u32 %v4422, 7
        %v4424 = vsub.s32 2, %v4423
        %v4425 = vrot.slane %v588, %v4424
        %v4426 = vlaneseq
        %v4427 = vshrl.u32 %v4426, 7
        %v4428 = vsub.s32 2, %v4427
        %v4429 = vrot.slane %v589, %v4428
        %v4430 = vlaneseq
        %v4431 = vshrl.u32 %v4430, 7
        %v4432 = vsub.s32 2, %v4431
        %v4433 = vrot.slane %v590, %v4432
        %v4434 = vlaneseq
        %v4435 = vshrl.u32 %v4434, 7
        %v4436 = vsub.s32 2, %v4435
        %v4437 = vrot.slane %v591, %v4436
        %v4438 = vmul.f32 %v4278, %v4409
        %v4439 = vmul.f32 %v4279, %v4413
        %v4440 = vmul.f32 %v4280, %v4417
        %v4441 = vmul.f32 %v4281, %v4421
        %v4442 = vmul.f32 %v4282, %v4425
        %v4443 = vmul.f32 %v4283, %v4429
        %v4444 = vmul.f32 %v4284, %v4433
        %v4445 = vmul.f32 %v4285, %v4437
        %v4446 = vmul.f32 %v4286, %v4409
        %v4447 = vmul.f32 %v4287, %v4413
        %v4448 = vmul.f32 %v4288, %v4417
        %v4449 = vmul.f32 %v4289, %v4421
        %v4450 = vmul.f32 %v4290, %v4425
        %v4451 = vmul.f32 %v4291, %v4429
        %v4452 = vmul.f32 %v4292, %v4433
        %v4453 = vmul.f32 %v4293, %v4437
        %vm4470 = vcmask 1041408
        %v4471 = vrot.slane %v4438, 6
        %v4472 = vrot.slane %v4446, 6
        %v4473 = vsel %vm4470, %v4471, %v4472
        %v4474 = vrot.slane %v4439, 6
        %v4475 = vrot.slane %v4447, 6
        %v4476 = vsel %vm4470, %v4474, %v4475
        %v4477 = vrot.slane %v4440, 6
        %v4478 = vrot.slane %v4448, 6
        %v4479 = vsel %vm4470, %v4477, %v4478
        %v4480 = vrot.slane %v4441, 6
        %v4481 = vrot.slane %v4449, 6
        %v4482 = vsel %vm4470, %v4480, %v4481
        %v4483 = vrot.slane %v4442, 6
        %v4484 = vrot.slane %v4450, 6
        %v4485 = vsel %vm4470, %v4483, %v4484
        %v4486 = vrot.slane %v4443, 6
        %v4487 = vrot.slane %v4451, 6
        %v4488 = vsel %vm4470, %v4486, %v4487
        %v4489 = vrot.slane %v4444, 6
        %v4490 = vrot.slane %v4452, 6
        %v4491 = vsel %vm4470, %v4489, %v4490
        %v4492 = vrot.slane %v4445, 6
        %v4493 = vrot.slane %v4453, 6
        %v4494 = vsel %vm4470, %v4492, %v4493
        %v4503 = vadd.f32 %v4398, %v4473
        %v4504 = vadd.f32 %v4399, %v4476
        %v4505 = vadd.f32 %v4400, %v4479
        %v4506 = vadd.f32 %v4401, %v4482
        %v4507 = vadd.f32 %v4402, %v4485
        %v4508 = vadd.f32 %v4403, %v4488
        %v4509 = vadd.f32 %v4404, %v4491
        %v4510 = vadd.f32 %v4405, %v4494
        %v4511 = vlaneseq
        %v4512 = vshrl.u32 %v4511, 7
        %v4513 = vsub.s32 3, %v4512
        %v4514 = vrot.slane %v584, %v4513
        %v4515 = vlaneseq
        %v4516 = vshrl.u32 %v4515, 7
        %v4517 = vsub.s32 3, %v4516
        %v4518 = vrot.slane %v585, %v4517
        %v4519 = vlaneseq
        %v4520 = vshrl.u32 %v4519, 7
        %v4521 = vsub.s32 3, %v4520
        %v4522 = vrot.slane %v586, %v4521
        %v4523 = vlaneseq
        %v4524 = vshrl.u32 %v4523, 7
        %v4525 = vsub.s32 3, %v4524
        %v4526 = vrot.slane %v587, %v4525
        %v4527 = vlaneseq
        %v4528 = vshrl.u32 %v4527, 7
        %v4529 = vsub.s32 3, %v4528
        %v4530 = vrot.slane %v588, %v4529
        %v4531 = vlaneseq
        %v4532 = vshrl.u32 %v4531, 7
        %v4533 = vsub.s32 3, %v4532
        %v4534 = vrot.slane %v589, %v4533
        %v4535 = vlaneseq
        %v4536 = vshrl.u32 %v4535, 7
        %v4537 = vsub.s32 3, %v4536
        %v4538 = vrot.slane %v590, %v4537
        %v4539 = vlaneseq
        %v4540 = vshrl.u32 %v4539, 7
        %v4541 = vsub.s32 3, %v4540
        %v4542 = vrot.slane %v591, %v4541
        %v4543 = vmul.f32 %v4286, %v4514
        %v4544 = vmul.f32 %v4287, %v4518
        %v4545 = vmul.f32 %v4288, %v4522
        %v4546 = vmul.f32 %v4289, %v4526
        %v4547 = vmul.f32 %v4290, %v4530
        %v4548 = vmul.f32 %v4291, %v4534
        %v4549 = vmul.f32 %v4292, %v4538
        %v4550 = vmul.f32 %v4293, %v4542
        %v4559 = vrot.slane %v4543, 1
        %v4560 = vrot.slane %v4544, 1
        %v4561 = vrot.slane %v4545, 1
        %v4562 = vrot.slane %v4546, 1
        %v4563 = vrot.slane %v4547, 1
        %v4564 = vrot.slane %v4548, 1
        %v4565 = vrot.slane %v4549, 1
        %v4566 = vrot.slane %v4550, 1
        %v4575 = vadd.f32 %v4503, %v4559
        %v4576 = vadd.f32 %v4504, %v4560
        %v4577 = vadd.f32 %v4505, %v4561
        %v4578 = vadd.f32 %v4506, %v4562
        %v4579 = vadd.f32 %v4507, %v4563
        %v4580 = vadd.f32 %v4508, %v4564
        %v4581 = vadd.f32 %v4509, %v4565
        %v4582 = vadd.f32 %v4510, %v4566
        %v4591 = vcombine.low %v4575, %v4576
        %v4592 = vcombine.low %v4577, %v4578
        %v4593 = vcombine.low %v4579, %v4580
        %v4594 = vcombine.low %v4581, %v4582
        %4599 = vst [vmem:[%s272] sm:$0x77] %v4591
        %4600 = vst [vmem:[%s272 + $0x8] sm:$0x77] %v4592
        %4601 = vst [vmem:[%s272 + $0x10] sm:$0x77] %v4593
        %4602 = vst [vmem:[%s272 + $0x18] sm:$0x77] %v4594
        %s4603 = sand.u32 %s181, 1
        %s4604 = scalar_lea.sflag [#allocation4], %s4603
        %s4605 = sand.u32 %s181, 1
        %s4606 = smul.addr %s4605, 32
        %s4607 = scalar_lea.vmem [#allocation3], %s4606
        // Predicated region
        $region49: #{tpu_custom_call.1} parent=47 // pred_check
          %p4608 = pneg %p191
        $region50: #{tpu_custom_call.1} parent=47 // pred_check_branch
          %4610 = sbr.rel (%p4608) target = $region52
        $region51: #{tpu_custom_call.1} parent=47 // pred_region
          %s4611 = smul.u32 8, %s21
          %s4613 = ssub.s32 512, 512
          %4614 = vsyncadd %s4604, %s4613
          %s4615 = smul.addr %s4611, 64
          %s4616 = scalar_lea.hbm %s7, %s4615
          %s4618 = sshll.u32 %s4607, 4
          %s4619 = int_to_ptr.vmem [resolvable:$true] %s4618
          %4621 = dma.vmem_to_hbm [thread:$0]  %s4619, 512, %s4616, %s4604
        $region52: #{tpu_custom_call.1} parent=47 // pred_fallthru
          _
      $region48: #{tpu_custom_call.1} parent=5 // pred_fallthru
        _
      %p4622 = scmp.le.s32.totalorder 2, %s16
      // Predicated region
      $region53: #{tpu_custom_call.1} parent=5 // pred_check
        %p4623 = pneg %p4622
      $region54: #{tpu_custom_call.1} parent=5 // pred_check_branch
        %4625 = sbr.rel (%p4623) target = $region56
      $region55: #{tpu_custom_call.1} parent=5 // pred_region
        %s4626 = ssub.s32 %s16, 2
        // Predicated region
        $region57: #{tpu_custom_call.1} parent=55 // pred_check
          %p4627 = pneg %p197
        $region58: #{tpu_custom_call.1} parent=55 // pred_check_branch
          %4629 = sbr.rel (%p4627) target = $region60
        $region59: #{tpu_custom_call.1} parent=55 // pred_region
          %s4630 = sand.u32 %s182, 1
          %s4631 = scalar_lea.sflag [#allocation4], %s4630
          %s4632 = sand.u32 %s182, 1
          %s4633 = smul.addr %s4632, 32
          %s4634 = scalar_lea.vmem [#allocation3], %s4633
          %4635 = dma.done %s4631, 512
        $region60: #{tpu_custom_call.1} parent=55 // pred_fallthru
          _
      $region56: #{tpu_custom_call.1} parent=5 // pred_fallthru
        _
    $region6: #{tpu_custom_call.1} parent=1 // loop_footer
      %s20 = sadd.s32 1, %s16
    $region7: #{tpu_custom_call.1} parent=1 // loop_footer_branch
      %15 = sbr.rel target = $region3
    $region8: #{tpu_custom_call.1} parent=1 // loop_exit
      _
    %4636 = vsyncpa [#allocation4], 1
    %s4637 = scalar_lea.sflag [#allocation4], 1
    %4638 = vsyncpa %s4637, 1

</llo_original>
